<compile_context>
chip_gen: v7x
topology: tpu7x:2x2x1
jax: 0.10.0
libtpu: 0.0.40
codegen_flags: <defaults>
</compile_context>

<pallas_src>
import functools
import math

import jax
import jax.numpy as jnp
from jax import lax
from jax.experimental import pallas as pl
from jax.experimental.pallas import tpu as pltpu


# ------------------------------ configuration ------------------------------ #

CFG = dict(
    vocab=64,
    hidden=32,
    heads=4,
    layers=2,
    intermediate=64,
    max_pos=16,
    n_classes=3,
)

NPAD = 128  # lane-dense padding for the classifier-head output


# ------------------------------ fused kernel ------------------------------- #

def _fused_bert_kernel(x_ref, bias_ref, wl_ref, bl_ref, wh_ref, bh_ref, out_ref,
                       *, S, H, nH, dH, I, L):
    """One batch element per grid step: encoder + pooler + head, all in VMEM.

    x_ref:    (1, S, H)           summed embeddings (word+pos+type)
    bias_ref: (1, 1, S)           additive attention-mask bias ((1-mask)*-10000)
    wl_ref:   (L, H, 3H+H+I+I)    per-layer weights:  wqkv | wo | w1 | w2^T
    bl_ref:   (L, 1, 3H+6H+I)     per-layer vectors:  bqkv | bo | ln1_g | ln1_b | b1 | b2 | ln2_g | ln2_b
    wh_ref:   (H, H+NPAD)         pool_w | out_w (zero-padded to NPAD lanes)
    bh_ref:   (1, 3H+NPAD)        emb_ln_g | emb_ln_b | pool_b | out_b (padded)
    out_ref:  (1, 1, NPAD)        padded logits for this batch element
    """
    f32 = jnp.float32
    H3 = 3 * H

    # ---- packed-slab column offsets (trace-time Python ints) ----
    c_qkv, c_o, c_1, c_2t = 0, H3, H3 + H, H3 + H + I
    d_bqkv = 0
    d_bo = d_bqkv + H3
    d_l1g = d_bo + H
    d_l1b = d_l1g + H
    d_b1 = d_l1b + H
    d_b2 = d_b1 + I
    d_l2g = d_b2 + H
    d_l2b = d_l2g + H

    def layer_norm(y, g, b):
        mu = jnp.mean(y, axis=-1, keepdims=True)
        var = jnp.mean((y - mu) * (y - mu), axis=-1, keepdims=True)
        return (y - mu) * lax.rsqrt(var + 1e-12) * g + b

    def gelu(y):
        # TODO(synk): HF bert-base-cased uses exact erf-GELU; tanh approximation is
        # used here (erf lowering in Mosaic is not guaranteed; diff ~1e-3).
        return 0.5 * y * (1.0 + jnp.tanh(0.7978845608028654 * (y + 0.044715 * y * y * y)))

    # --- embedding LayerNorm (no residual) ---
    emb_g = bh_ref[:, 0:H]
    emb_b = bh_ref[:, H:2 * H]
    x = layer_norm(x_ref[0], emb_g, emb_b)               # (S, H) f32
    bias = bias_ref[0]                                   # (1, S) additive mask

    # --- transformer layers (static unroll; L is small) ---
    for l in range(L):
        wqkv = wl_ref[l, :, c_qkv:c_o]                   # (H, 3H) (1/sqrt(dH) folded into Q cols)
        wo = wl_ref[l, :, c_o:c_1]                       # (H, H)
        w1 = wl_ref[l, :, c_1:c_2t]                      # (H, I)
        w2t = wl_ref[l, :, c_2t:]                        # (H, I)  == w2^T

        bqkv = bl_ref[l, :, d_bqkv:d_bo]                 # (1, 3H)
        bo = bl_ref[l, :, d_bo:d_l1g]
        ln1g = bl_ref[l, :, d_l1g:d_l1b]
        ln1b = bl_ref[l, :, d_l1b:d_b1]
        b1 = bl_ref[l, :, d_b1:d_b2]
        b2 = bl_ref[l, :, d_b2:d_l2g]
        ln2g = bl_ref[l, :, d_l2g:d_l2b]
        ln2b = bl_ref[l, :, d_l2b:]

        # fused QKV projection: one (S,H)x(H,3H) matmul
        qkv = jnp.dot(x, wqkv, preferred_element_type=f32) + bqkv      # (S, 3H)

        # head-batched layout (nH, S, dH); scale already folded into weights
        q3 = jnp.stack([qkv[:, h * dH:(h + 1) * dH] for h in range(nH)], axis=0)
        k3 = jnp.stack([qkv[:, H + h * dH:H + (h + 1) * dH] for h in range(nH)], axis=0)
        v3 = jnp.stack([qkv[:, 2 * H + h * dH:2 * H + (h + 1) * dH] for h in range(nH)], axis=0)

        # batched QK^T, masked softmax, batched PV
        s = jnp.einsum('hqd,hkd->hqk', q3, k3, preferred_element_type=f32)   # (nH, S, S)
        s = s + bias                                                          # mask over keys
        m = jnp.max(s, axis=-1, keepdims=True)
        p = jnp.exp(s - m)
        p = p / jnp.sum(p, axis=-1, keepdims=True)                            # exact softmax
        ctx3 = jnp.einsum('hqk,hkd->hqd', p, v3, preferred_element_type=f32)  # (nH, S, dH)
        ctx = jnp.concatenate([ctx3[h] for h in range(nH)], axis=-1)          # (S, H)

        # out-projection + residual + LN1
        attn_out = jnp.dot(ctx, wo, preferred_element_type=f32) + bo
        x = layer_norm(attn_out + x, ln1g, ln1b)

        # FFN (GELU) + residual + LN2  (w2 stored transposed -> contract dim 1/1)
        ff = gelu(jnp.dot(x, w1, preferred_element_type=f32) + b1)            # (S, I)
        ff = lax.dot_general(ff, w2t, (((1,), (1,)), ((), ())),
                             preferred_element_type=f32) + b2                 # (S, H)
        x = layer_norm(ff + x, ln2g, ln2b)

    # --- pooler on the [CLS] token (row 0 of this batch tile) ---
    pool_w = wh_ref[:, 0:H]
    out_w = wh_ref[:, H:]
    pool_b = bh_ref[:, 2 * H:3 * H]
    out_b = bh_ref[:, 3 * H:]

    cls = x[0:1, :]                                                           # (1, H)
    pooled = jnp.tanh(jnp.dot(cls, pool_w, preferred_element_type=f32) + pool_b)
    # nn.Dropout(p=0.3) is identity at inference.
    out_ref[0] = jnp.dot(pooled, out_w, preferred_element_type=f32) + out_b   # (1, NPAD)


# ------------------------------ wrapper / glue ------------------------------ #

def review_classifier_forward(packed, input_ids, attention_mask, cfg=CFG):
    """Equivalent of ReviewClassifier.forward(input_ids, attention_mask), eval mode."""
    B, S = input_ids.shape
    H, nH, L, I = cfg["hidden"], cfg["heads"], cfg["layers"], cfg["intermediate"]
    nC = cfg["n_classes"]
    dH = H // nH

    # --- embeddings (table gathers are plain-JAX glue; everything else is fused) ---
    emb = (packed["word_emb"][input_ids]
           + packed["pos_emb"][jnp.arange(S)][None, :, :]
           + packed["type_emb"][0][None, None, :]).astype(jnp.float32)        # (B, S, H)

    # additive attention-mask bias, kept small: (B, 1, S); broadcast in-kernel.
    mask_bias = ((1.0 - attention_mask.astype(jnp.float32)) * -10000.0)[:, None, :]

    wl, bl = packed["w_layers"], packed["b_layers"]
    wh, bh = packed["w_head"], packed["b_head"]

    kernel = functools.partial(_fused_bert_kernel, S=S, H=H, nH=nH, dH=dH, I=I, L=L)

    # Grid over batch ("parallel" -> uses both TensorCores on v7x).  Weight slabs
    # use constant index_maps, so they are DMA'd once and stay resident in VMEM.
    logits_pad = pl.pallas_call(
        kernel,
        grid=(B,),
        out_shape=jax.ShapeDtypeStruct((B, 1, NPAD), jnp.float32),
        in_specs=[
            pl.BlockSpec((1, S, H), lambda b: (b, 0, 0)),     # embeddings
            pl.BlockSpec((1, 1, S), lambda b: (b, 0, 0)),     # mask bias
            pl.BlockSpec(wl.shape, lambda b: (0, 0, 0)),      # per-layer weight slab
            pl.BlockSpec(bl.shape, lambda b: (0, 0, 0)),      # per-layer bias/LN slab
            pl.BlockSpec(wh.shape, lambda b: (0, 0)),         # pooler + head weights
            pl.BlockSpec(bh.shape, lambda b: (0, 0)),         # emb-LN + pooler/head biases
        ],
        out_specs=pl.BlockSpec((1, 1, NPAD), lambda b: (b, 0, 0)),
        compiler_params=pltpu.CompilerParams(dimension_semantics=("parallel",)),
    )(emb, mask_bias, wl, bl, wh, bh)

    return logits_pad[:, 0, :nC]


# ----------------------------- synthetic params ----------------------------- #

def init_raw_params(key, cfg):
    H, I, L = cfg["hidden"], cfg["intermediate"], cfg["layers"]
    std = 0.02
    ks = iter(jax.random.split(key, 32))

    def nrm(shape):
        return std * jax.random.normal(next(ks), shape, dtype=jnp.float32)

    return {
        "word_emb": nrm((cfg["vocab"], H)),
        "pos_emb": nrm((cfg["max_pos"], H)),
        "type_emb": nrm((2, H)),
        "emb_ln_g": jnp.ones((1, H), jnp.float32),
        "emb_ln_b": jnp.zeros((1, H), jnp.float32),
        "wqkv": nrm((L, H, 3 * H)),
        "bqkv": jnp.zeros((L, 1, 3 * H), jnp.float32),
        "wo": nrm((L, H, H)),
        "bo": jnp.zeros((L, 1, H), jnp.float32),
        "ln1_g": jnp.ones((L, 1, H), jnp.float32),
        "ln1_b": jnp.zeros((L, 1, H), jnp.float32),
        "w1": nrm((L, H, I)),
        "b1": jnp.zeros((L, 1, I), jnp.float32),
        "w2": nrm((L, I, H)),
        "b2": jnp.zeros((L, 1, H), jnp.float32),
        "ln2_g": jnp.ones((L, 1, H), jnp.float32),
        "ln2_b": jnp.zeros((L, 1, H), jnp.float32),
        "pool_w": nrm((H, H)),
        "pool_b": jnp.zeros((1, H), jnp.float32),
        "out_w": nrm((H, cfg["n_classes"])),
        "out_b": jnp.zeros((cfg["n_classes"],), jnp.float32),
    }


def pack_params(raw, cfg):
    """One-time preprocessing: slab packing, scale folding, head padding."""
    H, nC = cfg["hidden"], cfg["n_classes"]
    dH = H // cfg["heads"]
    scale = 1.0 / math.sqrt(dH)

    # fold 1/sqrt(dH) into the Q third of the fused QKV projection (weights + bias)
    wqkv = raw["wqkv"].at[:, :, :H].multiply(scale)
    bqkv = raw["bqkv"].at[:, :, :H].multiply(scale)

    # per-layer weight slab: wqkv | wo | w1 | w2^T   -> (L, H, 3H+H+I+I)
    w_layers = jnp.concatenate(
        [wqkv, raw["wo"], raw["w1"], jnp.transpose(raw["w2"], (0, 2, 1))], axis=-1)

    # per-layer bias/LN slab: bqkv | bo | ln1g | ln1b | b1 | b2 | ln2g | ln2b
    b_layers = jnp.concatenate(
        [bqkv, raw["bo"], raw["ln1_g"], raw["ln1_b"],
         raw["b1"], raw["b2"], raw["ln2_g"], raw["ln2_b"]], axis=-1)

    # lane-dense padded classifier head (done once, not per forward)
    out_w_pad = jnp.zeros((H, NPAD), jnp.float32).at[:, :nC].set(raw["out_w"])
    out_b_pad = jnp.zeros((1, NPAD), jnp.float32).at[:, :nC].set(raw["out_b"][None, :])

    w_head = jnp.concatenate([raw["pool_w"], out_w_pad], axis=-1)          # (H, H+NPAD)
    b_head = jnp.concatenate(
        [raw["emb_ln_g"], raw["emb_ln_b"], raw["pool_b"], out_b_pad], axis=-1)  # (1, 3H+NPAD)

    return {
        "word_emb": raw["word_emb"],
        "pos_emb": raw["pos_emb"],
        "type_emb": raw["type_emb"],
        "w_layers": w_layers,
        "b_layers": b_layers,
        "w_head": w_head,
        "b_head": b_head,
    }


if __name__ == "__main__":
    key = jax.random.PRNGKey(0)
    pkey, ikey = jax.random.split(key)

    B, S = 2, 8
    packed = pack_params(init_raw_params(pkey, CFG), CFG)
    input_ids = jax.random.randint(ikey, (B, S), 0, CFG["vocab"], dtype=jnp.int32)
    attention_mask = jnp.array(
        [[1, 1, 1, 1, 1, 1, 1, 1],
         [1, 1, 1, 1, 1, 0, 0, 0]], dtype=jnp.int32)

    logits = review_classifier_forward(packed, input_ids, attention_mask)
    jax.block_until_ready(logits)
    assert logits.shape == (B, CFG["n_classes"])
    print("KERNEL_OK")
</pallas_src>

<mosaic_0001>
module attributes {stable_mosaic.version = 11 : i64} {
  func.func @_fused_bert_kernel(%arg0: i32, %arg1: memref<1x8x32xf32, #tpu.memory_space<vmem>>, %arg2: memref<1x1x8xf32, #tpu.memory_space<vmem>>, %arg3: memref<2x32x256xf32, #tpu.memory_space<vmem>>, %arg4: memref<2x1x352xf32, #tpu.memory_space<vmem>>, %arg5: memref<32x160xf32, #tpu.memory_space<vmem>>, %arg6: memref<1x224xf32, #tpu.memory_space<vmem>>, %arg7: memref<1x1x128xf32, #tpu.memory_space<vmem>>) attributes {dimension_semantics = [#tpu.dimension_semantics<parallel>], iteration_bounds = array<i64: 2>, scalar_prefetch = 0 : i64, scratch_operands = 0 : i64, tpu.core_type = #tpu.core_type<tc>, window_params = [{transform_indices = @transform_0, window_bounds = array<i64: 1, 8, 32>}, {transform_indices = @transform_1, window_bounds = array<i64: 1, 1, 8>}, {pipeline_mode = #tpu.pipeline_mode<synchronous>, transform_indices = @transform_2, window_bounds = array<i64: 2, 32, 256>}, {pipeline_mode = #tpu.pipeline_mode<synchronous>, transform_indices = @transform_3, window_bounds = array<i64: 2, 1, 352>}, {pipeline_mode = #tpu.pipeline_mode<synchronous>, transform_indices = @transform_4, window_bounds = array<i64: 32, 160>}, {pipeline_mode = #tpu.pipeline_mode<synchronous>, transform_indices = @transform_5, window_bounds = array<i64: 1, 224>}, {transform_indices = @transform_6, window_bounds = array<i64: 1, 1, 128>}]} {
    %c0 = arith.constant 0 : index
    %c0_0 = arith.constant 0 : index
    %0 = vector.load %arg6[%c0, %c0_0] : memref<1x224xf32, #tpu.memory_space<vmem>>, vector<1x32xf32>
    %c0_1 = arith.constant 0 : index
    %c32 = arith.constant 32 : index
    %1 = vector.load %arg6[%c0_1, %c32] : memref<1x224xf32, #tpu.memory_space<vmem>>, vector<1x32xf32>
    %c0_2 = arith.constant 0 : index
    %c0_3 = arith.constant 0 : index
    %c0_4 = arith.constant 0 : index
    %2 = vector.load %arg1[%c0_2, %c0_3, %c0_4] : memref<1x8x32xf32, #tpu.memory_space<vmem>>, vector<1x8x32xf32>
    %3 = vector.shape_cast %2 : vector<1x8x32xf32> to vector<8x32xf32>
    %cst = arith.constant dense<0.000000e+00> : vector<8xf32>
    %4 = vector.multi_reduction <add>, %3, %cst [1] : vector<8x32xf32> to vector<8xf32>
    %5 = vector.shape_cast %4 : vector<8xf32> to vector<8x1xf32>
    %cst_5 = arith.constant 3.200000e+01 : f32
    %6 = vector.broadcast %cst_5 : f32 to vector<8x1xf32>
    %7 = arith.divf %5, %6 : vector<8x1xf32>
    %8 = vector.broadcast %7 : vector<8x1xf32> to vector<8x32xf32>
    %9 = arith.subf %3, %8 : vector<8x32xf32>
    %10 = vector.broadcast %7 : vector<8x1xf32> to vector<8x32xf32>
    %11 = arith.subf %3, %10 : vector<8x32xf32>
    %12 = arith.mulf %9, %11 : vector<8x32xf32>
    %cst_6 = arith.constant dense<0.000000e+00> : vector<8xf32>
    %13 = vector.multi_reduction <add>, %12, %cst_6 [1] : vector<8x32xf32> to vector<8xf32>
    %14 = vector.shape_cast %13 : vector<8xf32> to vector<8x1xf32>
    %cst_7 = arith.constant 3.200000e+01 : f32
    %15 = vector.broadcast %cst_7 : f32 to vector<8x1xf32>
    %16 = arith.divf %14, %15 : vector<8x1xf32>
    %17 = vector.broadcast %7 : vector<8x1xf32> to vector<8x32xf32>
    %18 = arith.subf %3, %17 : vector<8x32xf32>
    %cst_8 = arith.constant 9.99999996E-13 : f32
    %19 = vector.broadcast %cst_8 : f32 to vector<8x1xf32>
    %20 = arith.addf %16, %19 : vector<8x1xf32>
    %21 = math.rsqrt %20 : vector<8x1xf32>
    %22 = vector.broadcast %21 : vector<8x1xf32> to vector<8x32xf32>
    %23 = arith.mulf %18, %22 : vector<8x32xf32>
    %24 = vector.broadcast %0 : vector<1x32xf32> to vector<8x32xf32>
    %25 = arith.mulf %23, %24 : vector<8x32xf32>
    %26 = vector.broadcast %1 : vector<1x32xf32> to vector<8x32xf32>
    %27 = arith.addf %25, %26 : vector<8x32xf32>
    %c0_9 = arith.constant 0 : index
    %c0_10 = arith.constant 0 : index
    %c0_11 = arith.constant 0 : index
    %28 = vector.load %arg2[%c0_9, %c0_10, %c0_11] : memref<1x1x8xf32, #tpu.memory_space<vmem>>, vector<1x1x8xf32>
    %29 = vector.shape_cast %28 : vector<1x1x8xf32> to vector<1x8xf32>
    %c0_12 = arith.constant 0 : index
    %c0_13 = arith.constant 0 : index
    %c0_14 = arith.constant 0 : index
    %30 = vector.load %arg3[%c0_12, %c0_13, %c0_14] : memref<2x32x256xf32, #tpu.memory_space<vmem>>, vector<1x32x96xf32>
    %31 = vector.shape_cast %30 : vector<1x32x96xf32> to vector<32x96xf32>
    %c0_15 = arith.constant 0 : index
    %c0_16 = arith.constant 0 : index
    %c96 = arith.constant 96 : index
    %32 = vector.load %arg3[%c0_15, %c0_16, %c96] : memref<2x32x256xf32, #tpu.memory_space<vmem>>, vector<1x32x32xf32>
    %33 = vector.shape_cast %32 : vector<1x32x32xf32> to vector<32x32xf32>
    %c0_17 = arith.constant 0 : index
    %c0_18 = arith.constant 0 : index
    %c128 = arith.constant 128 : index
    %34 = vector.load %arg3[%c0_17, %c0_18, %c128] : memref<2x32x256xf32, #tpu.memory_space<vmem>>, vector<1x32x64xf32>
    %35 = vector.shape_cast %34 : vector<1x32x64xf32> to vector<32x64xf32>
    %c0_19 = arith.constant 0 : index
    %c0_20 = arith.constant 0 : index
    %c192 = arith.constant 192 : index
    %36 = vector.load %arg3[%c0_19, %c0_20, %c192] : memref<2x32x256xf32, #tpu.memory_space<vmem>>, vector<1x32x64xf32>
    %37 = vector.shape_cast %36 : vector<1x32x64xf32> to vector<32x64xf32>
    %c0_21 = arith.constant 0 : index
    %c0_22 = arith.constant 0 : index
    %c0_23 = arith.constant 0 : index
    %38 = vector.load %arg4[%c0_21, %c0_22, %c0_23] : memref<2x1x352xf32, #tpu.memory_space<vmem>>, vector<1x1x96xf32>
    %39 = vector.shape_cast %38 : vector<1x1x96xf32> to vector<1x96xf32>
    %c0_24 = arith.constant 0 : index
    %c0_25 = arith.constant 0 : index
    %c96_26 = arith.constant 96 : index
    %40 = vector.load %arg4[%c0_24, %c0_25, %c96_26] : memref<2x1x352xf32, #tpu.memory_space<vmem>>, vector<1x1x32xf32>
    %41 = vector.shape_cast %40 : vector<1x1x32xf32> to vector<1x32xf32>
    %c0_27 = arith.constant 0 : index
    %c0_28 = arith.constant 0 : index
    %c128_29 = arith.constant 128 : index
    %42 = vector.load %arg4[%c0_27, %c0_28, %c128_29] : memref<2x1x352xf32, #tpu.memory_space<vmem>>, vector<1x1x32xf32>
    %43 = vector.shape_cast %42 : vector<1x1x32xf32> to vector<1x32xf32>
    %c0_30 = arith.constant 0 : index
    %c0_31 = arith.constant 0 : index
    %c160 = arith.constant 160 : index
    %44 = vector.load %arg4[%c0_30, %c0_31, %c160] : memref<2x1x352xf32, #tpu.memory_space<vmem>>, vector<1x1x32xf32>
    %45 = vector.shape_cast %44 : vector<1x1x32xf32> to vector<1x32xf32>
    %c0_32 = arith.constant 0 : index
    %c0_33 = arith.constant 0 : index
    %c192_34 = arith.constant 192 : index
    %46 = vector.load %arg4[%c0_32, %c0_33, %c192_34] : memref<2x1x352xf32, #tpu.memory_space<vmem>>, vector<1x1x64xf32>
    %47 = vector.shape_cast %46 : vector<1x1x64xf32> to vector<1x64xf32>
    %c0_35 = arith.constant 0 : index
    %c0_36 = arith.constant 0 : index
    %c256 = arith.constant 256 : index
    %48 = vector.load %arg4[%c0_35, %c0_36, %c256] : memref<2x1x352xf32, #tpu.memory_space<vmem>>, vector<1x1x32xf32>
    %49 = vector.shape_cast %48 : vector<1x1x32xf32> to vector<1x32xf32>
    %c0_37 = arith.constant 0 : index
    %c0_38 = arith.constant 0 : index
    %c288 = arith.constant 288 : index
    %50 = vector.load %arg4[%c0_37, %c0_38, %c288] : memref<2x1x352xf32, #tpu.memory_space<vmem>>, vector<1x1x32xf32>
    %51 = vector.shape_cast %50 : vector<1x1x32xf32> to vector<1x32xf32>
    %c0_39 = arith.constant 0 : index
    %c0_40 = arith.constant 0 : index
    %c320 = arith.constant 320 : index
    %52 = vector.load %arg4[%c0_39, %c0_40, %c320] : memref<2x1x352xf32, #tpu.memory_space<vmem>>, vector<1x1x32xf32>
    %53 = vector.shape_cast %52 : vector<1x1x32xf32> to vector<1x32xf32>
    %cst_41 = arith.constant dense<0.000000e+00> : vector<8x96xf32>
    %54 = tpu.matmul %27, %31, %cst_41 {dimension_numbers = #tpu.dot_dimension_numbers<[1], [0], [0], [1], [0, 0, 1, 1], [], []>} : vector<8x32xf32>, vector<32x96xf32>, vector<8x96xf32> -> vector<8x96xf32>
    %55 = vector.broadcast %39 : vector<1x96xf32> to vector<8x96xf32>
    %56 = arith.addf %54, %55 : vector<8x96xf32>
    %57 = vector.extract_strided_slice %56 {offsets = [0, 0], sizes = [8, 8], strides = [1, 1]} : vector<8x96xf32> to vector<8x8xf32>
    %58 = vector.extract_strided_slice %56 {offsets = [0, 8], sizes = [8, 8], strides = [1, 1]} : vector<8x96xf32> to vector<8x8xf32>
    %59 = vector.extract_strided_slice %56 {offsets = [0, 16], sizes = [8, 8], strides = [1, 1]} : vector<8x96xf32> to vector<8x8xf32>
    %60 = vector.extract_strided_slice %56 {offsets = [0, 24], sizes = [8, 8], strides = [1, 1]} : vector<8x96xf32> to vector<8x8xf32>
    %61 = vector.shape_cast %57 : vector<8x8xf32> to vector<1x8x8xf32>
    %62 = vector.shape_cast %58 : vector<8x8xf32> to vector<1x8x8xf32>
    %63 = vector.shape_cast %59 : vector<8x8xf32> to vector<1x8x8xf32>
    %64 = vector.shape_cast %60 : vector<8x8xf32> to vector<1x8x8xf32>
    %65 = tpu.concatenate %61, %62, %63, %64 in 0 : vector<1x8x8xf32>, vector<1x8x8xf32>, vector<1x8x8xf32>, vector<1x8x8xf32> -> vector<4x8x8xf32>
    %66 = vector.extract_strided_slice %56 {offsets = [0, 32], sizes = [8, 8], strides = [1, 1]} : vector<8x96xf32> to vector<8x8xf32>
    %67 = vector.extract_strided_slice %56 {offsets = [0, 40], sizes = [8, 8], strides = [1, 1]} : vector<8x96xf32> to vector<8x8xf32>
    %68 = vector.extract_strided_slice %56 {offsets = [0, 48], sizes = [8, 8], strides = [1, 1]} : vector<8x96xf32> to vector<8x8xf32>
    %69 = vector.extract_strided_slice %56 {offsets = [0, 56], sizes = [8, 8], strides = [1, 1]} : vector<8x96xf32> to vector<8x8xf32>
    %70 = vector.shape_cast %66 : vector<8x8xf32> to vector<1x8x8xf32>
    %71 = vector.shape_cast %67 : vector<8x8xf32> to vector<1x8x8xf32>
    %72 = vector.shape_cast %68 : vector<8x8xf32> to vector<1x8x8xf32>
    %73 = vector.shape_cast %69 : vector<8x8xf32> to vector<1x8x8xf32>
    %74 = tpu.concatenate %70, %71, %72, %73 in 0 : vector<1x8x8xf32>, vector<1x8x8xf32>, vector<1x8x8xf32>, vector<1x8x8xf32> -> vector<4x8x8xf32>
    %75 = vector.extract_strided_slice %56 {offsets = [0, 64], sizes = [8, 8], strides = [1, 1]} : vector<8x96xf32> to vector<8x8xf32>
    %76 = vector.extract_strided_slice %56 {offsets = [0, 72], sizes = [8, 8], strides = [1, 1]} : vector<8x96xf32> to vector<8x8xf32>
    %77 = vector.extract_strided_slice %56 {offsets = [0, 80], sizes = [8, 8], strides = [1, 1]} : vector<8x96xf32> to vector<8x8xf32>
    %78 = vector.extract_strided_slice %56 {offsets = [0, 88], sizes = [8, 8], strides = [1, 1]} : vector<8x96xf32> to vector<8x8xf32>
    %79 = vector.shape_cast %75 : vector<8x8xf32> to vector<1x8x8xf32>
    %80 = vector.shape_cast %76 : vector<8x8xf32> to vector<1x8x8xf32>
    %81 = vector.shape_cast %77 : vector<8x8xf32> to vector<1x8x8xf32>
    %82 = vector.shape_cast %78 : vector<8x8xf32> to vector<1x8x8xf32>
    %83 = tpu.concatenate %79, %80, %81, %82 in 0 : vector<1x8x8xf32>, vector<1x8x8xf32>, vector<1x8x8xf32>, vector<1x8x8xf32> -> vector<4x8x8xf32>
    "tpu.trace_start"() <{level = 10 : i32, message = "hqd,hkd->hqk"}> : () -> ()
    %cst_42 = arith.constant dense<0.000000e+00> : vector<4x8x8xf32>
    %84 = tpu.matmul %65, %74, %cst_42 {dimension_numbers = #tpu.dot_dimension_numbers<[2], [2], [1], [1], [0, 0, 0, 1, 1, 1], [0], [0]>} : vector<4x8x8xf32>, vector<4x8x8xf32>, vector<4x8x8xf32> -> vector<4x8x8xf32>
    "tpu.trace_stop"() : () -> ()
    %85 = vector.shape_cast %29 : vector<1x8xf32> to vector<1x1x8xf32>
    %86 = vector.broadcast %85 : vector<1x1x8xf32> to vector<4x8x8xf32>
    %87 = arith.addf %84, %86 : vector<4x8x8xf32>
    %cst_43 = arith.constant dense<0xFF800000> : vector<4x8xf32>
    %88 = vector.multi_reduction <maximumf>, %87, %cst_43 [2] : vector<4x8x8xf32> to vector<4x8xf32>
    %89 = vector.shape_cast %88 : vector<4x8xf32> to vector<4x8x1xf32>
    %90 = vector.broadcast %89 : vector<4x8x1xf32> to vector<4x8x8xf32>
    %91 = arith.subf %87, %90 : vector<4x8x8xf32>
    %92 = math.exp %91 : vector<4x8x8xf32>
    %cst_44 = arith.constant dense<0.000000e+00> : vector<4x8xf32>
    %93 = vector.multi_reduction <add>, %92, %cst_44 [2] : vector<4x8x8xf32> to vector<4x8xf32>
    %94 = vector.shape_cast %93 : vector<4x8xf32> to vector<4x8x1xf32>
    %95 = vector.broadcast %94 : vector<4x8x1xf32> to vector<4x8x8xf32>
    %96 = arith.divf %92, %95 : vector<4x8x8xf32>
    "tpu.trace_start"() <{level = 10 : i32, message = "hqk,hkd->hqd"}> : () -> ()
    %cst_45 = arith.constant dense<0.000000e+00> : vector<4x8x8xf32>
    %97 = tpu.matmul %96, %83, %cst_45 {dimension_numbers = #tpu.dot_dimension_numbers<[2], [1], [1], [2], [0, 0, 0, 1, 1, 2], [0], [0]>} : vector<4x8x8xf32>, vector<4x8x8xf32>, vector<4x8x8xf32> -> vector<4x8x8xf32>
    "tpu.trace_stop"() : () -> ()
    %98 = vector.extract_strided_slice %97 {offsets = [0, 0, 0], sizes = [1, 8, 8], strides = [1, 1, 1]} : vector<4x8x8xf32> to vector<1x8x8xf32>
    %99 = vector.shape_cast %98 : vector<1x8x8xf32> to vector<8x8xf32>
    %100 = vector.extract_strided_slice %97 {offsets = [1, 0, 0], sizes = [1, 8, 8], strides = [1, 1, 1]} : vector<4x8x8xf32> to vector<1x8x8xf32>
    %101 = vector.shape_cast %100 : vector<1x8x8xf32> to vector<8x8xf32>
    %102 = vector.extract_strided_slice %97 {offsets = [2, 0, 0], sizes = [1, 8, 8], strides = [1, 1, 1]} : vector<4x8x8xf32> to vector<1x8x8xf32>
    %103 = vector.shape_cast %102 : vector<1x8x8xf32> to vector<8x8xf32>
    %104 = vector.extract_strided_slice %97 {offsets = [3, 0, 0], sizes = [1, 8, 8], strides = [1, 1, 1]} : vector<4x8x8xf32> to vector<1x8x8xf32>
    %105 = vector.shape_cast %104 : vector<1x8x8xf32> to vector<8x8xf32>
    %106 = tpu.concatenate %99, %101, %103, %105 in 1 : vector<8x8xf32>, vector<8x8xf32>, vector<8x8xf32>, vector<8x8xf32> -> vector<8x32xf32>
    %cst_46 = arith.constant dense<0.000000e+00> : vector<8x32xf32>
    %107 = tpu.matmul %106, %33, %cst_46 {dimension_numbers = #tpu.dot_dimension_numbers<[1], [0], [0], [1], [0, 0, 1, 1], [], []>} : vector<8x32xf32>, vector<32x32xf32>, vector<8x32xf32> -> vector<8x32xf32>
    %108 = vector.broadcast %41 : vector<1x32xf32> to vector<8x32xf32>
    %109 = arith.addf %107, %108 : vector<8x32xf32>
    %110 = arith.addf %109, %27 : vector<8x32xf32>
    %cst_47 = arith.constant dense<0.000000e+00> : vector<8xf32>
    %111 = vector.multi_reduction <add>, %110, %cst_47 [1] : vector<8x32xf32> to vector<8xf32>
    %112 = vector.shape_cast %111 : vector<8xf32> to vector<8x1xf32>
    %cst_48 = arith.constant 3.200000e+01 : f32
    %113 = vector.broadcast %cst_48 : f32 to vector<8x1xf32>
    %114 = arith.divf %112, %113 : vector<8x1xf32>
    %115 = vector.broadcast %114 : vector<8x1xf32> to vector<8x32xf32>
    %116 = arith.subf %110, %115 : vector<8x32xf32>
    %117 = vector.broadcast %114 : vector<8x1xf32> to vector<8x32xf32>
    %118 = arith.subf %110, %117 : vector<8x32xf32>
    %119 = arith.mulf %116, %118 : vector<8x32xf32>
    %cst_49 = arith.constant dense<0.000000e+00> : vector<8xf32>
    %120 = vector.multi_reduction <add>, %119, %cst_49 [1] : vector<8x32xf32> to vector<8xf32>
    %121 = vector.shape_cast %120 : vector<8xf32> to vector<8x1xf32>
    %cst_50 = arith.constant 3.200000e+01 : f32
    %122 = vector.broadcast %cst_50 : f32 to vector<8x1xf32>
    %123 = arith.divf %121, %122 : vector<8x1xf32>
    %124 = vector.broadcast %114 : vector<8x1xf32> to vector<8x32xf32>
    %125 = arith.subf %110, %124 : vector<8x32xf32>
    %cst_51 = arith.constant 9.99999996E-13 : f32
    %126 = vector.broadcast %cst_51 : f32 to vector<8x1xf32>
    %127 = arith.addf %123, %126 : vector<8x1xf32>
    %128 = math.rsqrt %127 : vector<8x1xf32>
    %129 = vector.broadcast %128 : vector<8x1xf32> to vector<8x32xf32>
    %130 = arith.mulf %125, %129 : vector<8x32xf32>
    %131 = vector.broadcast %43 : vector<1x32xf32> to vector<8x32xf32>
    %132 = arith.mulf %130, %131 : vector<8x32xf32>
    %133 = vector.broadcast %45 : vector<1x32xf32> to vector<8x32xf32>
    %134 = arith.addf %132, %133 : vector<8x32xf32>
    %cst_52 = arith.constant dense<0.000000e+00> : vector<8x64xf32>
    %135 = tpu.matmul %134, %35, %cst_52 {dimension_numbers = #tpu.dot_dimension_numbers<[1], [0], [0], [1], [0, 0, 1, 1], [], []>} : vector<8x32xf32>, vector<32x64xf32>, vector<8x64xf32> -> vector<8x64xf32>
    %136 = vector.broadcast %47 : vector<1x64xf32> to vector<8x64xf32>
    %137 = arith.addf %135, %136 : vector<8x64xf32>
    %cst_53 = arith.constant 5.000000e-01 : f32
    %138 = vector.broadcast %cst_53 : f32 to vector<8x64xf32>
    %139 = arith.mulf %138, %137 : vector<8x64xf32>
    %cst_54 = arith.constant 4.471500e-02 : f32
    %140 = vector.broadcast %cst_54 : f32 to vector<8x64xf32>
    %141 = arith.mulf %140, %137 : vector<8x64xf32>
    %142 = arith.mulf %141, %137 : vector<8x64xf32>
    %143 = arith.mulf %142, %137 : vector<8x64xf32>
    %144 = arith.addf %137, %143 : vector<8x64xf32>
    %cst_55 = arith.constant 0.797884583 : f32
    %145 = vector.broadcast %cst_55 : f32 to vector<8x64xf32>
    %146 = arith.mulf %145, %144 : vector<8x64xf32>
    %147 = math.tanh %146 : vector<8x64xf32>
    %cst_56 = arith.constant 1.000000e+00 : f32
    %148 = vector.broadcast %cst_56 : f32 to vector<8x64xf32>
    %149 = arith.addf %148, %147 : vector<8x64xf32>
    %150 = arith.mulf %139, %149 : vector<8x64xf32>
    %cst_57 = arith.constant dense<0.000000e+00> : vector<8x32xf32>
    %151 = tpu.matmul %150, %37, %cst_57 {dimension_numbers = #tpu.dot_dimension_numbers<[1], [1], [0], [0], [0, 0, 1, 0], [], []>} : vector<8x64xf32>, vector<32x64xf32>, vector<8x32xf32> -> vector<8x32xf32>
    %152 = vector.broadcast %49 : vector<1x32xf32> to vector<8x32xf32>
    %153 = arith.addf %151, %152 : vector<8x32xf32>
    %154 = arith.addf %153, %134 : vector<8x32xf32>
    %cst_58 = arith.constant dense<0.000000e+00> : vector<8xf32>
    %155 = vector.multi_reduction <add>, %154, %cst_58 [1] : vector<8x32xf32> to vector<8xf32>
    %156 = vector.shape_cast %155 : vector<8xf32> to vector<8x1xf32>
    %cst_59 = arith.constant 3.200000e+01 : f32
    %157 = vector.broadcast %cst_59 : f32 to vector<8x1xf32>
    %158 = arith.divf %156, %157 : vector<8x1xf32>
    %159 = vector.broadcast %158 : vector<8x1xf32> to vector<8x32xf32>
    %160 = arith.subf %154, %159 : vector<8x32xf32>
    %161 = vector.broadcast %158 : vector<8x1xf32> to vector<8x32xf32>
    %162 = arith.subf %154, %161 : vector<8x32xf32>
    %163 = arith.mulf %160, %162 : vector<8x32xf32>
    %cst_60 = arith.constant dense<0.000000e+00> : vector<8xf32>
    %164 = vector.multi_reduction <add>, %163, %cst_60 [1] : vector<8x32xf32> to vector<8xf32>
    %165 = vector.shape_cast %164 : vector<8xf32> to vector<8x1xf32>
    %cst_61 = arith.constant 3.200000e+01 : f32
    %166 = vector.broadcast %cst_61 : f32 to vector<8x1xf32>
    %167 = arith.divf %165, %166 : vector<8x1xf32>
    %168 = vector.broadcast %158 : vector<8x1xf32> to vector<8x32xf32>
    %169 = arith.subf %154, %168 : vector<8x32xf32>
    %cst_62 = arith.constant 9.99999996E-13 : f32
    %170 = vector.broadcast %cst_62 : f32 to vector<8x1xf32>
    %171 = arith.addf %167, %170 : vector<8x1xf32>
    %172 = math.rsqrt %171 : vector<8x1xf32>
    %173 = vector.broadcast %172 : vector<8x1xf32> to vector<8x32xf32>
    %174 = arith.mulf %169, %173 : vector<8x32xf32>
    %175 = vector.broadcast %51 : vector<1x32xf32> to vector<8x32xf32>
    %176 = arith.mulf %174, %175 : vector<8x32xf32>
    %177 = vector.broadcast %53 : vector<1x32xf32> to vector<8x32xf32>
    %178 = arith.addf %176, %177 : vector<8x32xf32>
    %c1 = arith.constant 1 : index
    %c0_63 = arith.constant 0 : index
    %c0_64 = arith.constant 0 : index
    %179 = vector.load %arg3[%c1, %c0_63, %c0_64] : memref<2x32x256xf32, #tpu.memory_space<vmem>>, vector<1x32x96xf32>
    %180 = vector.shape_cast %179 : vector<1x32x96xf32> to vector<32x96xf32>
    %c1_65 = arith.constant 1 : index
    %c0_66 = arith.constant 0 : index
    %c96_67 = arith.constant 96 : index
    %181 = vector.load %arg3[%c1_65, %c0_66, %c96_67] : memref<2x32x256xf32, #tpu.memory_space<vmem>>, vector<1x32x32xf32>
    %182 = vector.shape_cast %181 : vector<1x32x32xf32> to vector<32x32xf32>
    %c1_68 = arith.constant 1 : index
    %c0_69 = arith.constant 0 : index
    %c128_70 = arith.constant 128 : index
    %183 = vector.load %arg3[%c1_68, %c0_69, %c128_70] : memref<2x32x256xf32, #tpu.memory_space<vmem>>, vector<1x32x64xf32>
    %184 = vector.shape_cast %183 : vector<1x32x64xf32> to vector<32x64xf32>
    %c1_71 = arith.constant 1 : index
    %c0_72 = arith.constant 0 : index
    %c192_73 = arith.constant 192 : index
    %185 = vector.load %arg3[%c1_71, %c0_72, %c192_73] : memref<2x32x256xf32, #tpu.memory_space<vmem>>, vector<1x32x64xf32>
    %186 = vector.shape_cast %185 : vector<1x32x64xf32> to vector<32x64xf32>
    %c1_74 = arith.constant 1 : index
    %c0_75 = arith.constant 0 : index
    %c0_76 = arith.constant 0 : index
    %187 = vector.load %arg4[%c1_74, %c0_75, %c0_76] : memref<2x1x352xf32, #tpu.memory_space<vmem>>, vector<1x1x96xf32>
    %188 = vector.shape_cast %187 : vector<1x1x96xf32> to vector<1x96xf32>
    %c1_77 = arith.constant 1 : index
    %c0_78 = arith.constant 0 : index
    %c96_79 = arith.constant 96 : index
    %189 = vector.load %arg4[%c1_77, %c0_78, %c96_79] : memref<2x1x352xf32, #tpu.memory_space<vmem>>, vector<1x1x32xf32>
    %190 = vector.shape_cast %189 : vector<1x1x32xf32> to vector<1x32xf32>
    %c1_80 = arith.constant 1 : index
    %c0_81 = arith.constant 0 : index
    %c128_82 = arith.constant 128 : index
    %191 = vector.load %arg4[%c1_80, %c0_81, %c128_82] : memref<2x1x352xf32, #tpu.memory_space<vmem>>, vector<1x1x32xf32>
    %192 = vector.shape_cast %191 : vector<1x1x32xf32> to vector<1x32xf32>
    %c1_83 = arith.constant 1 : index
    %c0_84 = arith.constant 0 : index
    %c160_85 = arith.constant 160 : index
    %193 = vector.load %arg4[%c1_83, %c0_84, %c160_85] : memref<2x1x352xf32, #tpu.memory_space<vmem>>, vector<1x1x32xf32>
    %194 = vector.shape_cast %193 : vector<1x1x32xf32> to vector<1x32xf32>
    %c1_86 = arith.constant 1 : index
    %c0_87 = arith.constant 0 : index
    %c192_88 = arith.constant 192 : index
    %195 = vector.load %arg4[%c1_86, %c0_87, %c192_88] : memref<2x1x352xf32, #tpu.memory_space<vmem>>, vector<1x1x64xf32>
    %196 = vector.shape_cast %195 : vector<1x1x64xf32> to vector<1x64xf32>
    %c1_89 = arith.constant 1 : index
    %c0_90 = arith.constant 0 : index
    %c256_91 = arith.constant 256 : index
    %197 = vector.load %arg4[%c1_89, %c0_90, %c256_91] : memref<2x1x352xf32, #tpu.memory_space<vmem>>, vector<1x1x32xf32>
    %198 = vector.shape_cast %197 : vector<1x1x32xf32> to vector<1x32xf32>
    %c1_92 = arith.constant 1 : index
    %c0_93 = arith.constant 0 : index
    %c288_94 = arith.constant 288 : index
    %199 = vector.load %arg4[%c1_92, %c0_93, %c288_94] : memref<2x1x352xf32, #tpu.memory_space<vmem>>, vector<1x1x32xf32>
    %200 = vector.shape_cast %199 : vector<1x1x32xf32> to vector<1x32xf32>
    %c1_95 = arith.constant 1 : index
    %c0_96 = arith.constant 0 : index
    %c320_97 = arith.constant 320 : index
    %201 = vector.load %arg4[%c1_95, %c0_96, %c320_97] : memref<2x1x352xf32, #tpu.memory_space<vmem>>, vector<1x1x32xf32>
    %202 = vector.shape_cast %201 : vector<1x1x32xf32> to vector<1x32xf32>
    %cst_98 = arith.constant dense<0.000000e+00> : vector<8x96xf32>
    %203 = tpu.matmul %178, %180, %cst_98 {dimension_numbers = #tpu.dot_dimension_numbers<[1], [0], [0], [1], [0, 0, 1, 1], [], []>} : vector<8x32xf32>, vector<32x96xf32>, vector<8x96xf32> -> vector<8x96xf32>
    %204 = vector.broadcast %188 : vector<1x96xf32> to vector<8x96xf32>
    %205 = arith.addf %203, %204 : vector<8x96xf32>
    %206 = vector.extract_strided_slice %205 {offsets = [0, 0], sizes = [8, 8], strides = [1, 1]} : vector<8x96xf32> to vector<8x8xf32>
    %207 = vector.extract_strided_slice %205 {offsets = [0, 8], sizes = [8, 8], strides = [1, 1]} : vector<8x96xf32> to vector<8x8xf32>
    %208 = vector.extract_strided_slice %205 {offsets = [0, 16], sizes = [8, 8], strides = [1, 1]} : vector<8x96xf32> to vector<8x8xf32>
    %209 = vector.extract_strided_slice %205 {offsets = [0, 24], sizes = [8, 8], strides = [1, 1]} : vector<8x96xf32> to vector<8x8xf32>
    %210 = vector.shape_cast %206 : vector<8x8xf32> to vector<1x8x8xf32>
    %211 = vector.shape_cast %207 : vector<8x8xf32> to vector<1x8x8xf32>
    %212 = vector.shape_cast %208 : vector<8x8xf32> to vector<1x8x8xf32>
    %213 = vector.shape_cast %209 : vector<8x8xf32> to vector<1x8x8xf32>
    %214 = tpu.concatenate %210, %211, %212, %213 in 0 : vector<1x8x8xf32>, vector<1x8x8xf32>, vector<1x8x8xf32>, vector<1x8x8xf32> -> vector<4x8x8xf32>
    %215 = vector.extract_strided_slice %205 {offsets = [0, 32], sizes = [8, 8], strides = [1, 1]} : vector<8x96xf32> to vector<8x8xf32>
    %216 = vector.extract_strided_slice %205 {offsets = [0, 40], sizes = [8, 8], strides = [1, 1]} : vector<8x96xf32> to vector<8x8xf32>
    %217 = vector.extract_strided_slice %205 {offsets = [0, 48], sizes = [8, 8], strides = [1, 1]} : vector<8x96xf32> to vector<8x8xf32>
    %218 = vector.extract_strided_slice %205 {offsets = [0, 56], sizes = [8, 8], strides = [1, 1]} : vector<8x96xf32> to vector<8x8xf32>
    %219 = vector.shape_cast %215 : vector<8x8xf32> to vector<1x8x8xf32>
    %220 = vector.shape_cast %216 : vector<8x8xf32> to vector<1x8x8xf32>
    %221 = vector.shape_cast %217 : vector<8x8xf32> to vector<1x8x8xf32>
    %222 = vector.shape_cast %218 : vector<8x8xf32> to vector<1x8x8xf32>
    %223 = tpu.concatenate %219, %220, %221, %222 in 0 : vector<1x8x8xf32>, vector<1x8x8xf32>, vector<1x8x8xf32>, vector<1x8x8xf32> -> vector<4x8x8xf32>
    %224 = vector.extract_strided_slice %205 {offsets = [0, 64], sizes = [8, 8], strides = [1, 1]} : vector<8x96xf32> to vector<8x8xf32>
    %225 = vector.extract_strided_slice %205 {offsets = [0, 72], sizes = [8, 8], strides = [1, 1]} : vector<8x96xf32> to vector<8x8xf32>
    %226 = vector.extract_strided_slice %205 {offsets = [0, 80], sizes = [8, 8], strides = [1, 1]} : vector<8x96xf32> to vector<8x8xf32>
    %227 = vector.extract_strided_slice %205 {offsets = [0, 88], sizes = [8, 8], strides = [1, 1]} : vector<8x96xf32> to vector<8x8xf32>
    %228 = vector.shape_cast %224 : vector<8x8xf32> to vector<1x8x8xf32>
    %229 = vector.shape_cast %225 : vector<8x8xf32> to vector<1x8x8xf32>
    %230 = vector.shape_cast %226 : vector<8x8xf32> to vector<1x8x8xf32>
    %231 = vector.shape_cast %227 : vector<8x8xf32> to vector<1x8x8xf32>
    %232 = tpu.concatenate %228, %229, %230, %231 in 0 : vector<1x8x8xf32>, vector<1x8x8xf32>, vector<1x8x8xf32>, vector<1x8x8xf32> -> vector<4x8x8xf32>
    "tpu.trace_start"() <{level = 10 : i32, message = "hqd,hkd->hqk"}> : () -> ()
    %cst_99 = arith.constant dense<0.000000e+00> : vector<4x8x8xf32>
    %233 = tpu.matmul %214, %223, %cst_99 {dimension_numbers = #tpu.dot_dimension_numbers<[2], [2], [1], [1], [0, 0, 0, 1, 1, 1], [0], [0]>} : vector<4x8x8xf32>, vector<4x8x8xf32>, vector<4x8x8xf32> -> vector<4x8x8xf32>
    "tpu.trace_stop"() : () -> ()
    %234 = vector.shape_cast %29 : vector<1x8xf32> to vector<1x1x8xf32>
    %235 = vector.broadcast %234 : vector<1x1x8xf32> to vector<4x8x8xf32>
    %236 = arith.addf %233, %235 : vector<4x8x8xf32>
    %cst_100 = arith.constant dense<0xFF800000> : vector<4x8xf32>
    %237 = vector.multi_reduction <maximumf>, %236, %cst_100 [2] : vector<4x8x8xf32> to vector<4x8xf32>
    %238 = vector.shape_cast %237 : vector<4x8xf32> to vector<4x8x1xf32>
    %239 = vector.broadcast %238 : vector<4x8x1xf32> to vector<4x8x8xf32>
    %240 = arith.subf %236, %239 : vector<4x8x8xf32>
    %241 = math.exp %240 : vector<4x8x8xf32>
    %cst_101 = arith.constant dense<0.000000e+00> : vector<4x8xf32>
    %242 = vector.multi_reduction <add>, %241, %cst_101 [2] : vector<4x8x8xf32> to vector<4x8xf32>
    %243 = vector.shape_cast %242 : vector<4x8xf32> to vector<4x8x1xf32>
    %244 = vector.broadcast %243 : vector<4x8x1xf32> to vector<4x8x8xf32>
    %245 = arith.divf %241, %244 : vector<4x8x8xf32>
    "tpu.trace_start"() <{level = 10 : i32, message = "hqk,hkd->hqd"}> : () -> ()
    %cst_102 = arith.constant dense<0.000000e+00> : vector<4x8x8xf32>
    %246 = tpu.matmul %245, %232, %cst_102 {dimension_numbers = #tpu.dot_dimension_numbers<[2], [1], [1], [2], [0, 0, 0, 1, 1, 2], [0], [0]>} : vector<4x8x8xf32>, vector<4x8x8xf32>, vector<4x8x8xf32> -> vector<4x8x8xf32>
    "tpu.trace_stop"() : () -> ()
    %247 = vector.extract_strided_slice %246 {offsets = [0, 0, 0], sizes = [1, 8, 8], strides = [1, 1, 1]} : vector<4x8x8xf32> to vector<1x8x8xf32>
    %248 = vector.shape_cast %247 : vector<1x8x8xf32> to vector<8x8xf32>
    %249 = vector.extract_strided_slice %246 {offsets = [1, 0, 0], sizes = [1, 8, 8], strides = [1, 1, 1]} : vector<4x8x8xf32> to vector<1x8x8xf32>
    %250 = vector.shape_cast %249 : vector<1x8x8xf32> to vector<8x8xf32>
    %251 = vector.extract_strided_slice %246 {offsets = [2, 0, 0], sizes = [1, 8, 8], strides = [1, 1, 1]} : vector<4x8x8xf32> to vector<1x8x8xf32>
    %252 = vector.shape_cast %251 : vector<1x8x8xf32> to vector<8x8xf32>
    %253 = vector.extract_strided_slice %246 {offsets = [3, 0, 0], sizes = [1, 8, 8], strides = [1, 1, 1]} : vector<4x8x8xf32> to vector<1x8x8xf32>
    %254 = vector.shape_cast %253 : vector<1x8x8xf32> to vector<8x8xf32>
    %255 = tpu.concatenate %248, %250, %252, %254 in 1 : vector<8x8xf32>, vector<8x8xf32>, vector<8x8xf32>, vector<8x8xf32> -> vector<8x32xf32>
    %cst_103 = arith.constant dense<0.000000e+00> : vector<8x32xf32>
    %256 = tpu.matmul %255, %182, %cst_103 {dimension_numbers = #tpu.dot_dimension_numbers<[1], [0], [0], [1], [0, 0, 1, 1], [], []>} : vector<8x32xf32>, vector<32x32xf32>, vector<8x32xf32> -> vector<8x32xf32>
    %257 = vector.broadcast %190 : vector<1x32xf32> to vector<8x32xf32>
    %258 = arith.addf %256, %257 : vector<8x32xf32>
    %259 = arith.addf %258, %178 : vector<8x32xf32>
    %cst_104 = arith.constant dense<0.000000e+00> : vector<8xf32>
    %260 = vector.multi_reduction <add>, %259, %cst_104 [1] : vector<8x32xf32> to vector<8xf32>
    %261 = vector.shape_cast %260 : vector<8xf32> to vector<8x1xf32>
    %cst_105 = arith.constant 3.200000e+01 : f32
    %262 = vector.broadcast %cst_105 : f32 to vector<8x1xf32>
    %263 = arith.divf %261, %262 : vector<8x1xf32>
    %264 = vector.broadcast %263 : vector<8x1xf32> to vector<8x32xf32>
    %265 = arith.subf %259, %264 : vector<8x32xf32>
    %266 = vector.broadcast %263 : vector<8x1xf32> to vector<8x32xf32>
    %267 = arith.subf %259, %266 : vector<8x32xf32>
    %268 = arith.mulf %265, %267 : vector<8x32xf32>
    %cst_106 = arith.constant dense<0.000000e+00> : vector<8xf32>
    %269 = vector.multi_reduction <add>, %268, %cst_106 [1] : vector<8x32xf32> to vector<8xf32>
    %270 = vector.shape_cast %269 : vector<8xf32> to vector<8x1xf32>
    %cst_107 = arith.constant 3.200000e+01 : f32
    %271 = vector.broadcast %cst_107 : f32 to vector<8x1xf32>
    %272 = arith.divf %270, %271 : vector<8x1xf32>
    %273 = vector.broadcast %263 : vector<8x1xf32> to vector<8x32xf32>
    %274 = arith.subf %259, %273 : vector<8x32xf32>
    %cst_108 = arith.constant 9.99999996E-13 : f32
    %275 = vector.broadcast %cst_108 : f32 to vector<8x1xf32>
    %276 = arith.addf %272, %275 : vector<8x1xf32>
    %277 = math.rsqrt %276 : vector<8x1xf32>
    %278 = vector.broadcast %277 : vector<8x1xf32> to vector<8x32xf32>
    %279 = arith.mulf %274, %278 : vector<8x32xf32>
    %280 = vector.broadcast %192 : vector<1x32xf32> to vector<8x32xf32>
    %281 = arith.mulf %279, %280 : vector<8x32xf32>
    %282 = vector.broadcast %194 : vector<1x32xf32> to vector<8x32xf32>
    %283 = arith.addf %281, %282 : vector<8x32xf32>
    %cst_109 = arith.constant dense<0.000000e+00> : vector<8x64xf32>
    %284 = tpu.matmul %283, %184, %cst_109 {dimension_numbers = #tpu.dot_dimension_numbers<[1], [0], [0], [1], [0, 0, 1, 1], [], []>} : vector<8x32xf32>, vector<32x64xf32>, vector<8x64xf32> -> vector<8x64xf32>
    %285 = vector.broadcast %196 : vector<1x64xf32> to vector<8x64xf32>
    %286 = arith.addf %284, %285 : vector<8x64xf32>
    %cst_110 = arith.constant 5.000000e-01 : f32
    %287 = vector.broadcast %cst_110 : f32 to vector<8x64xf32>
    %288 = arith.mulf %287, %286 : vector<8x64xf32>
    %cst_111 = arith.constant 4.471500e-02 : f32
    %289 = vector.broadcast %cst_111 : f32 to vector<8x64xf32>
    %290 = arith.mulf %289, %286 : vector<8x64xf32>
    %291 = arith.mulf %290, %286 : vector<8x64xf32>
    %292 = arith.mulf %291, %286 : vector<8x64xf32>
    %293 = arith.addf %286, %292 : vector<8x64xf32>
    %cst_112 = arith.constant 0.797884583 : f32
    %294 = vector.broadcast %cst_112 : f32 to vector<8x64xf32>
    %295 = arith.mulf %294, %293 : vector<8x64xf32>
    %296 = math.tanh %295 : vector<8x64xf32>
    %cst_113 = arith.constant 1.000000e+00 : f32
    %297 = vector.broadcast %cst_113 : f32 to vector<8x64xf32>
    %298 = arith.addf %297, %296 : vector<8x64xf32>
    %299 = arith.mulf %288, %298 : vector<8x64xf32>
    %cst_114 = arith.constant dense<0.000000e+00> : vector<8x32xf32>
    %300 = tpu.matmul %299, %186, %cst_114 {dimension_numbers = #tpu.dot_dimension_numbers<[1], [1], [0], [0], [0, 0, 1, 0], [], []>} : vector<8x64xf32>, vector<32x64xf32>, vector<8x32xf32> -> vector<8x32xf32>
    %301 = vector.broadcast %198 : vector<1x32xf32> to vector<8x32xf32>
    %302 = arith.addf %300, %301 : vector<8x32xf32>
    %303 = arith.addf %302, %283 : vector<8x32xf32>
    %cst_115 = arith.constant dense<0.000000e+00> : vector<8xf32>
    %304 = vector.multi_reduction <add>, %303, %cst_115 [1] : vector<8x32xf32> to vector<8xf32>
    %305 = vector.shape_cast %304 : vector<8xf32> to vector<8x1xf32>
    %cst_116 = arith.constant 3.200000e+01 : f32
    %306 = vector.broadcast %cst_116 : f32 to vector<8x1xf32>
    %307 = arith.divf %305, %306 : vector<8x1xf32>
    %308 = vector.broadcast %307 : vector<8x1xf32> to vector<8x32xf32>
    %309 = arith.subf %303, %308 : vector<8x32xf32>
    %310 = vector.broadcast %307 : vector<8x1xf32> to vector<8x32xf32>
    %311 = arith.subf %303, %310 : vector<8x32xf32>
    %312 = arith.mulf %309, %311 : vector<8x32xf32>
    %cst_117 = arith.constant dense<0.000000e+00> : vector<8xf32>
    %313 = vector.multi_reduction <add>, %312, %cst_117 [1] : vector<8x32xf32> to vector<8xf32>
    %314 = vector.shape_cast %313 : vector<8xf32> to vector<8x1xf32>
    %cst_118 = arith.constant 3.200000e+01 : f32
    %315 = vector.broadcast %cst_118 : f32 to vector<8x1xf32>
    %316 = arith.divf %314, %315 : vector<8x1xf32>
    %317 = vector.broadcast %307 : vector<8x1xf32> to vector<8x32xf32>
    %318 = arith.subf %303, %317 : vector<8x32xf32>
    %cst_119 = arith.constant 9.99999996E-13 : f32
    %319 = vector.broadcast %cst_119 : f32 to vector<8x1xf32>
    %320 = arith.addf %316, %319 : vector<8x1xf32>
    %321 = math.rsqrt %320 : vector<8x1xf32>
    %322 = vector.broadcast %321 : vector<8x1xf32> to vector<8x32xf32>
    %323 = arith.mulf %318, %322 : vector<8x32xf32>
    %324 = vector.broadcast %200 : vector<1x32xf32> to vector<8x32xf32>
    %325 = arith.mulf %323, %324 : vector<8x32xf32>
    %326 = vector.broadcast %202 : vector<1x32xf32> to vector<8x32xf32>
    %327 = arith.addf %325, %326 : vector<8x32xf32>
    %c0_120 = arith.constant 0 : index
    %c0_121 = arith.constant 0 : index
    %328 = vector.load %arg5[%c0_120, %c0_121] : memref<32x160xf32, #tpu.memory_space<vmem>>, vector<32x32xf32>
    %c0_122 = arith.constant 0 : index
    %c32_123 = arith.constant 32 : index
    %329 = vector.load %arg5[%c0_122, %c32_123] : memref<32x160xf32, #tpu.memory_space<vmem>>, vector<32x128xf32>
    %c0_124 = arith.constant 0 : index
    %c64 = arith.constant 64 : index
    %330 = vector.load %arg6[%c0_124, %c64] : memref<1x224xf32, #tpu.memory_space<vmem>>, vector<1x32xf32>
    %c0_125 = arith.constant 0 : index
    %c96_126 = arith.constant 96 : index
    %331 = vector.load %arg6[%c0_125, %c96_126] : memref<1x224xf32, #tpu.memory_space<vmem>>, vector<1x128xf32>
    %332 = vector.extract_strided_slice %327 {offsets = [0, 0], sizes = [1, 32], strides = [1, 1]} : vector<8x32xf32> to vector<1x32xf32>
    %cst_127 = arith.constant dense<0.000000e+00> : vector<1x32xf32>
    %333 = tpu.matmul %332, %328, %cst_127 {dimension_numbers = #tpu.dot_dimension_numbers<[1], [0], [0], [1], [0, 0, 1, 1], [], []>} : vector<1x32xf32>, vector<32x32xf32>, vector<1x32xf32> -> vector<1x32xf32>
    %334 = arith.addf %333, %330 : vector<1x32xf32>
    %335 = math.tanh %334 : vector<1x32xf32>
    %cst_128 = arith.constant dense<0.000000e+00> : vector<1x128xf32>
    %336 = tpu.matmul %335, %329, %cst_128 {dimension_numbers = #tpu.dot_dimension_numbers<[1], [0], [0], [1], [0, 0, 1, 1], [], []>} : vector<1x32xf32>, vector<32x128xf32>, vector<1x128xf32> -> vector<1x128xf32>
    %337 = arith.addf %336, %331 : vector<1x128xf32>
    %c0_129 = arith.constant 0 : index
    %c0_130 = arith.constant 0 : index
    %c0_131 = arith.constant 0 : index
    %338 = vector.load %arg7[%c0_129, %c0_130, %c0_131] : memref<1x1x128xf32, #tpu.memory_space<vmem>>, vector<1x1x128xf32>
    %339 = vector.shape_cast %338 : vector<1x1x128xf32> to vector<1x128xf32>
    %340 = vector.shape_cast %337 : vector<1x128xf32> to vector<1x1x128xf32>
    tpu.vector_store %arg7[%c0_129, %c0_130, %c0_131], %340 {strides = array<i32>} : memref<1x1x128xf32, #tpu.memory_space<vmem>>, vector<1x1x128xf32>,
    return
  }
  func.func @transform_0(%arg0: i32) -> (i32, i32, i32) {
    %c0_i32 = arith.constant 0 : i32
    %c0_i32_0 = arith.constant 0 : i32
    %c0_i32_1 = arith.constant 0 : i32
    return %arg0, %c0_i32, %c0_i32_0 : i32, i32, i32
  }
  func.func @transform_1(%arg0: i32) -> (i32, i32, i32) {
    %c0_i32 = arith.constant 0 : i32
    %c0_i32_0 = arith.constant 0 : i32
    %c0_i32_1 = arith.constant 0 : i32
    return %arg0, %c0_i32, %c0_i32_0 : i32, i32, i32
  }
  func.func @transform_2(%arg0: i32) -> (i32, i32, i32) {
    %c0_i32 = arith.constant 0 : i32
    %c0_i32_0 = arith.constant 0 : i32
    %c0_i32_1 = arith.constant 0 : i32
    %c0_i32_2 = arith.constant 0 : i32
    return %c0_i32, %c0_i32_0, %c0_i32_1 : i32, i32, i32
  }
  func.func @transform_3(%arg0: i32) -> (i32, i32, i32) {
    %c0_i32 = arith.constant 0 : i32
    %c0_i32_0 = arith.constant 0 : i32
    %c0_i32_1 = arith.constant 0 : i32
    %c0_i32_2 = arith.constant 0 : i32
    return %c0_i32, %c0_i32_0, %c0_i32_1 : i32, i32, i32
  }
  func.func @transform_4(%arg0: i32) -> (i32, i32) {
    %c0_i32 = arith.constant 0 : i32
    %c0_i32_0 = arith.constant 0 : i32
    %c0_i32_1 = arith.constant 0 : i32
    return %c0_i32, %c0_i32_0 : i32, i32
  }
  func.func @transform_5(%arg0: i32) -> (i32, i32) {
    %c0_i32 = arith.constant 0 : i32
    %c0_i32_0 = arith.constant 0 : i32
    %c0_i32_1 = arith.constant 0 : i32
    return %c0_i32, %c0_i32_0 : i32, i32
  }
  func.func @transform_6(%arg0: i32) -> (i32, i32, i32) {
    %c0_i32 = arith.constant 0 : i32
    %c0_i32_0 = arith.constant 0 : i32
    %c0_i32_1 = arith.constant 0 : i32
    return %arg0, %c0_i32, %c0_i32_0 : i32, i32, i32
  }
}

</mosaic_0001>

<llo_original>
// kernel: tpu_custom_call.1
$region0: #{tpu_custom_call.1}
  #allocation0 [shape = 'u32[]', space=smem, size = 0x4, offset = 0x4, fixed_abs, tag = 'smem constant byte address 0x4 - core index']
  #allocation1 [shape = 'u32[144,128]{1,0:T(1,128)}', space=vmem, size = 0x12000, scoped, tag = 'internal scratch']
  %s0 = inlined_call_operand.hbm [shape: f32[2,8,32], index: 0, kind: input, shape index: {}]
  %s1 = inlined_call_operand.vmem [shape: f32[2,1,8], index: 1, kind: input, shape index: {}]
  %s2 = inlined_call_operand.hbm [shape: f32[2,32,256], index: 2, kind: input, shape index: {}]
  %s3 = inlined_call_operand.vmem [shape: f32[2,1,352], index: 3, kind: input, shape index: {}]
  %s4 = inlined_call_operand.hbm [shape: f32[32,160], index: 4, kind: input, shape index: {}]
  %s5 = inlined_call_operand.vmem [shape: f32[1,224], index: 5, kind: input, shape index: {}]
  %s6 = inlined_call_operand.hbm [shape: f32[2,1,128], index: 6, kind: output, shape index: {}]
  %s7 = sld [smem:[#allocation0]]
  $region69: #{tpu_custom_call.1} parent=0
    _
  %s9 = ssub.s32 1, %s7
  %s10 = scalar_select 0, %s9, %s7
  $region1: #{tpu_custom_call.1} parent=0
    #allocation2 [shape = 'u8[8192]{0}', space=vmem, size = 0x2000, scoped, tag = 'input window, operand 0']
    #allocation3 [shape = 's32[2]{0}', space=sflag, size = 0x8, scoped, tag = 'scoped memory for tpu_custom_call.1']
    #allocation4 [shape = 's32[2]{0}', space=sflag, size = 0x8, scoped, tag = 'scoped memory for tpu_custom_call.1']
    #allocation5 [shape = 'u8[65536]{0}', space=vmem, size = 0x10000, scoped, tag = 'input window, operand 2, single buffered']
    #allocation6 [shape = 's32[1]{0}', space=sflag, size = 0x4, scoped, tag = 'scoped memory for tpu_custom_call.1']
    #allocation7 [shape = 'u8[32768]{0}', space=vmem, size = 0x8000, scoped, tag = 'input window, operand 4, single buffered']
    #allocation8 [shape = 'u8[1024]{0}', space=vmem, size = 0x400, scoped, tag = 'output window, operand 0']
    %11 = vsyncpa [#allocation3], 0
    %s12 = scalar_lea.sflag [#allocation3], 1
    %13 = vsyncpa %s12, 0
    %14 = vsyncpa [#allocation6], 0
    %15 = vsyncpa [#allocation4], 0
    %s16 = scalar_lea.sflag [#allocation4], 1
    %17 = vsyncpa %s16, 0
    loop: start=0, step=1, limit=4
    $region2: #{tpu_custom_call.1} parent=1 // loop_pre_header
      _
    $region3: #{tpu_custom_call.1} parent=1 // loop_header
      %s19 = sphi 0, %s23
      %p20 = scmp.ge.s32.totalorder %s19, 4
      %s29 = sphi 0, %s31
      %s32 = sphi 0, %s29
      %s33 = sphi 0, %s32
      %s49 = sphi 0, %s33
      %s55 = sphi 0, %s57
      %s58 = sphi 0, %s55
      %s59 = sphi 0, %s58
      %s75 = sphi 0, %s59
      %s79 = sphi 0, %s79
      %s81 = sphi 0, %s79
      %s82 = sphi 0, %s81
      %s96 = sphi 0, %s82
      %s100 = sphi 0, %s100
      %s102 = sphi 0, %s100
      %s103 = sphi 0, %s102
      %s117 = sphi 0, %s103
      %s121 = sphi 0, %s121
      %s123 = sphi 0, %s121
      %s124 = sphi 0, %s123
      %s138 = sphi 0, %s124
      %s142 = sphi 0, %s142
      %s144 = sphi 0, %s142
      %s145 = sphi 0, %s144
      %s159 = sphi 0, %s145
      %s165 = sphi 0, %s167
      %s168 = sphi 0, %s165
      %s169 = sphi 0, %s168
      %s185 = sphi 0, %s169
    $region4: #{tpu_custom_call.1} parent=1 // loop_header_branch
      %22 = sbr.rel (%p20) target = $region8
    $region5: #{tpu_custom_call.1} parent=1 // loop_body
      %s24 = ssub.s32 %s19, 1
      %s25 = ssub.s32 %s19, 2
      %s26 = sadd.s32 %s19, 1
      %s27 = ssub.s32 %s19, %s26
      %p28 = scmp.eq.s32.totalorder %s27, 0
      %s30 = sadd.s32 %s29, 1
      %s31 = scalar_select %p28, %s29, %s30
      %p34 = pneg %p28
      %p35 = scmp.eq.s32.totalorder %s19, 1
      %p36 = por %p34, %p35
      %p37 = scmp.ne.s32.totalorder %s29, %s32
      %p38 = scmp.eq.s32.totalorder %s19, 0
      %p39 = por %p37, %p38
      %p40 = scmp.ne.s32.totalorder %s29, %s32
      %p41 = scmp.eq.s32.totalorder %s24, 1
      %p42 = por %p40, %p41
      %p43 = scmp.ne.s32.totalorder %s32, %s33
      %p44 = scmp.eq.s32.totalorder %s24, 0
      %p45 = por %p43, %p44
      %p46 = scmp.ne.s32.totalorder %s32, %s33
      %p47 = scmp.eq.s32.totalorder %s25, 1
      %p48 = por %p46, %p47
      %p50 = scmp.ne.s32.totalorder %s33, %s49
      %p51 = scmp.eq.s32.totalorder %s25, 0
      %p52 = por %p50, %p51
      %s53 = ssub.s32 %s19, %s26
      %p54 = scmp.eq.s32.totalorder %s53, 0
      %s56 = sadd.s32 %s55, 1
      %s57 = scalar_select %p54, %s55, %s56
      %p60 = pneg %p54
      %p61 = scmp.eq.s32.totalorder %s19, 1
      %p62 = por %p60, %p61
      %p63 = scmp.ne.s32.totalorder %s55, %s58
      %p64 = scmp.eq.s32.totalorder %s19, 0
      %p65 = por %p63, %p64
      %p66 = scmp.ne.s32.totalorder %s55, %s58
      %p67 = scmp.eq.s32.totalorder %s24, 1
      %p68 = por %p66, %p67
      %p69 = scmp.ne.s32.totalorder %s58, %s59
      %p70 = scmp.eq.s32.totalorder %s24, 0
      %p71 = por %p69, %p70
      %p72 = scmp.ne.s32.totalorder %s58, %s59
      %p73 = scmp.eq.s32.totalorder %s25, 1
      %p74 = por %p72, %p73
      %p76 = scmp.ne.s32.totalorder %s59, %s75
      %p77 = scmp.eq.s32.totalorder %s25, 0
      %p78 = por %p76, %p77
      %s80 = sadd.s32 %s79, 1
      %p83 = scmp.eq.s32.totalorder %s19, 1
      %p84 = scmp.ne.s32.totalorder %s79, %s81
      %p85 = scmp.eq.s32.totalorder %s19, 0
      %p86 = por %p84, %p85
      %p87 = scmp.ne.s32.totalorder %s79, %s81
      %p88 = scmp.eq.s32.totalorder %s24, 1
      %p89 = por %p87, %p88
      %p90 = scmp.ne.s32.totalorder %s81, %s82
      %p91 = scmp.eq.s32.totalorder %s24, 0
      %p92 = por %p90, %p91
      %p93 = scmp.ne.s32.totalorder %s81, %s82
      %p94 = scmp.eq.s32.totalorder %s25, 1
      %p95 = por %p93, %p94
      %p97 = scmp.ne.s32.totalorder %s82, %s96
      %p98 = scmp.eq.s32.totalorder %s25, 0
      %p99 = por %p97, %p98
      %s101 = sadd.s32 %s100, 1
      %p104 = scmp.eq.s32.totalorder %s19, 1
      %p105 = scmp.ne.s32.totalorder %s100, %s102
      %p106 = scmp.eq.s32.totalorder %s19, 0
      %p107 = por %p105, %p106
      %p108 = scmp.ne.s32.totalorder %s100, %s102
      %p109 = scmp.eq.s32.totalorder %s24, 1
      %p110 = por %p108, %p109
      %p111 = scmp.ne.s32.totalorder %s102, %s103
      %p112 = scmp.eq.s32.totalorder %s24, 0
      %p113 = por %p111, %p112
      %p114 = scmp.ne.s32.totalorder %s102, %s103
      %p115 = scmp.eq.s32.totalorder %s25, 1
      %p116 = por %p114, %p115
      %p118 = scmp.ne.s32.totalorder %s103, %s117
      %p119 = scmp.eq.s32.totalorder %s25, 0
      %p120 = por %p118, %p119
      %s122 = sadd.s32 %s121, 1
      %p125 = scmp.eq.s32.totalorder %s19, 1
      %p126 = scmp.ne.s32.totalorder %s121, %s123
      %p127 = scmp.eq.s32.totalorder %s19, 0
      %p128 = por %p126, %p127
      %p129 = scmp.ne.s32.totalorder %s121, %s123
      %p130 = scmp.eq.s32.totalorder %s24, 1
      %p131 = por %p129, %p130
      %p132 = scmp.ne.s32.totalorder %s123, %s124
      %p133 = scmp.eq.s32.totalorder %s24, 0
      %p134 = por %p132, %p133
      %p135 = scmp.ne.s32.totalorder %s123, %s124
      %p136 = scmp.eq.s32.totalorder %s25, 1
      %p137 = por %p135, %p136
      %p139 = scmp.ne.s32.totalorder %s124, %s138
      %p140 = scmp.eq.s32.totalorder %s25, 0
      %p141 = por %p139, %p140
      %s143 = sadd.s32 %s142, 1
      %p146 = scmp.eq.s32.totalorder %s19, 1
      %p147 = scmp.ne.s32.totalorder %s142, %s144
      %p148 = scmp.eq.s32.totalorder %s19, 0
      %p149 = por %p147, %p148
      %p150 = scmp.ne.s32.totalorder %s142, %s144
      %p151 = scmp.eq.s32.totalorder %s24, 1
      %p152 = por %p150, %p151
      %p153 = scmp.ne.s32.totalorder %s144, %s145
      %p154 = scmp.eq.s32.totalorder %s24, 0
      %p155 = por %p153, %p154
      %p156 = scmp.ne.s32.totalorder %s144, %s145
      %p157 = scmp.eq.s32.totalorder %s25, 1
      %p158 = por %p156, %p157
      %p160 = scmp.ne.s32.totalorder %s145, %s159
      %p161 = scmp.eq.s32.totalorder %s25, 0
      %p162 = por %p160, %p161
      %s163 = ssub.s32 %s19, %s26
      %p164 = scmp.eq.s32.totalorder %s163, 0
      %s166 = sadd.s32 %s165, 1
      %s167 = scalar_select %p164, %s165, %s166
      %p170 = pneg %p164
      %p171 = scmp.eq.s32.totalorder %s19, 1
      %p172 = por %p170, %p171
      %p173 = scmp.ne.s32.totalorder %s165, %s168
      %p174 = scmp.eq.s32.totalorder %s19, 0
      %p175 = por %p173, %p174
      %p176 = scmp.ne.s32.totalorder %s165, %s168
      %p177 = scmp.eq.s32.totalorder %s24, 1
      %p178 = por %p176, %p177
      %p179 = scmp.ne.s32.totalorder %s168, %s169
      %p180 = scmp.eq.s32.totalorder %s24, 0
      %p181 = por %p179, %p180
      %p182 = scmp.ne.s32.totalorder %s168, %s169
      %p183 = scmp.eq.s32.totalorder %s25, 1
      %p184 = por %p182, %p183
      %p186 = scmp.ne.s32.totalorder %s169, %s185
      %p187 = scmp.eq.s32.totalorder %s25, 0
      %p188 = por %p186, %p187
      %p189 = scmp.le.s32.totalorder 1, %s19
      %p190 = scmp.lt.s32.totalorder %s19, 3
      %p191 = pnand %p189, %p190
      %p192 = pneg %p191
      // Predicated region
      $region9: #{tpu_custom_call.1} parent=5 // pred_check
        _
      $region10: #{tpu_custom_call.1} parent=5 // pred_check_branch
        %194 = sbr.rel (%p191) target = $region12
      $region11: #{tpu_custom_call.1} parent=5 // pred_region
        %s195 = ssub.s32 %s19, 1
        // Predicated region
        $region13: #{tpu_custom_call.1} parent=11 // pred_check
          %p196 = pneg %p92
        $region14: #{tpu_custom_call.1} parent=11 // pred_check_branch
          %198 = sbr.rel (%p196) target = $region16
        $region15: #{tpu_custom_call.1} parent=11 // pred_region
          %s200 = ssub.s32 2048, 2048
          %201 = vsyncadd [#allocation6], %s200
          %s202 = sshll.u32 [#allocation5], 4
          %s203 = int_to_ptr.vmem [resolvable:$true] %s202
          %208 = dma.hbm_to_vmem [thread:$0]  %s2, 2048, %s203, [#allocation6], 256, 256, 16
        $region16: #{tpu_custom_call.1} parent=11 // pred_fallthru
          _
        // Predicated region
        $region17: #{tpu_custom_call.1} parent=11 // pred_check
          %p209 = pneg %p113
        $region18: #{tpu_custom_call.1} parent=11 // pred_check_branch
          %211 = sbr.rel (%p209) target = $region20
        $region19: #{tpu_custom_call.1} parent=11 // pred_region
          _
        $region20: #{tpu_custom_call.1} parent=11 // pred_fallthru
          _
        // Predicated region
        $region21: #{tpu_custom_call.1} parent=11 // pred_check
          %p212 = pneg %p134
        $region22: #{tpu_custom_call.1} parent=11 // pred_check_branch
          %214 = sbr.rel (%p212) target = $region24
        $region23: #{tpu_custom_call.1} parent=11 // pred_region
          %s216 = ssub.s32 1024, 1024
          %217 = vsyncadd [#allocation6], %s216
          %s218 = sshll.u32 [#allocation7], 4
          %s219 = int_to_ptr.vmem [resolvable:$true] %s218
          %224 = dma.hbm_to_vmem [thread:$0]  %s4, 1024, %s219, [#allocation6], 256, 256, 16
        $region24: #{tpu_custom_call.1} parent=11 // pred_fallthru
          _
        // Predicated region
        $region25: #{tpu_custom_call.1} parent=11 // pred_check
          %p225 = pneg %p155
        $region26: #{tpu_custom_call.1} parent=11 // pred_check_branch
          %227 = sbr.rel (%p225) target = $region28
        $region27: #{tpu_custom_call.1} parent=11 // pred_region
          _
        $region28: #{tpu_custom_call.1} parent=11 // pred_fallthru
          _
      $region12: #{tpu_custom_call.1} parent=5 // pred_fallthru
        _
      %p228 = scmp.lt.s32.totalorder %s19, 2
      // Predicated region
      $region29: #{tpu_custom_call.1} parent=5 // pred_check
        %p229 = pneg %p228
      $region30: #{tpu_custom_call.1} parent=5 // pred_check_branch
        %231 = sbr.rel (%p229) target = $region32
      $region31: #{tpu_custom_call.1} parent=5 // pred_region
        // Predicated region
        $region33: #{tpu_custom_call.1} parent=31 // pred_check
          %p232 = pneg %p39
        $region34: #{tpu_custom_call.1} parent=31 // pred_check_branch
          %234 = sbr.rel (%p232) target = $region36
        $region35: #{tpu_custom_call.1} parent=31 // pred_region
          %s235 = sand.u32 %s29, 1
          %s236 = scalar_lea.sflag [#allocation3], %s235
          %s237 = sand.u32 %s29, 1
          %s238 = smul.addr %s237, 8
          %s239 = scalar_lea.vmem [#allocation2], %s238
          %s241 = ssub.s32 128, 128
          %242 = vsyncadd %s236, %s241
          %s243 = smul.addr %s19, 128
          %s244 = scalar_lea.hbm %s0, %s243
          %s246 = sshll.u32 %s239, 4
          %s247 = int_to_ptr.vmem [resolvable:$true] %s246
          %249 = dma.hbm_to_vmem [thread:$0]  %s244, 128, %s247, %s236
        $region36: #{tpu_custom_call.1} parent=31 // pred_fallthru
          _
        // Predicated region
        $region37: #{tpu_custom_call.1} parent=31 // pred_check
          %p250 = pneg %p65
        $region38: #{tpu_custom_call.1} parent=31 // pred_check_branch
          %252 = sbr.rel (%p250) target = $region40
        $region39: #{tpu_custom_call.1} parent=31 // pred_region
          %p253 = scmp.lt.s32.totalorder %s19, 1
          %s254 = scalar_select %p253, %s19, 1
          %s255 = scalar_lea.vmem %s1, %s254
        $region40: #{tpu_custom_call.1} parent=31 // pred_fallthru
          _
      $region32: #{tpu_custom_call.1} parent=5 // pred_fallthru
        _
      %p256 = scmp.le.s32.totalorder 1, %s19
      %p257 = scmp.lt.s32.totalorder %s19, 3
      %p258 = pnand %p256, %p257
      %p259 = pneg %p258
      // Predicated region
      $region41: #{tpu_custom_call.1} parent=5 // pred_check
        _
      $region42: #{tpu_custom_call.1} parent=5 // pred_check_branch
        %261 = sbr.rel (%p258) target = $region44
      $region43: #{tpu_custom_call.1} parent=5 // pred_region
        %s262 = ssub.s32 %s19, 1
        %s263 = sand.u32 %s32, 1
        %s264 = scalar_lea.sflag [#allocation3], %s263
        %s265 = sand.u32 %s32, 1
        %s266 = smul.addr %s265, 8
        %s267 = scalar_lea.vmem [#allocation2], %s266
        // Predicated region
        $region45: #{tpu_custom_call.1} parent=43 // pred_check
          %p268 = pneg %p45
        $region46: #{tpu_custom_call.1} parent=43 // pred_check_branch
          %270 = sbr.rel (%p268) target = $region48
        $region47: #{tpu_custom_call.1} parent=43 // pred_region
          %271 = dma.done %s264, 128
        $region48: #{tpu_custom_call.1} parent=43 // pred_fallthru
          _
        // Predicated region
        $region49: #{tpu_custom_call.1} parent=43 // pred_check
          %p272 = pneg %p92
        $region50: #{tpu_custom_call.1} parent=43 // pred_check_branch
          %274 = sbr.rel (%p272) target = $region52
        $region51: #{tpu_custom_call.1} parent=43 // pred_region
          %275 = dma.done [#allocation6], 2048
        $region52: #{tpu_custom_call.1} parent=43 // pred_fallthru
          _
        // Predicated region
        $region53: #{tpu_custom_call.1} parent=43 // pred_check
          %p276 = pneg %p134
        $region54: #{tpu_custom_call.1} parent=43 // pred_check_branch
          %278 = sbr.rel (%p276) target = $region56
        $region55: #{tpu_custom_call.1} parent=43 // pred_region
          %279 = dma.done [#allocation6], 1024
        $region56: #{tpu_custom_call.1} parent=43 // pred_fallthru
          _
        %s280 = sand.u32 %s32, 1
        %s281 = scalar_lea.sflag [#allocation3], %s280
        %s282 = sand.u32 %s32, 1
        %s283 = smul.addr %s282, 8
        %s284 = scalar_lea.vmem [#allocation2], %s283
        %p285 = pneg %p45
        %p286 = pneg %p42
        %p287 = scmp.lt.s32.totalorder %s24, 1
        %s288 = scalar_select %p287, %s24, 1
        %s289 = scalar_lea.vmem %s1, %s288
        %p290 = pneg %p71
        %p291 = pneg %p68
        %p292 = pneg %p92
        %p293 = pneg %p89
        %p294 = pneg %p113
        %p295 = pneg %p110
        %p296 = pneg %p134
        %p297 = pneg %p131
        %p298 = pneg %p155
        %p299 = pneg %p152
        %p300 = pneg %p181
        %p301 = pneg %p178
        %s302 = sand.u32 %s168, 1
        %s303 = scalar_lea.sflag [#allocation4], %s302
        %s304 = sand.u32 %s168, 1
        %s305 = scalar_lea.vmem [#allocation8], %s304
        %p306 = scmp.lt.s32.totalorder %s24, 1
        %s307 = scalar_select %p306, %s24, 1
        %s308 = scalar_lea.vmem %s1, %s307
        %v309 = vld [vmem:[%s5] sm:$0x1]
        %v310 = vld [vmem:[%s267] sm:$0xff]
        %vm311 = vcmask 261120
        %v312 = vsel %vm311, %v310, 0.0
        %313 = vadd.xlane.f32.xlu0 %v312
        %v314 = vpop.xlane.xlu0 %313
        %v315 = vrcp.pop 32.0
        %v316 = vmul.f32 %v314, %v315
        %v317 = vsub.f32 %v310, %v316
        %v318 = vmul.f32 %v317, %v317
        %v319 = vsel %vm311, %v318, 0.0
        %320 = vadd.xlane.f32.xlu0 %v319
        %v321 = vpop.xlane.xlu0 %320
        %v322 = vmul.f32 %v321, %v315
        %v323 = vadd.f32 %v322, 1e-12
        %v324 = vrsqrt.pop %v323
        %v325 = vmul.f32 %v317, %v324
        %v327 = vlaneseq
        %v328 = vshrl.u32 %v327, 7
        %v329 = vsub.s32 0, %v328
        %v330 = vrot.slane %v309, %v329
        %v332 = vmul.f32 %v325, %v330
        %333 = vrot.lane.b32.xlu0 %v330, 96
        %v334 = vpop.permute.xlu0 %333
        %v336 = vadd.f32 %v332, %v334
        %v337 = vld [vmem:[%s308] sm:$0x1]
        %v338 = vld [vmem:[#allocation5] sm:$0xff]
        %v339 = vld [vmem:[#allocation5 + $0x10] sm:$0xff]
        %v340 = vld [vmem:[#allocation5 + $0x20] sm:$0xff]
        %v341 = vld [vmem:[#allocation5 + $0x30] sm:$0xff]
        %v342 = vld [vmem:[#allocation5 + $0x8] sm:$0xff]
        %v343 = vld [vmem:[#allocation5 + $0x18] sm:$0xff]
        %v344 = vld [vmem:[#allocation5 + $0x28] sm:$0xff]
        %v345 = vld [vmem:[#allocation5 + $0x38] sm:$0xff]
        %v346 = vld [vmem:[%s3] sm:$0x1]
        %v347 = vld [vmem:[%s3 + $0x1] sm:$0x1]
        %v348 = vld [vmem:[%s3 + $0x2] sm:$0x1]
        %v350 = vlaneseq
        %v351 = vshrl.u32 %v350, 7
        %v352 = vsub.s32 0, %v351
        %v353 = vrot.slane %v346, %v352
        %v356 = vsel %vm311, %v336, 0
        %358 = vmatprep.subr.mxu0 0.0
        %359 = vmatpush1.msra.mxu0 %v338
        %360 = vmatprep.subr.mxu0 0.0
        %361 = vmatpush1.msra.mxu0 %v339
        %362 = vmatprep.subr.mxu0 0.0
        %363 = vmatpush1.msra.mxu0 %v340
        %364 = vmatprep.subr.mxu0 0.0
        %365 = vmatpush1.msra.mxu0 %v341
        %366 = vmatprep.subr.mxu0 0.0
        %367 = vmatpush1.msra.mxu0 0.0
        %368 = vmatprep.subr.mxu0 0.0
        %369 = vmatpush1.msra.mxu0 0.0
        %370 = vmatprep.subr.mxu0 0.0
        %371 = vmatpush1.msra.mxu0 0.0
        %372 = vmatprep.subr.mxu0 0.0
        %373 = vmatpush1.msra.mxu0 0.0
        %374 = vmatprep.subr.mxu0 0.0
        %375 = vmatpush1.msra.mxu0 0.0
        %376 = vmatprep.subr.mxu0 0.0
        %377 = vmatpush1.msra.mxu0 0.0
        %378 = vmatprep.subr.mxu0 0.0
        %379 = vmatpush1.msra.mxu0 0.0
        %380 = vmatprep.subr.mxu0 0.0
        %381 = vmatpush1.msra.mxu0 0.0
        %382 = vmatprep.subr.mxu0 0.0
        %383 = vmatpush1.msra.mxu0 0.0
        %384 = vmatprep.subr.mxu0 0.0
        %385 = vmatpush1.msra.mxu0 0.0
        %386 = vmatprep.subr.mxu0 0.0
        %387 = vmatpush1.msra.mxu0 0.0
        %388 = vmatprep.subr.mxu0 0.0
        %389 = vmatpush1.msra.mxu0 0.0
        %390 = vmatprep.subr.mxu0 0.0
        %391 = vmatpush1.msra.mxu0 0.0
        %392 = vmatprep.subr.mxu0 0.0
        %393 = vmatpush1.msra.mxu0 0.0
        %394 = vmatprep.subr.mxu0 0.0
        %395 = vmatpush1.msra.mxu0 0.0
        %396 = vmatprep.subr.mxu0 0.0
        %397 = vmatpush1.msra.mxu0 0.0
        %398 = vmatprep.subr.mxu0 0.0
        %399 = vmatpush1.msra.mxu0 0.0
        %400 = vmatprep.subr.mxu0 0.0
        %401 = vmatpush1.msra.mxu0 0.0
        %402 = vmatprep.subr.mxu0 0.0
        %403 = vmatpush1.msra.mxu0 0.0
        %404 = vmatprep.subr.mxu0 0.0
        %405 = vmatpush1.msra.mxu0 0.0
        %406 = vmatprep.subr.mxu0 0.0
        %407 = vmatpush1.msra.mxu0 0.0
        %408 = vmatprep.subr.mxu0 0.0
        %409 = vmatpush1.msra.mxu0 0.0
        %410 = vmatprep.subr.mxu0 0.0
        %411 = vmatpush1.msra.mxu0 0.0
        %412 = vmatprep.subr.mxu0 0.0
        %413 = vmatpush1.msra.mxu0 0.0
        %414 = vmatprep.subr.mxu0 0.0
        %415 = vmatpush1.msra.mxu0 0.0
        %416 = vmatprep.subr.mxu0 0.0
        %417 = vmatpush1.msra.mxu0 0.0
        %418 = vmatprep.subr.mxu0 0.0
        %419 = vmatpush1.msra.mxu0 0.0
        %420 = vmatprep.subr.mxu0 0.0
        %421 = vmatpush1.msra.mxu0 0.0
        %422 = vmatprep.mubr.f32.mxu0 0.0
        %423 = vmatmul.mubr.f32.gmra.mrb[0].mxu0 %v356
        %v424 = vpop.f32.mrb[0].mxu0
        %v425 = vadd.f32 %v353, %v424
        %v426 = vpop.f32.mrb[0].mxu0
        %427 = vdwg.mxu0
        %429 = vrot.lane.b32.xlu0 %v425, 120
        %v430 = vpop.permute.xlu0 %429
        %431 = vrot.lane.b32.xlu0 %v425, 112
        %v432 = vpop.permute.xlu0 %431
        %433 = vrot.lane.b32.xlu0 %v425, 104
        %v434 = vpop.permute.xlu0 %433
        %v436 = vlaneseq
        %v437 = vshrl.u32 %v436, 7
        %v438 = vsub.s32 0, %v437
        %v439 = vrot.slane %v337, %v438
        %441 = vrot.lane.b32.xlu0 %v425, 96
        %v442 = vpop.permute.xlu0 %441
        %vm443 = vcmask 64512
        %v444 = vsel %vm443, %v425, 0
        %v446 = vsel %vm443, %v442, 0
        %448 = vmatprep.subr.mxu0 0.0
        %449 = vmatpush1.xpose.msra.mxu0 %v446
        %450 = vmatprep.subr.mxu0 0.0
        %451 = vmatpush1.xpose.msra.mxu0 0.0
        %452 = vmatprep.subr.mxu0 0.0
        %453 = vmatpush1.xpose.msra.mxu0 0.0
        %454 = vmatprep.subr.mxu0 0.0
        %455 = vmatpush1.xpose.msra.mxu0 0.0
        %456 = vmatprep.subr.mxu0 0.0
        %457 = vmatpush1.xpose.msra.mxu0 0.0
        %458 = vmatprep.subr.mxu0 0.0
        %459 = vmatpush1.xpose.msra.mxu0 0.0
        %460 = vmatprep.subr.mxu0 0.0
        %461 = vmatpush1.xpose.msra.mxu0 0.0
        %462 = vmatprep.subr.mxu0 0.0
        %463 = vmatpush1.xpose.msra.mxu0 0.0
        %464 = vmatprep.subr.mxu0 0.0
        %465 = vmatpush1.xpose.msra.mxu0 0.0
        %466 = vmatprep.subr.mxu0 0.0
        %467 = vmatpush1.xpose.msra.mxu0 0.0
        %468 = vmatprep.subr.mxu0 0.0
        %469 = vmatpush1.xpose.msra.mxu0 0.0
        %470 = vmatprep.subr.mxu0 0.0
        %471 = vmatpush1.xpose.msra.mxu0 0.0
        %472 = vmatprep.subr.mxu0 0.0
        %473 = vmatpush1.xpose.msra.mxu0 0.0
        %474 = vmatprep.subr.mxu0 0.0
        %475 = vmatpush1.xpose.msra.mxu0 0.0
        %476 = vmatprep.subr.mxu0 0.0
        %477 = vmatpush1.xpose.msra.mxu0 0.0
        %478 = vmatprep.subr.mxu0 0.0
        %479 = vmatpush1.xpose.msra.mxu0 0.0
        %480 = vmatprep.subr.mxu0 0.0
        %481 = vmatpush1.xpose.msra.mxu0 0.0
        %482 = vmatprep.subr.mxu0 0.0
        %483 = vmatpush1.xpose.msra.mxu0 0.0
        %484 = vmatprep.subr.mxu0 0.0
        %485 = vmatpush1.xpose.msra.mxu0 0.0
        %486 = vmatprep.subr.mxu0 0.0
        %487 = vmatpush1.xpose.msra.mxu0 0.0
        %488 = vmatprep.subr.mxu0 0.0
        %489 = vmatpush1.xpose.msra.mxu0 0.0
        %490 = vmatprep.subr.mxu0 0.0
        %491 = vmatpush1.xpose.msra.mxu0 0.0
        %492 = vmatprep.subr.mxu0 0.0
        %493 = vmatpush1.xpose.msra.mxu0 0.0
        %494 = vmatprep.subr.mxu0 0.0
        %495 = vmatpush1.xpose.msra.mxu0 0.0
        %496 = vmatprep.subr.mxu0 0.0
        %497 = vmatpush1.xpose.msra.mxu0 0.0
        %498 = vmatprep.subr.mxu0 0.0
        %499 = vmatpush1.xpose.msra.mxu0 0.0
        %500 = vmatprep.subr.mxu0 0.0
        %501 = vmatpush1.xpose.msra.mxu0 0.0
        %502 = vmatprep.subr.mxu0 0.0
        %503 = vmatpush1.xpose.msra.mxu0 0.0
        %504 = vmatprep.subr.mxu0 0.0
        %505 = vmatpush1.xpose.msra.mxu0 0.0
        %506 = vmatprep.subr.mxu0 0.0
        %507 = vmatpush1.xpose.msra.mxu0 0.0
        %508 = vmatprep.subr.mxu0 0.0
        %509 = vmatpush1.xpose.msra.mxu0 0.0
        %510 = vmatprep.subr.mxu0 0.0
        %511 = vmatpush1.xpose.msra.mxu0 0.0
        %512 = vmatprep.mubr.f32.mxu0 0.0
        %513 = vmatmul.mubr.f32.gmra.mrb[0].mxu0 %v444
        %v514 = vpop.f32.mrb[0].mxu0
        %v515 = vadd.f32 %v439, %v514
        %v516 = vpop.f32.mrb[0].mxu0
        %517 = vdwg.mxu0
        %518 = vrot.lane.b32.xlu0 %v430, 96
        %v519 = vpop.permute.xlu0 %518
        %v520 = vsel %vm443, %v430, 0
        %v522 = vsel %vm443, %v519, 0
        %524 = vmatprep.subr.mxu0 0.0
        %525 = vmatpush1.xpose.msra.mxu0 %v522
        %526 = vmatprep.subr.mxu0 0.0
        %527 = vmatpush1.xpose.msra.mxu0 0.0
        %528 = vmatprep.subr.mxu0 0.0
        %529 = vmatpush1.xpose.msra.mxu0 0.0
        %530 = vmatprep.subr.mxu0 0.0
        %531 = vmatpush1.xpose.msra.mxu0 0.0
        %532 = vmatprep.subr.mxu0 0.0
        %533 = vmatpush1.xpose.msra.mxu0 0.0
        %534 = vmatprep.subr.mxu0 0.0
        %535 = vmatpush1.xpose.msra.mxu0 0.0
        %536 = vmatprep.subr.mxu0 0.0
        %537 = vmatpush1.xpose.msra.mxu0 0.0
        %538 = vmatprep.subr.mxu0 0.0
        %539 = vmatpush1.xpose.msra.mxu0 0.0
        %540 = vmatprep.subr.mxu0 0.0
        %541 = vmatpush1.xpose.msra.mxu0 0.0
        %542 = vmatprep.subr.mxu0 0.0
        %543 = vmatpush1.xpose.msra.mxu0 0.0
        %544 = vmatprep.subr.mxu0 0.0
        %545 = vmatpush1.xpose.msra.mxu0 0.0
        %546 = vmatprep.subr.mxu0 0.0
        %547 = vmatpush1.xpose.msra.mxu0 0.0
        %548 = vmatprep.subr.mxu0 0.0
        %549 = vmatpush1.xpose.msra.mxu0 0.0
        %550 = vmatprep.subr.mxu0 0.0
        %551 = vmatpush1.xpose.msra.mxu0 0.0
        %552 = vmatprep.subr.mxu0 0.0
        %553 = vmatpush1.xpose.msra.mxu0 0.0
        %554 = vmatprep.subr.mxu0 0.0
        %555 = vmatpush1.xpose.msra.mxu0 0.0
        %556 = vmatprep.subr.mxu0 0.0
        %557 = vmatpush1.xpose.msra.mxu0 0.0
        %558 = vmatprep.subr.mxu0 0.0
        %559 = vmatpush1.xpose.msra.mxu0 0.0
        %560 = vmatprep.subr.mxu0 0.0
        %561 = vmatpush1.xpose.msra.mxu0 0.0
        %562 = vmatprep.subr.mxu0 0.0
        %563 = vmatpush1.xpose.msra.mxu0 0.0
        %564 = vmatprep.subr.mxu0 0.0
        %565 = vmatpush1.xpose.msra.mxu0 0.0
        %566 = vmatprep.subr.mxu0 0.0
        %567 = vmatpush1.xpose.msra.mxu0 0.0
        %568 = vmatprep.subr.mxu0 0.0
        %569 = vmatpush1.xpose.msra.mxu0 0.0
        %570 = vmatprep.subr.mxu0 0.0
        %571 = vmatpush1.xpose.msra.mxu0 0.0
        %572 = vmatprep.subr.mxu0 0.0
        %573 = vmatpush1.xpose.msra.mxu0 0.0
        %574 = vmatprep.subr.mxu0 0.0
        %575 = vmatpush1.xpose.msra.mxu0 0.0
        %576 = vmatprep.subr.mxu0 0.0
        %577 = vmatpush1.xpose.msra.mxu0 0.0
        %578 = vmatprep.subr.mxu0 0.0
        %579 = vmatpush1.xpose.msra.mxu0 0.0
        %580 = vmatprep.subr.mxu0 0.0
        %581 = vmatpush1.xpose.msra.mxu0 0.0
        %582 = vmatprep.subr.mxu0 0.0
        %583 = vmatpush1.xpose.msra.mxu0 0.0
        %584 = vmatprep.subr.mxu0 0.0
        %585 = vmatpush1.xpose.msra.mxu0 0.0
        %586 = vmatprep.subr.mxu0 0.0
        %587 = vmatpush1.xpose.msra.mxu0 0.0
        %588 = vmatprep.mubr.f32.mxu0 0.0
        %589 = vmatmul.mubr.f32.gmra.mrb[0].mxu0 %v520
        %v590 = vpop.f32.mrb[0].mxu0
        %v591 = vadd.f32 %v439, %v590
        %v592 = vpop.f32.mrb[0].mxu0
        %593 = vdwg.mxu0
        %594 = vrot.lane.b32.xlu0 %v432, 96
        %v595 = vpop.permute.xlu0 %594
        %v596 = vsel %vm443, %v432, 0
        %v598 = vsel %vm443, %v595, 0
        %600 = vmatprep.subr.mxu0 0.0
        %601 = vmatpush1.xpose.msra.mxu0 %v598
        %602 = vmatprep.subr.mxu0 0.0
        %603 = vmatpush1.xpose.msra.mxu0 0.0
        %604 = vmatprep.subr.mxu0 0.0
        %605 = vmatpush1.xpose.msra.mxu0 0.0
        %606 = vmatprep.subr.mxu0 0.0
        %607 = vmatpush1.xpose.msra.mxu0 0.0
        %608 = vmatprep.subr.mxu0 0.0
        %609 = vmatpush1.xpose.msra.mxu0 0.0
        %610 = vmatprep.subr.mxu0 0.0
        %611 = vmatpush1.xpose.msra.mxu0 0.0
        %612 = vmatprep.subr.mxu0 0.0
        %613 = vmatpush1.xpose.msra.mxu0 0.0
        %614 = vmatprep.subr.mxu0 0.0
        %615 = vmatpush1.xpose.msra.mxu0 0.0
        %616 = vmatprep.subr.mxu0 0.0
        %617 = vmatpush1.xpose.msra.mxu0 0.0
        %618 = vmatprep.subr.mxu0 0.0
        %619 = vmatpush1.xpose.msra.mxu0 0.0
        %620 = vmatprep.subr.mxu0 0.0
        %621 = vmatpush1.xpose.msra.mxu0 0.0
        %622 = vmatprep.subr.mxu0 0.0
        %623 = vmatpush1.xpose.msra.mxu0 0.0
        %624 = vmatprep.subr.mxu0 0.0
        %625 = vmatpush1.xpose.msra.mxu0 0.0
        %626 = vmatprep.subr.mxu0 0.0
        %627 = vmatpush1.xpose.msra.mxu0 0.0
        %628 = vmatprep.subr.mxu0 0.0
        %629 = vmatpush1.xpose.msra.mxu0 0.0
        %630 = vmatprep.subr.mxu0 0.0
        %631 = vmatpush1.xpose.msra.mxu0 0.0
        %632 = vmatprep.subr.mxu0 0.0
        %633 = vmatpush1.xpose.msra.mxu0 0.0
        %634 = vmatprep.subr.mxu0 0.0
        %635 = vmatpush1.xpose.msra.mxu0 0.0
        %636 = vmatprep.subr.mxu0 0.0
        %637 = vmatpush1.xpose.msra.mxu0 0.0
        %638 = vmatprep.subr.mxu0 0.0
        %639 = vmatpush1.xpose.msra.mxu0 0.0
        %640 = vmatprep.subr.mxu0 0.0
        %641 = vmatpush1.xpose.msra.mxu0 0.0
        %642 = vmatprep.subr.mxu0 0.0
        %643 = vmatpush1.xpose.msra.mxu0 0.0
        %644 = vmatprep.subr.mxu0 0.0
        %645 = vmatpush1.xpose.msra.mxu0 0.0
        %646 = vmatprep.subr.mxu0 0.0
        %647 = vmatpush1.xpose.msra.mxu0 0.0
        %648 = vmatprep.subr.mxu0 0.0
        %649 = vmatpush1.xpose.msra.mxu0 0.0
        %650 = vmatprep.subr.mxu0 0.0
        %651 = vmatpush1.xpose.msra.mxu0 0.0
        %652 = vmatprep.subr.mxu0 0.0
        %653 = vmatpush1.xpose.msra.mxu0 0.0
        %654 = vmatprep.subr.mxu0 0.0
        %655 = vmatpush1.xpose.msra.mxu0 0.0
        %656 = vmatprep.subr.mxu0 0.0
        %657 = vmatpush1.xpose.msra.mxu0 0.0
        %658 = vmatprep.subr.mxu0 0.0
        %659 = vmatpush1.xpose.msra.mxu0 0.0
        %660 = vmatprep.subr.mxu0 0.0
        %661 = vmatpush1.xpose.msra.mxu0 0.0
        %662 = vmatprep.subr.mxu0 0.0
        %663 = vmatpush1.xpose.msra.mxu0 0.0
        %664 = vmatprep.mubr.f32.mxu0 0.0
        %665 = vmatmul.mubr.f32.gmra.mrb[0].mxu0 %v596
        %v666 = vpop.f32.mrb[0].mxu0
        %v667 = vadd.f32 %v439, %v666
        %v668 = vpop.f32.mrb[0].mxu0
        %669 = vdwg.mxu0
        %670 = vrot.lane.b32.xlu0 %v434, 96
        %v671 = vpop.permute.xlu0 %670
        %v672 = vsel %vm443, %v434, 0
        %v674 = vsel %vm443, %v671, 0
        %676 = vmatprep.subr.mxu0 0.0
        %677 = vmatpush1.xpose.msra.mxu0 %v674
        %678 = vmatprep.subr.mxu0 0.0
        %679 = vmatpush1.xpose.msra.mxu0 0.0
        %680 = vmatprep.subr.mxu0 0.0
        %681 = vmatpush1.xpose.msra.mxu0 0.0
        %682 = vmatprep.subr.mxu0 0.0
        %683 = vmatpush1.xpose.msra.mxu0 0.0
        %684 = vmatprep.subr.mxu0 0.0
        %685 = vmatpush1.xpose.msra.mxu0 0.0
        %686 = vmatprep.subr.mxu0 0.0
        %687 = vmatpush1.xpose.msra.mxu0 0.0
        %688 = vmatprep.subr.mxu0 0.0
        %689 = vmatpush1.xpose.msra.mxu0 0.0
        %690 = vmatprep.subr.mxu0 0.0
        %691 = vmatpush1.xpose.msra.mxu0 0.0
        %692 = vmatprep.subr.mxu0 0.0
        %693 = vmatpush1.xpose.msra.mxu0 0.0
        %694 = vmatprep.subr.mxu0 0.0
        %695 = vmatpush1.xpose.msra.mxu0 0.0
        %696 = vmatprep.subr.mxu0 0.0
        %697 = vmatpush1.xpose.msra.mxu0 0.0
        %698 = vmatprep.subr.mxu0 0.0
        %699 = vmatpush1.xpose.msra.mxu0 0.0
        %700 = vmatprep.subr.mxu0 0.0
        %701 = vmatpush1.xpose.msra.mxu0 0.0
        %702 = vmatprep.subr.mxu0 0.0
        %703 = vmatpush1.xpose.msra.mxu0 0.0
        %704 = vmatprep.subr.mxu0 0.0
        %705 = vmatpush1.xpose.msra.mxu0 0.0
        %706 = vmatprep.subr.mxu0 0.0
        %707 = vmatpush1.xpose.msra.mxu0 0.0
        %708 = vmatprep.subr.mxu0 0.0
        %709 = vmatpush1.xpose.msra.mxu0 0.0
        %710 = vmatprep.subr.mxu0 0.0
        %711 = vmatpush1.xpose.msra.mxu0 0.0
        %712 = vmatprep.subr.mxu0 0.0
        %713 = vmatpush1.xpose.msra.mxu0 0.0
        %714 = vmatprep.subr.mxu0 0.0
        %715 = vmatpush1.xpose.msra.mxu0 0.0
        %716 = vmatprep.subr.mxu0 0.0
        %717 = vmatpush1.xpose.msra.mxu0 0.0
        %718 = vmatprep.subr.mxu0 0.0
        %719 = vmatpush1.xpose.msra.mxu0 0.0
        %720 = vmatprep.subr.mxu0 0.0
        %721 = vmatpush1.xpose.msra.mxu0 0.0
        %722 = vmatprep.subr.mxu0 0.0
        %723 = vmatpush1.xpose.msra.mxu0 0.0
        %724 = vmatprep.subr.mxu0 0.0
        %725 = vmatpush1.xpose.msra.mxu0 0.0
        %726 = vmatprep.subr.mxu0 0.0
        %727 = vmatpush1.xpose.msra.mxu0 0.0
        %728 = vmatprep.subr.mxu0 0.0
        %729 = vmatpush1.xpose.msra.mxu0 0.0
        %730 = vmatprep.subr.mxu0 0.0
        %731 = vmatpush1.xpose.msra.mxu0 0.0
        %732 = vmatprep.subr.mxu0 0.0
        %733 = vmatpush1.xpose.msra.mxu0 0.0
        %734 = vmatprep.subr.mxu0 0.0
        %735 = vmatpush1.xpose.msra.mxu0 0.0
        %736 = vmatprep.subr.mxu0 0.0
        %737 = vmatpush1.xpose.msra.mxu0 0.0
        %738 = vmatprep.subr.mxu0 0.0
        %739 = vmatpush1.xpose.msra.mxu0 0.0
        %740 = vmatprep.mubr.f32.mxu0 0.0
        %741 = vmatmul.mubr.f32.gmra.mrb[0].mxu0 %v672
        %v742 = vpop.f32.mrb[0].mxu0
        %v743 = vadd.f32 %v439, %v742
        %v744 = vpop.f32.mrb[0].mxu0
        %745 = vdwg.mxu0
        %v746 = vsel %vm443, %v515, -inf
        %747 = vmax.xlane.f32.xlu0 %v746
        %v748 = vpop.xlane.xlu0 %747
        %v749 = vsel %vm443, %v591, -inf
        %750 = vmax.xlane.f32.xlu0 %v749
        %v751 = vpop.xlane.xlu0 %750
        %v752 = vsel %vm443, %v667, -inf
        %753 = vmax.xlane.f32.xlu0 %v752
        %v754 = vpop.xlane.xlu0 %753
        %v755 = vsel %vm443, %v743, -inf
        %756 = vmax.xlane.f32.xlu0 %v755
        %v757 = vpop.xlane.xlu0 %756
        %v758 = vsub.f32 %v515, %v748
        %v759 = vsub.f32 %v591, %v751
        %v760 = vsub.f32 %v667, %v754
        %v761 = vsub.f32 %v743, %v757
        %v762 = vmul.f32 %v758, 1.442695
        %v763 = vpow.pop %v762
        %v764 = vmul.f32 %v759, 1.442695
        %v765 = vpow.pop %v764
        %v766 = vmul.f32 %v760, 1.442695
        %v767 = vpow.pop %v766
        %v768 = vmul.f32 %v761, 1.442695
        %v769 = vpow.pop %v768
        %v770 = vsel %vm443, %v763, 0.0
        %771 = vadd.xlane.f32.xlu0 %v770
        %v772 = vpop.xlane.xlu0 %771
        %v773 = vsel %vm443, %v765, 0.0
        %774 = vadd.xlane.f32.xlu0 %v773
        %v775 = vpop.xlane.xlu0 %774
        %v776 = vsel %vm443, %v767, 0.0
        %777 = vadd.xlane.f32.xlu0 %v776
        %v778 = vpop.xlane.xlu0 %777
        %v779 = vsel %vm443, %v769, 0.0
        %780 = vadd.xlane.f32.xlu0 %v779
        %v781 = vpop.xlane.xlu0 %780
        %v782 = vrcp.pop %v772
        %v783 = vmul.f32 %v763, %v782
        %v784 = vrcp.pop %v775
        %v785 = vmul.f32 %v765, %v784
        %v786 = vrcp.pop %v778
        %v787 = vmul.f32 %v767, %v786
        %v788 = vrcp.pop %v781
        %v789 = vmul.f32 %v769, %v788
        %790 = vrot.lane.b32.xlu0 %v425, 64
        %v791 = vpop.permute.xlu0 %790
        %v794 = vsel %vm443, %v783, 0
        %796 = vmatprep.subr.mxu0 0.0
        %797 = vmatpush1.msra.mxu0 %v791
        %798 = vmatprep.subr.mxu0 0.0
        %799 = vmatpush1.msra.mxu0 0.0
        %800 = vmatprep.subr.mxu0 0.0
        %801 = vmatpush1.msra.mxu0 0.0
        %802 = vmatprep.subr.mxu0 0.0
        %803 = vmatpush1.msra.mxu0 0.0
        %804 = vmatprep.subr.mxu0 0.0
        %805 = vmatpush1.msra.mxu0 0.0
        %806 = vmatprep.subr.mxu0 0.0
        %807 = vmatpush1.msra.mxu0 0.0
        %808 = vmatprep.subr.mxu0 0.0
        %809 = vmatpush1.msra.mxu0 0.0
        %810 = vmatprep.subr.mxu0 0.0
        %811 = vmatpush1.msra.mxu0 0.0
        %812 = vmatprep.subr.mxu0 0.0
        %813 = vmatpush1.msra.mxu0 0.0
        %814 = vmatprep.subr.mxu0 0.0
        %815 = vmatpush1.msra.mxu0 0.0
        %816 = vmatprep.subr.mxu0 0.0
        %817 = vmatpush1.msra.mxu0 0.0
        %818 = vmatprep.subr.mxu0 0.0
        %819 = vmatpush1.msra.mxu0 0.0
        %820 = vmatprep.subr.mxu0 0.0
        %821 = vmatpush1.msra.mxu0 0.0
        %822 = vmatprep.subr.mxu0 0.0
        %823 = vmatpush1.msra.mxu0 0.0
        %824 = vmatprep.subr.mxu0 0.0
        %825 = vmatpush1.msra.mxu0 0.0
        %826 = vmatprep.subr.mxu0 0.0
        %827 = vmatpush1.msra.mxu0 0.0
        %828 = vmatprep.subr.mxu0 0.0
        %829 = vmatpush1.msra.mxu0 0.0
        %830 = vmatprep.subr.mxu0 0.0
        %831 = vmatpush1.msra.mxu0 0.0
        %832 = vmatprep.subr.mxu0 0.0
        %833 = vmatpush1.msra.mxu0 0.0
        %834 = vmatprep.subr.mxu0 0.0
        %835 = vmatpush1.msra.mxu0 0.0
        %836 = vmatprep.subr.mxu0 0.0
        %837 = vmatpush1.msra.mxu0 0.0
        %838 = vmatprep.subr.mxu0 0.0
        %839 = vmatpush1.msra.mxu0 0.0
        %840 = vmatprep.subr.mxu0 0.0
        %841 = vmatpush1.msra.mxu0 0.0
        %842 = vmatprep.subr.mxu0 0.0
        %843 = vmatpush1.msra.mxu0 0.0
        %844 = vmatprep.subr.mxu0 0.0
        %845 = vmatpush1.msra.mxu0 0.0
        %846 = vmatprep.subr.mxu0 0.0
        %847 = vmatpush1.msra.mxu0 0.0
        %848 = vmatprep.subr.mxu0 0.0
        %849 = vmatpush1.msra.mxu0 0.0
        %850 = vmatprep.subr.mxu0 0.0
        %851 = vmatpush1.msra.mxu0 0.0
        %852 = vmatprep.subr.mxu0 0.0
        %853 = vmatpush1.msra.mxu0 0.0
        %854 = vmatprep.subr.mxu0 0.0
        %855 = vmatpush1.msra.mxu0 0.0
        %856 = vmatprep.subr.mxu0 0.0
        %857 = vmatpush1.msra.mxu0 0.0
        %858 = vmatprep.subr.mxu0 0.0
        %859 = vmatpush1.msra.mxu0 0.0
        %860 = vmatprep.mubr.f32.mxu0 0.0
        %861 = vmatmul.mubr.f32.gmra.mrb[0].mxu0 %v794
        %v862 = vpop.f32.mrb[0].mxu0
        %v863 = vadd.f32 0.0, %v862
        %v864 = vpop.f32.mrb[0].mxu0
        %865 = vdwg.mxu0
        %866 = vrot.lane.b32.xlu0 %v430, 64
        %v867 = vpop.permute.xlu0 %866
        %v870 = vsel %vm443, %v785, 0
        %872 = vmatprep.subr.mxu0 0.0
        %873 = vmatpush1.msra.mxu0 %v867
        %874 = vmatprep.subr.mxu0 0.0
        %875 = vmatpush1.msra.mxu0 0.0
        %876 = vmatprep.subr.mxu0 0.0
        %877 = vmatpush1.msra.mxu0 0.0
        %878 = vmatprep.subr.mxu0 0.0
        %879 = vmatpush1.msra.mxu0 0.0
        %880 = vmatprep.subr.mxu0 0.0
        %881 = vmatpush1.msra.mxu0 0.0
        %882 = vmatprep.subr.mxu0 0.0
        %883 = vmatpush1.msra.mxu0 0.0
        %884 = vmatprep.subr.mxu0 0.0
        %885 = vmatpush1.msra.mxu0 0.0
        %886 = vmatprep.subr.mxu0 0.0
        %887 = vmatpush1.msra.mxu0 0.0
        %888 = vmatprep.subr.mxu0 0.0
        %889 = vmatpush1.msra.mxu0 0.0
        %890 = vmatprep.subr.mxu0 0.0
        %891 = vmatpush1.msra.mxu0 0.0
        %892 = vmatprep.subr.mxu0 0.0
        %893 = vmatpush1.msra.mxu0 0.0
        %894 = vmatprep.subr.mxu0 0.0
        %895 = vmatpush1.msra.mxu0 0.0
        %896 = vmatprep.subr.mxu0 0.0
        %897 = vmatpush1.msra.mxu0 0.0
        %898 = vmatprep.subr.mxu0 0.0
        %899 = vmatpush1.msra.mxu0 0.0
        %900 = vmatprep.subr.mxu0 0.0
        %901 = vmatpush1.msra.mxu0 0.0
        %902 = vmatprep.subr.mxu0 0.0
        %903 = vmatpush1.msra.mxu0 0.0
        %904 = vmatprep.subr.mxu0 0.0
        %905 = vmatpush1.msra.mxu0 0.0
        %906 = vmatprep.subr.mxu0 0.0
        %907 = vmatpush1.msra.mxu0 0.0
        %908 = vmatprep.subr.mxu0 0.0
        %909 = vmatpush1.msra.mxu0 0.0
        %910 = vmatprep.subr.mxu0 0.0
        %911 = vmatpush1.msra.mxu0 0.0
        %912 = vmatprep.subr.mxu0 0.0
        %913 = vmatpush1.msra.mxu0 0.0
        %914 = vmatprep.subr.mxu0 0.0
        %915 = vmatpush1.msra.mxu0 0.0
        %916 = vmatprep.subr.mxu0 0.0
        %917 = vmatpush1.msra.mxu0 0.0
        %918 = vmatprep.subr.mxu0 0.0
        %919 = vmatpush1.msra.mxu0 0.0
        %920 = vmatprep.subr.mxu0 0.0
        %921 = vmatpush1.msra.mxu0 0.0
        %922 = vmatprep.subr.mxu0 0.0
        %923 = vmatpush1.msra.mxu0 0.0
        %924 = vmatprep.subr.mxu0 0.0
        %925 = vmatpush1.msra.mxu0 0.0
        %926 = vmatprep.subr.mxu0 0.0
        %927 = vmatpush1.msra.mxu0 0.0
        %928 = vmatprep.subr.mxu0 0.0
        %929 = vmatpush1.msra.mxu0 0.0
        %930 = vmatprep.subr.mxu0 0.0
        %931 = vmatpush1.msra.mxu0 0.0
        %932 = vmatprep.subr.mxu0 0.0
        %933 = vmatpush1.msra.mxu0 0.0
        %934 = vmatprep.subr.mxu0 0.0
        %935 = vmatpush1.msra.mxu0 0.0
        %936 = vmatprep.mubr.f32.mxu0 0.0
        %937 = vmatmul.mubr.f32.gmra.mrb[0].mxu0 %v870
        %v938 = vpop.f32.mrb[0].mxu0
        %v939 = vadd.f32 0.0, %v938
        %v940 = vpop.f32.mrb[0].mxu0
        %941 = vdwg.mxu0
        %942 = vrot.lane.b32.xlu0 %v432, 64
        %v943 = vpop.permute.xlu0 %942
        %v946 = vsel %vm443, %v787, 0
        %948 = vmatprep.subr.mxu0 0.0
        %949 = vmatpush1.msra.mxu0 %v943
        %950 = vmatprep.subr.mxu0 0.0
        %951 = vmatpush1.msra.mxu0 0.0
        %952 = vmatprep.subr.mxu0 0.0
        %953 = vmatpush1.msra.mxu0 0.0
        %954 = vmatprep.subr.mxu0 0.0
        %955 = vmatpush1.msra.mxu0 0.0
        %956 = vmatprep.subr.mxu0 0.0
        %957 = vmatpush1.msra.mxu0 0.0
        %958 = vmatprep.subr.mxu0 0.0
        %959 = vmatpush1.msra.mxu0 0.0
        %960 = vmatprep.subr.mxu0 0.0
        %961 = vmatpush1.msra.mxu0 0.0
        %962 = vmatprep.subr.mxu0 0.0
        %963 = vmatpush1.msra.mxu0 0.0
        %964 = vmatprep.subr.mxu0 0.0
        %965 = vmatpush1.msra.mxu0 0.0
        %966 = vmatprep.subr.mxu0 0.0
        %967 = vmatpush1.msra.mxu0 0.0
        %968 = vmatprep.subr.mxu0 0.0
        %969 = vmatpush1.msra.mxu0 0.0
        %970 = vmatprep.subr.mxu0 0.0
        %971 = vmatpush1.msra.mxu0 0.0
        %972 = vmatprep.subr.mxu0 0.0
        %973 = vmatpush1.msra.mxu0 0.0
        %974 = vmatprep.subr.mxu0 0.0
        %975 = vmatpush1.msra.mxu0 0.0
        %976 = vmatprep.subr.mxu0 0.0
        %977 = vmatpush1.msra.mxu0 0.0
        %978 = vmatprep.subr.mxu0 0.0
        %979 = vmatpush1.msra.mxu0 0.0
        %980 = vmatprep.subr.mxu0 0.0
        %981 = vmatpush1.msra.mxu0 0.0
        %982 = vmatprep.subr.mxu0 0.0
        %983 = vmatpush1.msra.mxu0 0.0
        %984 = vmatprep.subr.mxu0 0.0
        %985 = vmatpush1.msra.mxu0 0.0
        %986 = vmatprep.subr.mxu0 0.0
        %987 = vmatpush1.msra.mxu0 0.0
        %988 = vmatprep.subr.mxu0 0.0
        %989 = vmatpush1.msra.mxu0 0.0
        %990 = vmatprep.subr.mxu0 0.0
        %991 = vmatpush1.msra.mxu0 0.0
        %992 = vmatprep.subr.mxu0 0.0
        %993 = vmatpush1.msra.mxu0 0.0
        %994 = vmatprep.subr.mxu0 0.0
        %995 = vmatpush1.msra.mxu0 0.0
        %996 = vmatprep.subr.mxu0 0.0
        %997 = vmatpush1.msra.mxu0 0.0
        %998 = vmatprep.subr.mxu0 0.0
        %999 = vmatpush1.msra.mxu0 0.0
        %1000 = vmatprep.subr.mxu0 0.0
        %1001 = vmatpush1.msra.mxu0 0.0
        %1002 = vmatprep.subr.mxu0 0.0
        %1003 = vmatpush1.msra.mxu0 0.0
        %1004 = vmatprep.subr.mxu0 0.0
        %1005 = vmatpush1.msra.mxu0 0.0
        %1006 = vmatprep.subr.mxu0 0.0
        %1007 = vmatpush1.msra.mxu0 0.0
        %1008 = vmatprep.subr.mxu0 0.0
        %1009 = vmatpush1.msra.mxu0 0.0
        %1010 = vmatprep.subr.mxu0 0.0
        %1011 = vmatpush1.msra.mxu0 0.0
        %1012 = vmatprep.mubr.f32.mxu0 0.0
        %1013 = vmatmul.mubr.f32.gmra.mrb[0].mxu0 %v946
        %v1014 = vpop.f32.mrb[0].mxu0
        %v1015 = vadd.f32 0.0, %v1014
        %v1016 = vpop.f32.mrb[0].mxu0
        %1017 = vdwg.mxu0
        %1018 = vrot.lane.b32.xlu0 %v434, 64
        %v1019 = vpop.permute.xlu0 %1018
        %v1022 = vsel %vm443, %v789, 0
        %1024 = vmatprep.subr.mxu0 0.0
        %1025 = vmatpush1.msra.mxu0 %v1019
        %1026 = vmatprep.subr.mxu0 0.0
        %1027 = vmatpush1.msra.mxu0 0.0
        %1028 = vmatprep.subr.mxu0 0.0
        %1029 = vmatpush1.msra.mxu0 0.0
        %1030 = vmatprep.subr.mxu0 0.0
        %1031 = vmatpush1.msra.mxu0 0.0
        %1032 = vmatprep.subr.mxu0 0.0
        %1033 = vmatpush1.msra.mxu0 0.0
        %1034 = vmatprep.subr.mxu0 0.0
        %1035 = vmatpush1.msra.mxu0 0.0
        %1036 = vmatprep.subr.mxu0 0.0
        %1037 = vmatpush1.msra.mxu0 0.0
        %1038 = vmatprep.subr.mxu0 0.0
        %1039 = vmatpush1.msra.mxu0 0.0
        %1040 = vmatprep.subr.mxu0 0.0
        %1041 = vmatpush1.msra.mxu0 0.0
        %1042 = vmatprep.subr.mxu0 0.0
        %1043 = vmatpush1.msra.mxu0 0.0
        %1044 = vmatprep.subr.mxu0 0.0
        %1045 = vmatpush1.msra.mxu0 0.0
        %1046 = vmatprep.subr.mxu0 0.0
        %1047 = vmatpush1.msra.mxu0 0.0
        %1048 = vmatprep.subr.mxu0 0.0
        %1049 = vmatpush1.msra.mxu0 0.0
        %1050 = vmatprep.subr.mxu0 0.0
        %1051 = vmatpush1.msra.mxu0 0.0
        %1052 = vmatprep.subr.mxu0 0.0
        %1053 = vmatpush1.msra.mxu0 0.0
        %1054 = vmatprep.subr.mxu0 0.0
        %1055 = vmatpush1.msra.mxu0 0.0
        %1056 = vmatprep.subr.mxu0 0.0
        %1057 = vmatpush1.msra.mxu0 0.0
        %1058 = vmatprep.subr.mxu0 0.0
        %1059 = vmatpush1.msra.mxu0 0.0
        %1060 = vmatprep.subr.mxu0 0.0
        %1061 = vmatpush1.msra.mxu0 0.0
        %1062 = vmatprep.subr.mxu0 0.0
        %1063 = vmatpush1.msra.mxu0 0.0
        %1064 = vmatprep.subr.mxu0 0.0
        %1065 = vmatpush1.msra.mxu0 0.0
        %1066 = vmatprep.subr.mxu0 0.0
        %1067 = vmatpush1.msra.mxu0 0.0
        %1068 = vmatprep.subr.mxu0 0.0
        %1069 = vmatpush1.msra.mxu0 0.0
        %1070 = vmatprep.subr.mxu0 0.0
        %1071 = vmatpush1.msra.mxu0 0.0
        %1072 = vmatprep.subr.mxu0 0.0
        %1073 = vmatpush1.msra.mxu0 0.0
        %1074 = vmatprep.subr.mxu0 0.0
        %1075 = vmatpush1.msra.mxu0 0.0
        %1076 = vmatprep.subr.mxu0 0.0
        %1077 = vmatpush1.msra.mxu0 0.0
        %1078 = vmatprep.subr.mxu0 0.0
        %1079 = vmatpush1.msra.mxu0 0.0
        %1080 = vmatprep.subr.mxu0 0.0
        %1081 = vmatpush1.msra.mxu0 0.0
        %1082 = vmatprep.subr.mxu0 0.0
        %1083 = vmatpush1.msra.mxu0 0.0
        %1084 = vmatprep.subr.mxu0 0.0
        %1085 = vmatpush1.msra.mxu0 0.0
        %1086 = vmatprep.subr.mxu0 0.0
        %1087 = vmatpush1.msra.mxu0 0.0
        %1088 = vmatprep.mubr.f32.mxu0 0.0
        %1089 = vmatmul.mubr.f32.gmra.mrb[0].mxu0 %v1022
        %v1090 = vpop.f32.mrb[0].mxu0
        %v1091 = vadd.f32 0.0, %v1090
        %v1092 = vpop.f32.mrb[0].mxu0
        %1093 = vdwg.mxu0
        %1095 = vrot.lane.b32.xlu0 %v939, 8
        %v1096 = vpop.permute.xlu0 %1095
        %1099 = vrot.lane.b32.xlu0 %v1015, 16
        %v1100 = vpop.permute.xlu0 %1099
        %1103 = vrot.lane.b32.xlu0 %v1091, 24
        %v1104 = vpop.permute.xlu0 %1103
        %v1106 = vsel %vm443, %v863, %v1096
        %vm1107 = vcmask 130048
        %v1108 = vsel %vm1107, %v1106, %v1100
        %vm1109 = vcmask 195584
        %v1110 = vsel %vm1109, %v1108, %v1104
        %1115 = vrot.lane.b32.xlu0 %v338, 32
        %v1116 = vpop.permute.xlu0 %1115
        %1117 = vrot.lane.b32.xlu0 %v339, 32
        %v1118 = vpop.permute.xlu0 %1117
        %1119 = vrot.lane.b32.xlu0 %v340, 32
        %v1120 = vpop.permute.xlu0 %1119
        %1121 = vrot.lane.b32.xlu0 %v341, 32
        %v1122 = vpop.permute.xlu0 %1121
        %1127 = vrot.lane.b32.xlu0 %v353, 32
        %v1128 = vpop.permute.xlu0 %1127
        %v1131 = vsel %vm311, %v1110, 0
        %1133 = vmatprep.subr.mxu0 0.0
        %1134 = vmatpush1.msra.mxu0 %v1116
        %1135 = vmatprep.subr.mxu0 0.0
        %1136 = vmatpush1.msra.mxu0 %v1118
        %1137 = vmatprep.subr.mxu0 0.0
        %1138 = vmatpush1.msra.mxu0 %v1120
        %1139 = vmatprep.subr.mxu0 0.0
        %1140 = vmatpush1.msra.mxu0 %v1122
        %1141 = vmatprep.subr.mxu0 0.0
        %1142 = vmatpush1.msra.mxu0 0.0
        %1143 = vmatprep.subr.mxu0 0.0
        %1144 = vmatpush1.msra.mxu0 0.0
        %1145 = vmatprep.subr.mxu0 0.0
        %1146 = vmatpush1.msra.mxu0 0.0
        %1147 = vmatprep.subr.mxu0 0.0
        %1148 = vmatpush1.msra.mxu0 0.0
        %1149 = vmatprep.subr.mxu0 0.0
        %1150 = vmatpush1.msra.mxu0 0.0
        %1151 = vmatprep.subr.mxu0 0.0
        %1152 = vmatpush1.msra.mxu0 0.0
        %1153 = vmatprep.subr.mxu0 0.0
        %1154 = vmatpush1.msra.mxu0 0.0
        %1155 = vmatprep.subr.mxu0 0.0
        %1156 = vmatpush1.msra.mxu0 0.0
        %1157 = vmatprep.subr.mxu0 0.0
        %1158 = vmatpush1.msra.mxu0 0.0
        %1159 = vmatprep.subr.mxu0 0.0
        %1160 = vmatpush1.msra.mxu0 0.0
        %1161 = vmatprep.subr.mxu0 0.0
        %1162 = vmatpush1.msra.mxu0 0.0
        %1163 = vmatprep.subr.mxu0 0.0
        %1164 = vmatpush1.msra.mxu0 0.0
        %1165 = vmatprep.subr.mxu0 0.0
        %1166 = vmatpush1.msra.mxu0 0.0
        %1167 = vmatprep.subr.mxu0 0.0
        %1168 = vmatpush1.msra.mxu0 0.0
        %1169 = vmatprep.subr.mxu0 0.0
        %1170 = vmatpush1.msra.mxu0 0.0
        %1171 = vmatprep.subr.mxu0 0.0
        %1172 = vmatpush1.msra.mxu0 0.0
        %1173 = vmatprep.subr.mxu0 0.0
        %1174 = vmatpush1.msra.mxu0 0.0
        %1175 = vmatprep.subr.mxu0 0.0
        %1176 = vmatpush1.msra.mxu0 0.0
        %1177 = vmatprep.subr.mxu0 0.0
        %1178 = vmatpush1.msra.mxu0 0.0
        %1179 = vmatprep.subr.mxu0 0.0
        %1180 = vmatpush1.msra.mxu0 0.0
        %1181 = vmatprep.subr.mxu0 0.0
        %1182 = vmatpush1.msra.mxu0 0.0
        %1183 = vmatprep.subr.mxu0 0.0
        %1184 = vmatpush1.msra.mxu0 0.0
        %1185 = vmatprep.subr.mxu0 0.0
        %1186 = vmatpush1.msra.mxu0 0.0
        %1187 = vmatprep.subr.mxu0 0.0
        %1188 = vmatpush1.msra.mxu0 0.0
        %1189 = vmatprep.subr.mxu0 0.0
        %1190 = vmatpush1.msra.mxu0 0.0
        %1191 = vmatprep.subr.mxu0 0.0
        %1192 = vmatpush1.msra.mxu0 0.0
        %1193 = vmatprep.subr.mxu0 0.0
        %1194 = vmatpush1.msra.mxu0 0.0
        %1195 = vmatprep.subr.mxu0 0.0
        %1196 = vmatpush1.msra.mxu0 0.0
        %1197 = vmatprep.mubr.f32.mxu0 0.0
        %1198 = vmatmul.mubr.f32.gmra.mrb[0].mxu0 %v1131
        %v1199 = vpop.f32.mrb[0].mxu0
        %v1200 = vadd.f32 %v1128, %v1199
        %v1201 = vpop.f32.mrb[0].mxu0
        %1202 = vdwg.mxu0
        %v1203 = vadd.f32 %v1200, %v336
        %v1204 = vsel %vm311, %v1203, 0.0
        %1205 = vadd.xlane.f32.xlu0 %v1204
        %v1206 = vpop.xlane.xlu0 %1205
        %v1207 = vmul.f32 %v1206, %v315
        %v1208 = vsub.f32 %v1203, %v1207
        %v1209 = vmul.f32 %v1208, %v1208
        %v1210 = vsel %vm311, %v1209, 0.0
        %1211 = vadd.xlane.f32.xlu0 %v1210
        %v1212 = vpop.xlane.xlu0 %1211
        %v1213 = vmul.f32 %v1212, %v315
        %v1214 = vadd.f32 %v1213, 1e-12
        %v1215 = vrsqrt.pop %v1214
        %v1216 = vmul.f32 %v1208, %v1215
        %v1218 = vlaneseq
        %v1219 = vshrl.u32 %v1218, 7
        %v1220 = vsub.s32 0, %v1219
        %v1221 = vrot.slane %v347, %v1220
        %v1223 = vmul.f32 %v1216, %v1221
        %1224 = vrot.lane.b32.xlu0 %v1221, 96
        %v1225 = vpop.permute.xlu0 %1224
        %v1227 = vadd.f32 %v1223, %v1225
        %1228 = vrot.lane.b32.xlu0 %v1221, 64
        %v1229 = vpop.permute.xlu0 %1228
        %v1232 = vsel %vm311, %v1227, 0
        %1234 = vmatprep.subr.mxu0 0.0
        %1235 = vmatpush1.msra.mxu0 %v342
        %1236 = vmatprep.subr.mxu0 0.0
        %1237 = vmatpush1.msra.mxu0 %v343
        %1238 = vmatprep.subr.mxu0 0.0
        %1239 = vmatpush1.msra.mxu0 %v344
        %1240 = vmatprep.subr.mxu0 0.0
        %1241 = vmatpush1.msra.mxu0 %v345
        %1242 = vmatprep.subr.mxu0 0.0
        %1243 = vmatpush1.msra.mxu0 0.0
        %1244 = vmatprep.subr.mxu0 0.0
        %1245 = vmatpush1.msra.mxu0 0.0
        %1246 = vmatprep.subr.mxu0 0.0
        %1247 = vmatpush1.msra.mxu0 0.0
        %1248 = vmatprep.subr.mxu0 0.0
        %1249 = vmatpush1.msra.mxu0 0.0
        %1250 = vmatprep.subr.mxu0 0.0
        %1251 = vmatpush1.msra.mxu0 0.0
        %1252 = vmatprep.subr.mxu0 0.0
        %1253 = vmatpush1.msra.mxu0 0.0
        %1254 = vmatprep.subr.mxu0 0.0
        %1255 = vmatpush1.msra.mxu0 0.0
        %1256 = vmatprep.subr.mxu0 0.0
        %1257 = vmatpush1.msra.mxu0 0.0
        %1258 = vmatprep.subr.mxu0 0.0
        %1259 = vmatpush1.msra.mxu0 0.0
        %1260 = vmatprep.subr.mxu0 0.0
        %1261 = vmatpush1.msra.mxu0 0.0
        %1262 = vmatprep.subr.mxu0 0.0
        %1263 = vmatpush1.msra.mxu0 0.0
        %1264 = vmatprep.subr.mxu0 0.0
        %1265 = vmatpush1.msra.mxu0 0.0
        %1266 = vmatprep.subr.mxu0 0.0
        %1267 = vmatpush1.msra.mxu0 0.0
        %1268 = vmatprep.subr.mxu0 0.0
        %1269 = vmatpush1.msra.mxu0 0.0
        %1270 = vmatprep.subr.mxu0 0.0
        %1271 = vmatpush1.msra.mxu0 0.0
        %1272 = vmatprep.subr.mxu0 0.0
        %1273 = vmatpush1.msra.mxu0 0.0
        %1274 = vmatprep.subr.mxu0 0.0
        %1275 = vmatpush1.msra.mxu0 0.0
        %1276 = vmatprep.subr.mxu0 0.0
        %1277 = vmatpush1.msra.mxu0 0.0
        %1278 = vmatprep.subr.mxu0 0.0
        %1279 = vmatpush1.msra.mxu0 0.0
        %1280 = vmatprep.subr.mxu0 0.0
        %1281 = vmatpush1.msra.mxu0 0.0
        %1282 = vmatprep.subr.mxu0 0.0
        %1283 = vmatpush1.msra.mxu0 0.0
        %1284 = vmatprep.subr.mxu0 0.0
        %1285 = vmatpush1.msra.mxu0 0.0
        %1286 = vmatprep.subr.mxu0 0.0
        %1287 = vmatpush1.msra.mxu0 0.0
        %1288 = vmatprep.subr.mxu0 0.0
        %1289 = vmatpush1.msra.mxu0 0.0
        %1290 = vmatprep.subr.mxu0 0.0
        %1291 = vmatpush1.msra.mxu0 0.0
        %1292 = vmatprep.subr.mxu0 0.0
        %1293 = vmatpush1.msra.mxu0 0.0
        %1294 = vmatprep.subr.mxu0 0.0
        %1295 = vmatpush1.msra.mxu0 0.0
        %1296 = vmatprep.subr.mxu0 0.0
        %1297 = vmatpush1.msra.mxu0 0.0
        %1298 = vmatprep.mubr.f32.mxu0 0.0
        %1299 = vmatmul.mubr.f32.gmra.mrb[0].mxu0 %v1232
        %v1300 = vpop.f32.mrb[0].mxu0
        %v1301 = vadd.f32 %v1229, %v1300
        %v1302 = vpop.f32.mrb[0].mxu0
        %1303 = vdwg.mxu0
        %v1304 = vmul.f32 %v1301, 0.5
        %v1305 = vmul.f32 %v1301, 0.044715
        %v1306 = vmul.f32 %v1305, %v1301
        %v1307 = vmul.f32 %v1306, %v1301
        %v1308 = vadd.f32 %v1301, %v1307
        %v1309 = vmul.f32 %v1308, 0.7978846
        %v1310 = vtanh.pop %v1309
        %v1311 = vadd.f32 %v1310, 1.0
        %v1312 = vmul.f32 %v1304, %v1311
        %v1314 = vlaneseq
        %v1315 = vshrl.u32 %v1314, 7
        %v1316 = vsub.s32 0, %v1315
        %v1317 = vrot.slane %v348, %v1316
        %1323 = vrot.lane.b32.xlu0 %v342, 64
        %v1324 = vpop.permute.xlu0 %1323
        %1325 = vrot.lane.b32.xlu0 %v343, 64
        %v1326 = vpop.permute.xlu0 %1325
        %1327 = vrot.lane.b32.xlu0 %v344, 64
        %v1328 = vpop.permute.xlu0 %1327
        %1329 = vrot.lane.b32.xlu0 %v345, 64
        %v1330 = vpop.permute.xlu0 %1329
        %vm1331 = vcmask 523264
        %v1333 = vsel %vm1331, %v1312, 0
        %v1335 = vsel %vm1331, %v1324, 0
        %v1337 = vsel %vm1331, %v1326, 0
        %v1339 = vsel %vm1331, %v1328, 0
        %v1341 = vsel %vm1331, %v1330, 0
        %1343 = vmatprep.subr.mxu0 0.0
        %1344 = vmatpush1.xpose.msra.mxu0 %v1335
        %1345 = vmatprep.subr.mxu0 0.0
        %1346 = vmatpush1.xpose.msra.mxu0 %v1337
        %1347 = vmatprep.subr.mxu0 0.0
        %1348 = vmatpush1.xpose.msra.mxu0 %v1339
        %1349 = vmatprep.subr.mxu0 0.0
        %1350 = vmatpush1.xpose.msra.mxu0 %v1341
        %1351 = vmatprep.subr.mxu0 0.0
        %1352 = vmatpush1.xpose.msra.mxu0 0.0
        %1353 = vmatprep.subr.mxu0 0.0
        %1354 = vmatpush1.xpose.msra.mxu0 0.0
        %1355 = vmatprep.subr.mxu0 0.0
        %1356 = vmatpush1.xpose.msra.mxu0 0.0
        %1357 = vmatprep.subr.mxu0 0.0
        %1358 = vmatpush1.xpose.msra.mxu0 0.0
        %1359 = vmatprep.subr.mxu0 0.0
        %1360 = vmatpush1.xpose.msra.mxu0 0.0
        %1361 = vmatprep.subr.mxu0 0.0
        %1362 = vmatpush1.xpose.msra.mxu0 0.0
        %1363 = vmatprep.subr.mxu0 0.0
        %1364 = vmatpush1.xpose.msra.mxu0 0.0
        %1365 = vmatprep.subr.mxu0 0.0
        %1366 = vmatpush1.xpose.msra.mxu0 0.0
        %1367 = vmatprep.subr.mxu0 0.0
        %1368 = vmatpush1.xpose.msra.mxu0 0.0
        %1369 = vmatprep.subr.mxu0 0.0
        %1370 = vmatpush1.xpose.msra.mxu0 0.0
        %1371 = vmatprep.subr.mxu0 0.0
        %1372 = vmatpush1.xpose.msra.mxu0 0.0
        %1373 = vmatprep.subr.mxu0 0.0
        %1374 = vmatpush1.xpose.msra.mxu0 0.0
        %1375 = vmatprep.subr.mxu0 0.0
        %1376 = vmatpush1.xpose.msra.mxu0 0.0
        %1377 = vmatprep.subr.mxu0 0.0
        %1378 = vmatpush1.xpose.msra.mxu0 0.0
        %1379 = vmatprep.subr.mxu0 0.0
        %1380 = vmatpush1.xpose.msra.mxu0 0.0
        %1381 = vmatprep.subr.mxu0 0.0
        %1382 = vmatpush1.xpose.msra.mxu0 0.0
        %1383 = vmatprep.subr.mxu0 0.0
        %1384 = vmatpush1.xpose.msra.mxu0 0.0
        %1385 = vmatprep.subr.mxu0 0.0
        %1386 = vmatpush1.xpose.msra.mxu0 0.0
        %1387 = vmatprep.subr.mxu0 0.0
        %1388 = vmatpush1.xpose.msra.mxu0 0.0
        %1389 = vmatprep.subr.mxu0 0.0
        %1390 = vmatpush1.xpose.msra.mxu0 0.0
        %1391 = vmatprep.subr.mxu0 0.0
        %1392 = vmatpush1.xpose.msra.mxu0 0.0
        %1393 = vmatprep.subr.mxu0 0.0
        %1394 = vmatpush1.xpose.msra.mxu0 0.0
        %1395 = vmatprep.subr.mxu0 0.0
        %1396 = vmatpush1.xpose.msra.mxu0 0.0
        %1397 = vmatprep.subr.mxu0 0.0
        %1398 = vmatpush1.xpose.msra.mxu0 0.0
        %1399 = vmatprep.subr.mxu0 0.0
        %1400 = vmatpush1.xpose.msra.mxu0 0.0
        %1401 = vmatprep.subr.mxu0 0.0
        %1402 = vmatpush1.xpose.msra.mxu0 0.0
        %1403 = vmatprep.subr.mxu0 0.0
        %1404 = vmatpush1.xpose.msra.mxu0 0.0
        %1405 = vmatprep.subr.mxu0 0.0
        %1406 = vmatpush1.xpose.msra.mxu0 0.0
        %1407 = vmatprep.mubr.f32.mxu0 0.0
        %1408 = vmatmul.mubr.f32.gmra.mrb[0].mxu0 %v1333
        %v1409 = vpop.f32.mrb[0].mxu0
        %v1410 = vadd.f32 %v1317, %v1409
        %v1411 = vpop.f32.mrb[0].mxu0
        %1412 = vdwg.mxu0
        %v1413 = vadd.f32 %v1410, %v1227
        %v1414 = vsel %vm311, %v1413, 0.0
        %1415 = vadd.xlane.f32.xlu0 %v1414
        %v1416 = vpop.xlane.xlu0 %1415
        %v1417 = vmul.f32 %v1416, %v315
        %v1418 = vsub.f32 %v1413, %v1417
        %v1419 = vmul.f32 %v1418, %v1418
        %v1420 = vsel %vm311, %v1419, 0.0
        %1421 = vadd.xlane.f32.xlu0 %v1420
        %v1422 = vpop.xlane.xlu0 %1421
        %v1423 = vmul.f32 %v1422, %v315
        %v1424 = vadd.f32 %v1423, 1e-12
        %v1425 = vrsqrt.pop %v1424
        %v1426 = vmul.f32 %v1418, %v1425
        %1427 = vrot.lane.b32.xlu0 %v1317, 96
        %v1428 = vpop.permute.xlu0 %1427
        %v1430 = vmul.f32 %v1426, %v1428
        %1431 = vrot.lane.b32.xlu0 %v1317, 64
        %v1432 = vpop.permute.xlu0 %1431
        %v1434 = vadd.f32 %v1430, %v1432
        %s1435 = scalar_lea.vmem [#allocation5], 64
        %v1436 = vld [vmem:[%s1435] sm:$0xff]
        %v1437 = vld [vmem:[%s1435 + $0x10] sm:$0xff]
        %v1438 = vld [vmem:[%s1435 + $0x20] sm:$0xff]
        %v1439 = vld [vmem:[%s1435 + $0x30] sm:$0xff]
        %v1440 = vld [vmem:[%s1435 + $0x8] sm:$0xff]
        %v1441 = vld [vmem:[%s1435 + $0x18] sm:$0xff]
        %v1442 = vld [vmem:[%s1435 + $0x28] sm:$0xff]
        %v1443 = vld [vmem:[%s1435 + $0x38] sm:$0xff]
        %s1444 = scalar_lea.vmem %s3, 3
        %v1445 = vld [vmem:[%s1444] sm:$0x1]
        %v1446 = vld [vmem:[%s1444 + $0x1] sm:$0x1]
        %v1447 = vld [vmem:[%s1444 + $0x2] sm:$0x1]
        %v1449 = vlaneseq
        %v1450 = vshrl.u32 %v1449, 7
        %v1451 = vsub.s32 0, %v1450
        %v1452 = vrot.slane %v1445, %v1451
        %v1455 = vsel %vm311, %v1434, 0
        %1457 = vmatprep.subr.mxu0 0.0
        %1458 = vmatpush1.msra.mxu0 %v1436
        %1459 = vmatprep.subr.mxu0 0.0
        %1460 = vmatpush1.msra.mxu0 %v1437
        %1461 = vmatprep.subr.mxu0 0.0
        %1462 = vmatpush1.msra.mxu0 %v1438
        %1463 = vmatprep.subr.mxu0 0.0
        %1464 = vmatpush1.msra.mxu0 %v1439
        %1465 = vmatprep.subr.mxu0 0.0
        %1466 = vmatpush1.msra.mxu0 0.0
        %1467 = vmatprep.subr.mxu0 0.0
        %1468 = vmatpush1.msra.mxu0 0.0
        %1469 = vmatprep.subr.mxu0 0.0
        %1470 = vmatpush1.msra.mxu0 0.0
        %1471 = vmatprep.subr.mxu0 0.0
        %1472 = vmatpush1.msra.mxu0 0.0
        %1473 = vmatprep.subr.mxu0 0.0
        %1474 = vmatpush1.msra.mxu0 0.0
        %1475 = vmatprep.subr.mxu0 0.0
        %1476 = vmatpush1.msra.mxu0 0.0
        %1477 = vmatprep.subr.mxu0 0.0
        %1478 = vmatpush1.msra.mxu0 0.0
        %1479 = vmatprep.subr.mxu0 0.0
        %1480 = vmatpush1.msra.mxu0 0.0
        %1481 = vmatprep.subr.mxu0 0.0
        %1482 = vmatpush1.msra.mxu0 0.0
        %1483 = vmatprep.subr.mxu0 0.0
        %1484 = vmatpush1.msra.mxu0 0.0
        %1485 = vmatprep.subr.mxu0 0.0
        %1486 = vmatpush1.msra.mxu0 0.0
        %1487 = vmatprep.subr.mxu0 0.0
        %1488 = vmatpush1.msra.mxu0 0.0
        %1489 = vmatprep.subr.mxu0 0.0
        %1490 = vmatpush1.msra.mxu0 0.0
        %1491 = vmatprep.subr.mxu0 0.0
        %1492 = vmatpush1.msra.mxu0 0.0
        %1493 = vmatprep.subr.mxu0 0.0
        %1494 = vmatpush1.msra.mxu0 0.0
        %1495 = vmatprep.subr.mxu0 0.0
        %1496 = vmatpush1.msra.mxu0 0.0
        %1497 = vmatprep.subr.mxu0 0.0
        %1498 = vmatpush1.msra.mxu0 0.0
        %1499 = vmatprep.subr.mxu0 0.0
        %1500 = vmatpush1.msra.mxu0 0.0
        %1501 = vmatprep.subr.mxu0 0.0
        %1502 = vmatpush1.msra.mxu0 0.0
        %1503 = vmatprep.subr.mxu0 0.0
        %1504 = vmatpush1.msra.mxu0 0.0
        %1505 = vmatprep.subr.mxu0 0.0
        %1506 = vmatpush1.msra.mxu0 0.0
        %1507 = vmatprep.subr.mxu0 0.0
        %1508 = vmatpush1.msra.mxu0 0.0
        %1509 = vmatprep.subr.mxu0 0.0
        %1510 = vmatpush1.msra.mxu0 0.0
        %1511 = vmatprep.subr.mxu0 0.0
        %1512 = vmatpush1.msra.mxu0 0.0
        %1513 = vmatprep.subr.mxu0 0.0
        %1514 = vmatpush1.msra.mxu0 0.0
        %1515 = vmatprep.subr.mxu0 0.0
        %1516 = vmatpush1.msra.mxu0 0.0
        %1517 = vmatprep.subr.mxu0 0.0
        %1518 = vmatpush1.msra.mxu0 0.0
        %1519 = vmatprep.subr.mxu0 0.0
        %1520 = vmatpush1.msra.mxu0 0.0
        %1521 = vmatprep.mubr.f32.mxu0 0.0
        %1522 = vmatmul.mubr.f32.gmra.mrb[0].mxu0 %v1455
        %v1523 = vpop.f32.mrb[0].mxu0
        %v1524 = vadd.f32 %v1452, %v1523
        %v1525 = vpop.f32.mrb[0].mxu0
        %1526 = vdwg.mxu0
        %1528 = vrot.lane.b32.xlu0 %v1524, 120
        %v1529 = vpop.permute.xlu0 %1528
        %1530 = vrot.lane.b32.xlu0 %v1524, 112
        %v1531 = vpop.permute.xlu0 %1530
        %1532 = vrot.lane.b32.xlu0 %v1524, 104
        %v1533 = vpop.permute.xlu0 %1532
        %1534 = vrot.lane.b32.xlu0 %v1524, 96
        %v1535 = vpop.permute.xlu0 %1534
        %v1536 = vsel %vm443, %v1524, 0
        %v1538 = vsel %vm443, %v1535, 0
        %1540 = vmatprep.subr.mxu0 0.0
        %1541 = vmatpush1.xpose.msra.mxu0 %v1538
        %1542 = vmatprep.subr.mxu0 0.0
        %1543 = vmatpush1.xpose.msra.mxu0 0.0
        %1544 = vmatprep.subr.mxu0 0.0
        %1545 = vmatpush1.xpose.msra.mxu0 0.0
        %1546 = vmatprep.subr.mxu0 0.0
        %1547 = vmatpush1.xpose.msra.mxu0 0.0
        %1548 = vmatprep.subr.mxu0 0.0
        %1549 = vmatpush1.xpose.msra.mxu0 0.0
        %1550 = vmatprep.subr.mxu0 0.0
        %1551 = vmatpush1.xpose.msra.mxu0 0.0
        %1552 = vmatprep.subr.mxu0 0.0
        %1553 = vmatpush1.xpose.msra.mxu0 0.0
        %1554 = vmatprep.subr.mxu0 0.0
        %1555 = vmatpush1.xpose.msra.mxu0 0.0
        %1556 = vmatprep.subr.mxu0 0.0
        %1557 = vmatpush1.xpose.msra.mxu0 0.0
        %1558 = vmatprep.subr.mxu0 0.0
        %1559 = vmatpush1.xpose.msra.mxu0 0.0
        %1560 = vmatprep.subr.mxu0 0.0
        %1561 = vmatpush1.xpose.msra.mxu0 0.0
        %1562 = vmatprep.subr.mxu0 0.0
        %1563 = vmatpush1.xpose.msra.mxu0 0.0
        %1564 = vmatprep.subr.mxu0 0.0
        %1565 = vmatpush1.xpose.msra.mxu0 0.0
        %1566 = vmatprep.subr.mxu0 0.0
        %1567 = vmatpush1.xpose.msra.mxu0 0.0
        %1568 = vmatprep.subr.mxu0 0.0
        %1569 = vmatpush1.xpose.msra.mxu0 0.0
        %1570 = vmatprep.subr.mxu0 0.0
        %1571 = vmatpush1.xpose.msra.mxu0 0.0
        %1572 = vmatprep.subr.mxu0 0.0
        %1573 = vmatpush1.xpose.msra.mxu0 0.0
        %1574 = vmatprep.subr.mxu0 0.0
        %1575 = vmatpush1.xpose.msra.mxu0 0.0
        %1576 = vmatprep.subr.mxu0 0.0
        %1577 = vmatpush1.xpose.msra.mxu0 0.0
        %1578 = vmatprep.subr.mxu0 0.0
        %1579 = vmatpush1.xpose.msra.mxu0 0.0
        %1580 = vmatprep.subr.mxu0 0.0
        %1581 = vmatpush1.xpose.msra.mxu0 0.0
        %1582 = vmatprep.subr.mxu0 0.0
        %1583 = vmatpush1.xpose.msra.mxu0 0.0
        %1584 = vmatprep.subr.mxu0 0.0
        %1585 = vmatpush1.xpose.msra.mxu0 0.0
        %1586 = vmatprep.subr.mxu0 0.0
        %1587 = vmatpush1.xpose.msra.mxu0 0.0
        %1588 = vmatprep.subr.mxu0 0.0
        %1589 = vmatpush1.xpose.msra.mxu0 0.0
        %1590 = vmatprep.subr.mxu0 0.0
        %1591 = vmatpush1.xpose.msra.mxu0 0.0
        %1592 = vmatprep.subr.mxu0 0.0
        %1593 = vmatpush1.xpose.msra.mxu0 0.0
        %1594 = vmatprep.subr.mxu0 0.0
        %1595 = vmatpush1.xpose.msra.mxu0 0.0
        %1596 = vmatprep.subr.mxu0 0.0
        %1597 = vmatpush1.xpose.msra.mxu0 0.0
        %1598 = vmatprep.subr.mxu0 0.0
        %1599 = vmatpush1.xpose.msra.mxu0 0.0
        %1600 = vmatprep.subr.mxu0 0.0
        %1601 = vmatpush1.xpose.msra.mxu0 0.0
        %1602 = vmatprep.subr.mxu0 0.0
        %1603 = vmatpush1.xpose.msra.mxu0 0.0
        %1604 = vmatprep.mubr.f32.mxu0 0.0
        %1605 = vmatmul.mubr.f32.gmra.mrb[0].mxu0 %v1536
        %v1606 = vpop.f32.mrb[0].mxu0
        %v1607 = vadd.f32 %v439, %v1606
        %v1608 = vpop.f32.mrb[0].mxu0
        %1609 = vdwg.mxu0
        %1610 = vrot.lane.b32.xlu0 %v1529, 96
        %v1611 = vpop.permute.xlu0 %1610
        %v1612 = vsel %vm443, %v1529, 0
        %v1614 = vsel %vm443, %v1611, 0
        %1616 = vmatprep.subr.mxu0 0.0
        %1617 = vmatpush1.xpose.msra.mxu0 %v1614
        %1618 = vmatprep.subr.mxu0 0.0
        %1619 = vmatpush1.xpose.msra.mxu0 0.0
        %1620 = vmatprep.subr.mxu0 0.0
        %1621 = vmatpush1.xpose.msra.mxu0 0.0
        %1622 = vmatprep.subr.mxu0 0.0
        %1623 = vmatpush1.xpose.msra.mxu0 0.0
        %1624 = vmatprep.subr.mxu0 0.0
        %1625 = vmatpush1.xpose.msra.mxu0 0.0
        %1626 = vmatprep.subr.mxu0 0.0
        %1627 = vmatpush1.xpose.msra.mxu0 0.0
        %1628 = vmatprep.subr.mxu0 0.0
        %1629 = vmatpush1.xpose.msra.mxu0 0.0
        %1630 = vmatprep.subr.mxu0 0.0
        %1631 = vmatpush1.xpose.msra.mxu0 0.0
        %1632 = vmatprep.subr.mxu0 0.0
        %1633 = vmatpush1.xpose.msra.mxu0 0.0
        %1634 = vmatprep.subr.mxu0 0.0
        %1635 = vmatpush1.xpose.msra.mxu0 0.0
        %1636 = vmatprep.subr.mxu0 0.0
        %1637 = vmatpush1.xpose.msra.mxu0 0.0
        %1638 = vmatprep.subr.mxu0 0.0
        %1639 = vmatpush1.xpose.msra.mxu0 0.0
        %1640 = vmatprep.subr.mxu0 0.0
        %1641 = vmatpush1.xpose.msra.mxu0 0.0
        %1642 = vmatprep.subr.mxu0 0.0
        %1643 = vmatpush1.xpose.msra.mxu0 0.0
        %1644 = vmatprep.subr.mxu0 0.0
        %1645 = vmatpush1.xpose.msra.mxu0 0.0
        %1646 = vmatprep.subr.mxu0 0.0
        %1647 = vmatpush1.xpose.msra.mxu0 0.0
        %1648 = vmatprep.subr.mxu0 0.0
        %1649 = vmatpush1.xpose.msra.mxu0 0.0
        %1650 = vmatprep.subr.mxu0 0.0
        %1651 = vmatpush1.xpose.msra.mxu0 0.0
        %1652 = vmatprep.subr.mxu0 0.0
        %1653 = vmatpush1.xpose.msra.mxu0 0.0
        %1654 = vmatprep.subr.mxu0 0.0
        %1655 = vmatpush1.xpose.msra.mxu0 0.0
        %1656 = vmatprep.subr.mxu0 0.0
        %1657 = vmatpush1.xpose.msra.mxu0 0.0
        %1658 = vmatprep.subr.mxu0 0.0
        %1659 = vmatpush1.xpose.msra.mxu0 0.0
        %1660 = vmatprep.subr.mxu0 0.0
        %1661 = vmatpush1.xpose.msra.mxu0 0.0
        %1662 = vmatprep.subr.mxu0 0.0
        %1663 = vmatpush1.xpose.msra.mxu0 0.0
        %1664 = vmatprep.subr.mxu0 0.0
        %1665 = vmatpush1.xpose.msra.mxu0 0.0
        %1666 = vmatprep.subr.mxu0 0.0
        %1667 = vmatpush1.xpose.msra.mxu0 0.0
        %1668 = vmatprep.subr.mxu0 0.0
        %1669 = vmatpush1.xpose.msra.mxu0 0.0
        %1670 = vmatprep.subr.mxu0 0.0
        %1671 = vmatpush1.xpose.msra.mxu0 0.0
        %1672 = vmatprep.subr.mxu0 0.0
        %1673 = vmatpush1.xpose.msra.mxu0 0.0
        %1674 = vmatprep.subr.mxu0 0.0
        %1675 = vmatpush1.xpose.msra.mxu0 0.0
        %1676 = vmatprep.subr.mxu0 0.0
        %1677 = vmatpush1.xpose.msra.mxu0 0.0
        %1678 = vmatprep.subr.mxu0 0.0
        %1679 = vmatpush1.xpose.msra.mxu0 0.0
        %1680 = vmatprep.mubr.f32.mxu0 0.0
        %1681 = vmatmul.mubr.f32.gmra.mrb[0].mxu0 %v1612
        %v1682 = vpop.f32.mrb[0].mxu0
        %v1683 = vadd.f32 %v439, %v1682
        %v1684 = vpop.f32.mrb[0].mxu0
        %1685 = vdwg.mxu0
        %1686 = vrot.lane.b32.xlu0 %v1531, 96
        %v1687 = vpop.permute.xlu0 %1686
        %v1688 = vsel %vm443, %v1531, 0
        %v1690 = vsel %vm443, %v1687, 0
        %1692 = vmatprep.subr.mxu0 0.0
        %1693 = vmatpush1.xpose.msra.mxu0 %v1690
        %1694 = vmatprep.subr.mxu0 0.0
        %1695 = vmatpush1.xpose.msra.mxu0 0.0
        %1696 = vmatprep.subr.mxu0 0.0
        %1697 = vmatpush1.xpose.msra.mxu0 0.0
        %1698 = vmatprep.subr.mxu0 0.0
        %1699 = vmatpush1.xpose.msra.mxu0 0.0
        %1700 = vmatprep.subr.mxu0 0.0
        %1701 = vmatpush1.xpose.msra.mxu0 0.0
        %1702 = vmatprep.subr.mxu0 0.0
        %1703 = vmatpush1.xpose.msra.mxu0 0.0
        %1704 = vmatprep.subr.mxu0 0.0
        %1705 = vmatpush1.xpose.msra.mxu0 0.0
        %1706 = vmatprep.subr.mxu0 0.0
        %1707 = vmatpush1.xpose.msra.mxu0 0.0
        %1708 = vmatprep.subr.mxu0 0.0
        %1709 = vmatpush1.xpose.msra.mxu0 0.0
        %1710 = vmatprep.subr.mxu0 0.0
        %1711 = vmatpush1.xpose.msra.mxu0 0.0
        %1712 = vmatprep.subr.mxu0 0.0
        %1713 = vmatpush1.xpose.msra.mxu0 0.0
        %1714 = vmatprep.subr.mxu0 0.0
        %1715 = vmatpush1.xpose.msra.mxu0 0.0
        %1716 = vmatprep.subr.mxu0 0.0
        %1717 = vmatpush1.xpose.msra.mxu0 0.0
        %1718 = vmatprep.subr.mxu0 0.0
        %1719 = vmatpush1.xpose.msra.mxu0 0.0
        %1720 = vmatprep.subr.mxu0 0.0
        %1721 = vmatpush1.xpose.msra.mxu0 0.0
        %1722 = vmatprep.subr.mxu0 0.0
        %1723 = vmatpush1.xpose.msra.mxu0 0.0
        %1724 = vmatprep.subr.mxu0 0.0
        %1725 = vmatpush1.xpose.msra.mxu0 0.0
        %1726 = vmatprep.subr.mxu0 0.0
        %1727 = vmatpush1.xpose.msra.mxu0 0.0
        %1728 = vmatprep.subr.mxu0 0.0
        %1729 = vmatpush1.xpose.msra.mxu0 0.0
        %1730 = vmatprep.subr.mxu0 0.0
        %1731 = vmatpush1.xpose.msra.mxu0 0.0
        %1732 = vmatprep.subr.mxu0 0.0
        %1733 = vmatpush1.xpose.msra.mxu0 0.0
        %1734 = vmatprep.subr.mxu0 0.0
        %1735 = vmatpush1.xpose.msra.mxu0 0.0
        %1736 = vmatprep.subr.mxu0 0.0
        %1737 = vmatpush1.xpose.msra.mxu0 0.0
        %1738 = vmatprep.subr.mxu0 0.0
        %1739 = vmatpush1.xpose.msra.mxu0 0.0
        %1740 = vmatprep.subr.mxu0 0.0
        %1741 = vmatpush1.xpose.msra.mxu0 0.0
        %1742 = vmatprep.subr.mxu0 0.0
        %1743 = vmatpush1.xpose.msra.mxu0 0.0
        %1744 = vmatprep.subr.mxu0 0.0
        %1745 = vmatpush1.xpose.msra.mxu0 0.0
        %1746 = vmatprep.subr.mxu0 0.0
        %1747 = vmatpush1.xpose.msra.mxu0 0.0
        %1748 = vmatprep.subr.mxu0 0.0
        %1749 = vmatpush1.xpose.msra.mxu0 0.0
        %1750 = vmatprep.subr.mxu0 0.0
        %1751 = vmatpush1.xpose.msra.mxu0 0.0
        %1752 = vmatprep.subr.mxu0 0.0
        %1753 = vmatpush1.xpose.msra.mxu0 0.0
        %1754 = vmatprep.subr.mxu0 0.0
        %1755 = vmatpush1.xpose.msra.mxu0 0.0
        %1756 = vmatprep.mubr.f32.mxu0 0.0
        %1757 = vmatmul.mubr.f32.gmra.mrb[0].mxu0 %v1688
        %v1758 = vpop.f32.mrb[0].mxu0
        %v1759 = vadd.f32 %v439, %v1758
        %v1760 = vpop.f32.mrb[0].mxu0
        %1761 = vdwg.mxu0
        %1762 = vrot.lane.b32.xlu0 %v1533, 96
        %v1763 = vpop.permute.xlu0 %1762
        %v1764 = vsel %vm443, %v1533, 0
        %v1766 = vsel %vm443, %v1763, 0
        %1768 = vmatprep.subr.mxu0 0.0
        %1769 = vmatpush1.xpose.msra.mxu0 %v1766
        %1770 = vmatprep.subr.mxu0 0.0
        %1771 = vmatpush1.xpose.msra.mxu0 0.0
        %1772 = vmatprep.subr.mxu0 0.0
        %1773 = vmatpush1.xpose.msra.mxu0 0.0
        %1774 = vmatprep.subr.mxu0 0.0
        %1775 = vmatpush1.xpose.msra.mxu0 0.0
        %1776 = vmatprep.subr.mxu0 0.0
        %1777 = vmatpush1.xpose.msra.mxu0 0.0
        %1778 = vmatprep.subr.mxu0 0.0
        %1779 = vmatpush1.xpose.msra.mxu0 0.0
        %1780 = vmatprep.subr.mxu0 0.0
        %1781 = vmatpush1.xpose.msra.mxu0 0.0
        %1782 = vmatprep.subr.mxu0 0.0
        %1783 = vmatpush1.xpose.msra.mxu0 0.0
        %1784 = vmatprep.subr.mxu0 0.0
        %1785 = vmatpush1.xpose.msra.mxu0 0.0
        %1786 = vmatprep.subr.mxu0 0.0
        %1787 = vmatpush1.xpose.msra.mxu0 0.0
        %1788 = vmatprep.subr.mxu0 0.0
        %1789 = vmatpush1.xpose.msra.mxu0 0.0
        %1790 = vmatprep.subr.mxu0 0.0
        %1791 = vmatpush1.xpose.msra.mxu0 0.0
        %1792 = vmatprep.subr.mxu0 0.0
        %1793 = vmatpush1.xpose.msra.mxu0 0.0
        %1794 = vmatprep.subr.mxu0 0.0
        %1795 = vmatpush1.xpose.msra.mxu0 0.0
        %1796 = vmatprep.subr.mxu0 0.0
        %1797 = vmatpush1.xpose.msra.mxu0 0.0
        %1798 = vmatprep.subr.mxu0 0.0
        %1799 = vmatpush1.xpose.msra.mxu0 0.0
        %1800 = vmatprep.subr.mxu0 0.0
        %1801 = vmatpush1.xpose.msra.mxu0 0.0
        %1802 = vmatprep.subr.mxu0 0.0
        %1803 = vmatpush1.xpose.msra.mxu0 0.0
        %1804 = vmatprep.subr.mxu0 0.0
        %1805 = vmatpush1.xpose.msra.mxu0 0.0
        %1806 = vmatprep.subr.mxu0 0.0
        %1807 = vmatpush1.xpose.msra.mxu0 0.0
        %1808 = vmatprep.subr.mxu0 0.0
        %1809 = vmatpush1.xpose.msra.mxu0 0.0
        %1810 = vmatprep.subr.mxu0 0.0
        %1811 = vmatpush1.xpose.msra.mxu0 0.0
        %1812 = vmatprep.subr.mxu0 0.0
        %1813 = vmatpush1.xpose.msra.mxu0 0.0
        %1814 = vmatprep.subr.mxu0 0.0
        %1815 = vmatpush1.xpose.msra.mxu0 0.0
        %1816 = vmatprep.subr.mxu0 0.0
        %1817 = vmatpush1.xpose.msra.mxu0 0.0
        %1818 = vmatprep.subr.mxu0 0.0
        %1819 = vmatpush1.xpose.msra.mxu0 0.0
        %1820 = vmatprep.subr.mxu0 0.0
        %1821 = vmatpush1.xpose.msra.mxu0 0.0
        %1822 = vmatprep.subr.mxu0 0.0
        %1823 = vmatpush1.xpose.msra.mxu0 0.0
        %1824 = vmatprep.subr.mxu0 0.0
        %1825 = vmatpush1.xpose.msra.mxu0 0.0
        %1826 = vmatprep.subr.mxu0 0.0
        %1827 = vmatpush1.xpose.msra.mxu0 0.0
        %1828 = vmatprep.subr.mxu0 0.0
        %1829 = vmatpush1.xpose.msra.mxu0 0.0
        %1830 = vmatprep.subr.mxu0 0.0
        %1831 = vmatpush1.xpose.msra.mxu0 0.0
        %1832 = vmatprep.mubr.f32.mxu0 0.0
        %1833 = vmatmul.mubr.f32.gmra.mrb[0].mxu0 %v1764
        %v1834 = vpop.f32.mrb[0].mxu0
        %v1835 = vadd.f32 %v439, %v1834
        %v1836 = vpop.f32.mrb[0].mxu0
        %1837 = vdwg.mxu0
        %v1838 = vsel %vm443, %v1607, -inf
        %1839 = vmax.xlane.f32.xlu0 %v1838
        %v1840 = vpop.xlane.xlu0 %1839
        %v1841 = vsel %vm443, %v1683, -inf
        %1842 = vmax.xlane.f32.xlu0 %v1841
        %v1843 = vpop.xlane.xlu0 %1842
        %v1844 = vsel %vm443, %v1759, -inf
        %1845 = vmax.xlane.f32.xlu0 %v1844
        %v1846 = vpop.xlane.xlu0 %1845
        %v1847 = vsel %vm443, %v1835, -inf
        %1848 = vmax.xlane.f32.xlu0 %v1847
        %v1849 = vpop.xlane.xlu0 %1848
        %v1850 = vsub.f32 %v1607, %v1840
        %v1851 = vsub.f32 %v1683, %v1843
        %v1852 = vsub.f32 %v1759, %v1846
        %v1853 = vsub.f32 %v1835, %v1849
        %v1854 = vmul.f32 %v1850, 1.442695
        %v1855 = vpow.pop %v1854
        %v1856 = vmul.f32 %v1851, 1.442695
        %v1857 = vpow.pop %v1856
        %v1858 = vmul.f32 %v1852, 1.442695
        %v1859 = vpow.pop %v1858
        %v1860 = vmul.f32 %v1853, 1.442695
        %v1861 = vpow.pop %v1860
        %v1862 = vsel %vm443, %v1855, 0.0
        %1863 = vadd.xlane.f32.xlu0 %v1862
        %v1864 = vpop.xlane.xlu0 %1863
        %v1865 = vsel %vm443, %v1857, 0.0
        %1866 = vadd.xlane.f32.xlu0 %v1865
        %v1867 = vpop.xlane.xlu0 %1866
        %v1868 = vsel %vm443, %v1859, 0.0
        %1869 = vadd.xlane.f32.xlu0 %v1868
        %v1870 = vpop.xlane.xlu0 %1869
        %v1871 = vsel %vm443, %v1861, 0.0
        %1872 = vadd.xlane.f32.xlu0 %v1871
        %v1873 = vpop.xlane.xlu0 %1872
        %v1874 = vrcp.pop %v1864
        %v1875 = vmul.f32 %v1855, %v1874
        %v1876 = vrcp.pop %v1867
        %v1877 = vmul.f32 %v1857, %v1876
        %v1878 = vrcp.pop %v1870
        %v1879 = vmul.f32 %v1859, %v1878
        %v1880 = vrcp.pop %v1873
        %v1881 = vmul.f32 %v1861, %v1880
        %1882 = vrot.lane.b32.xlu0 %v1524, 64
        %v1883 = vpop.permute.xlu0 %1882
        %v1886 = vsel %vm443, %v1875, 0
        %1888 = vmatprep.subr.mxu0 0.0
        %1889 = vmatpush1.msra.mxu0 %v1883
        %1890 = vmatprep.subr.mxu0 0.0
        %1891 = vmatpush1.msra.mxu0 0.0
        %1892 = vmatprep.subr.mxu0 0.0
        %1893 = vmatpush1.msra.mxu0 0.0
        %1894 = vmatprep.subr.mxu0 0.0
        %1895 = vmatpush1.msra.mxu0 0.0
        %1896 = vmatprep.subr.mxu0 0.0
        %1897 = vmatpush1.msra.mxu0 0.0
        %1898 = vmatprep.subr.mxu0 0.0
        %1899 = vmatpush1.msra.mxu0 0.0
        %1900 = vmatprep.subr.mxu0 0.0
        %1901 = vmatpush1.msra.mxu0 0.0
        %1902 = vmatprep.subr.mxu0 0.0
        %1903 = vmatpush1.msra.mxu0 0.0
        %1904 = vmatprep.subr.mxu0 0.0
        %1905 = vmatpush1.msra.mxu0 0.0
        %1906 = vmatprep.subr.mxu0 0.0
        %1907 = vmatpush1.msra.mxu0 0.0
        %1908 = vmatprep.subr.mxu0 0.0
        %1909 = vmatpush1.msra.mxu0 0.0
        %1910 = vmatprep.subr.mxu0 0.0
        %1911 = vmatpush1.msra.mxu0 0.0
        %1912 = vmatprep.subr.mxu0 0.0
        %1913 = vmatpush1.msra.mxu0 0.0
        %1914 = vmatprep.subr.mxu0 0.0
        %1915 = vmatpush1.msra.mxu0 0.0
        %1916 = vmatprep.subr.mxu0 0.0
        %1917 = vmatpush1.msra.mxu0 0.0
        %1918 = vmatprep.subr.mxu0 0.0
        %1919 = vmatpush1.msra.mxu0 0.0
        %1920 = vmatprep.subr.mxu0 0.0
        %1921 = vmatpush1.msra.mxu0 0.0
        %1922 = vmatprep.subr.mxu0 0.0
        %1923 = vmatpush1.msra.mxu0 0.0
        %1924 = vmatprep.subr.mxu0 0.0
        %1925 = vmatpush1.msra.mxu0 0.0
        %1926 = vmatprep.subr.mxu0 0.0
        %1927 = vmatpush1.msra.mxu0 0.0
        %1928 = vmatprep.subr.mxu0 0.0
        %1929 = vmatpush1.msra.mxu0 0.0
        %1930 = vmatprep.subr.mxu0 0.0
        %1931 = vmatpush1.msra.mxu0 0.0
        %1932 = vmatprep.subr.mxu0 0.0
        %1933 = vmatpush1.msra.mxu0 0.0
        %1934 = vmatprep.subr.mxu0 0.0
        %1935 = vmatpush1.msra.mxu0 0.0
        %1936 = vmatprep.subr.mxu0 0.0
        %1937 = vmatpush1.msra.mxu0 0.0
        %1938 = vmatprep.subr.mxu0 0.0
        %1939 = vmatpush1.msra.mxu0 0.0
        %1940 = vmatprep.subr.mxu0 0.0
        %1941 = vmatpush1.msra.mxu0 0.0
        %1942 = vmatprep.subr.mxu0 0.0
        %1943 = vmatpush1.msra.mxu0 0.0
        %1944 = vmatprep.subr.mxu0 0.0
        %1945 = vmatpush1.msra.mxu0 0.0
        %1946 = vmatprep.subr.mxu0 0.0
        %1947 = vmatpush1.msra.mxu0 0.0
        %1948 = vmatprep.subr.mxu0 0.0
        %1949 = vmatpush1.msra.mxu0 0.0
        %1950 = vmatprep.subr.mxu0 0.0
        %1951 = vmatpush1.msra.mxu0 0.0
        %1952 = vmatprep.mubr.f32.mxu0 0.0
        %1953 = vmatmul.mubr.f32.gmra.mrb[0].mxu0 %v1886
        %v1954 = vpop.f32.mrb[0].mxu0
        %v1955 = vadd.f32 0.0, %v1954
        %v1956 = vpop.f32.mrb[0].mxu0
        %1957 = vdwg.mxu0
        %1958 = vrot.lane.b32.xlu0 %v1529, 64
        %v1959 = vpop.permute.xlu0 %1958
        %v1962 = vsel %vm443, %v1877, 0
        %1964 = vmatprep.subr.mxu0 0.0
        %1965 = vmatpush1.msra.mxu0 %v1959
        %1966 = vmatprep.subr.mxu0 0.0
        %1967 = vmatpush1.msra.mxu0 0.0
        %1968 = vmatprep.subr.mxu0 0.0
        %1969 = vmatpush1.msra.mxu0 0.0
        %1970 = vmatprep.subr.mxu0 0.0
        %1971 = vmatpush1.msra.mxu0 0.0
        %1972 = vmatprep.subr.mxu0 0.0
        %1973 = vmatpush1.msra.mxu0 0.0
        %1974 = vmatprep.subr.mxu0 0.0
        %1975 = vmatpush1.msra.mxu0 0.0
        %1976 = vmatprep.subr.mxu0 0.0
        %1977 = vmatpush1.msra.mxu0 0.0
        %1978 = vmatprep.subr.mxu0 0.0
        %1979 = vmatpush1.msra.mxu0 0.0
        %1980 = vmatprep.subr.mxu0 0.0
        %1981 = vmatpush1.msra.mxu0 0.0
        %1982 = vmatprep.subr.mxu0 0.0
        %1983 = vmatpush1.msra.mxu0 0.0
        %1984 = vmatprep.subr.mxu0 0.0
        %1985 = vmatpush1.msra.mxu0 0.0
        %1986 = vmatprep.subr.mxu0 0.0
        %1987 = vmatpush1.msra.mxu0 0.0
        %1988 = vmatprep.subr.mxu0 0.0
        %1989 = vmatpush1.msra.mxu0 0.0
        %1990 = vmatprep.subr.mxu0 0.0
        %1991 = vmatpush1.msra.mxu0 0.0
        %1992 = vmatprep.subr.mxu0 0.0
        %1993 = vmatpush1.msra.mxu0 0.0
        %1994 = vmatprep.subr.mxu0 0.0
        %1995 = vmatpush1.msra.mxu0 0.0
        %1996 = vmatprep.subr.mxu0 0.0
        %1997 = vmatpush1.msra.mxu0 0.0
        %1998 = vmatprep.subr.mxu0 0.0
        %1999 = vmatpush1.msra.mxu0 0.0
        %2000 = vmatprep.subr.mxu0 0.0
        %2001 = vmatpush1.msra.mxu0 0.0
        %2002 = vmatprep.subr.mxu0 0.0
        %2003 = vmatpush1.msra.mxu0 0.0
        %2004 = vmatprep.subr.mxu0 0.0
        %2005 = vmatpush1.msra.mxu0 0.0
        %2006 = vmatprep.subr.mxu0 0.0
        %2007 = vmatpush1.msra.mxu0 0.0
        %2008 = vmatprep.subr.mxu0 0.0
        %2009 = vmatpush1.msra.mxu0 0.0
        %2010 = vmatprep.subr.mxu0 0.0
        %2011 = vmatpush1.msra.mxu0 0.0
        %2012 = vmatprep.subr.mxu0 0.0
        %2013 = vmatpush1.msra.mxu0 0.0
        %2014 = vmatprep.subr.mxu0 0.0
        %2015 = vmatpush1.msra.mxu0 0.0
        %2016 = vmatprep.subr.mxu0 0.0
        %2017 = vmatpush1.msra.mxu0 0.0
        %2018 = vmatprep.subr.mxu0 0.0
        %2019 = vmatpush1.msra.mxu0 0.0
        %2020 = vmatprep.subr.mxu0 0.0
        %2021 = vmatpush1.msra.mxu0 0.0
        %2022 = vmatprep.subr.mxu0 0.0
        %2023 = vmatpush1.msra.mxu0 0.0
        %2024 = vmatprep.subr.mxu0 0.0
        %2025 = vmatpush1.msra.mxu0 0.0
        %2026 = vmatprep.subr.mxu0 0.0
        %2027 = vmatpush1.msra.mxu0 0.0
        %2028 = vmatprep.mubr.f32.mxu0 0.0
        %2029 = vmatmul.mubr.f32.gmra.mrb[0].mxu0 %v1962
        %v2030 = vpop.f32.mrb[0].mxu0
        %v2031 = vadd.f32 0.0, %v2030
        %v2032 = vpop.f32.mrb[0].mxu0
        %2033 = vdwg.mxu0
        %2034 = vrot.lane.b32.xlu0 %v1531, 64
        %v2035 = vpop.permute.xlu0 %2034
        %v2038 = vsel %vm443, %v1879, 0
        %2040 = vmatprep.subr.mxu0 0.0
        %2041 = vmatpush1.msra.mxu0 %v2035
        %2042 = vmatprep.subr.mxu0 0.0
        %2043 = vmatpush1.msra.mxu0 0.0
        %2044 = vmatprep.subr.mxu0 0.0
        %2045 = vmatpush1.msra.mxu0 0.0
        %2046 = vmatprep.subr.mxu0 0.0
        %2047 = vmatpush1.msra.mxu0 0.0
        %2048 = vmatprep.subr.mxu0 0.0
        %2049 = vmatpush1.msra.mxu0 0.0
        %2050 = vmatprep.subr.mxu0 0.0
        %2051 = vmatpush1.msra.mxu0 0.0
        %2052 = vmatprep.subr.mxu0 0.0
        %2053 = vmatpush1.msra.mxu0 0.0
        %2054 = vmatprep.subr.mxu0 0.0
        %2055 = vmatpush1.msra.mxu0 0.0
        %2056 = vmatprep.subr.mxu0 0.0
        %2057 = vmatpush1.msra.mxu0 0.0
        %2058 = vmatprep.subr.mxu0 0.0
        %2059 = vmatpush1.msra.mxu0 0.0
        %2060 = vmatprep.subr.mxu0 0.0
        %2061 = vmatpush1.msra.mxu0 0.0
        %2062 = vmatprep.subr.mxu0 0.0
        %2063 = vmatpush1.msra.mxu0 0.0
        %2064 = vmatprep.subr.mxu0 0.0
        %2065 = vmatpush1.msra.mxu0 0.0
        %2066 = vmatprep.subr.mxu0 0.0
        %2067 = vmatpush1.msra.mxu0 0.0
        %2068 = vmatprep.subr.mxu0 0.0
        %2069 = vmatpush1.msra.mxu0 0.0
        %2070 = vmatprep.subr.mxu0 0.0
        %2071 = vmatpush1.msra.mxu0 0.0
        %2072 = vmatprep.subr.mxu0 0.0
        %2073 = vmatpush1.msra.mxu0 0.0
        %2074 = vmatprep.subr.mxu0 0.0
        %2075 = vmatpush1.msra.mxu0 0.0
        %2076 = vmatprep.subr.mxu0 0.0
        %2077 = vmatpush1.msra.mxu0 0.0
        %2078 = vmatprep.subr.mxu0 0.0
        %2079 = vmatpush1.msra.mxu0 0.0
        %2080 = vmatprep.subr.mxu0 0.0
        %2081 = vmatpush1.msra.mxu0 0.0
        %2082 = vmatprep.subr.mxu0 0.0
        %2083 = vmatpush1.msra.mxu0 0.0
        %2084 = vmatprep.subr.mxu0 0.0
        %2085 = vmatpush1.msra.mxu0 0.0
        %2086 = vmatprep.subr.mxu0 0.0
        %2087 = vmatpush1.msra.mxu0 0.0
        %2088 = vmatprep.subr.mxu0 0.0
        %2089 = vmatpush1.msra.mxu0 0.0
        %2090 = vmatprep.subr.mxu0 0.0
        %2091 = vmatpush1.msra.mxu0 0.0
        %2092 = vmatprep.subr.mxu0 0.0
        %2093 = vmatpush1.msra.mxu0 0.0
        %2094 = vmatprep.subr.mxu0 0.0
        %2095 = vmatpush1.msra.mxu0 0.0
        %2096 = vmatprep.subr.mxu0 0.0
        %2097 = vmatpush1.msra.mxu0 0.0
        %2098 = vmatprep.subr.mxu0 0.0
        %2099 = vmatpush1.msra.mxu0 0.0
        %2100 = vmatprep.subr.mxu0 0.0
        %2101 = vmatpush1.msra.mxu0 0.0
        %2102 = vmatprep.subr.mxu0 0.0
        %2103 = vmatpush1.msra.mxu0 0.0
        %2104 = vmatprep.mubr.f32.mxu0 0.0
        %2105 = vmatmul.mubr.f32.gmra.mrb[0].mxu0 %v2038
        %v2106 = vpop.f32.mrb[0].mxu0
        %v2107 = vadd.f32 0.0, %v2106
        %v2108 = vpop.f32.mrb[0].mxu0
        %2109 = vdwg.mxu0
        %2110 = vrot.lane.b32.xlu0 %v1533, 64
        %v2111 = vpop.permute.xlu0 %2110
        %v2114 = vsel %vm443, %v1881, 0
        %2116 = vmatprep.subr.mxu0 0.0
        %2117 = vmatpush1.msra.mxu0 %v2111
        %2118 = vmatprep.subr.mxu0 0.0
        %2119 = vmatpush1.msra.mxu0 0.0
        %2120 = vmatprep.subr.mxu0 0.0
        %2121 = vmatpush1.msra.mxu0 0.0
        %2122 = vmatprep.subr.mxu0 0.0
        %2123 = vmatpush1.msra.mxu0 0.0
        %2124 = vmatprep.subr.mxu0 0.0
        %2125 = vmatpush1.msra.mxu0 0.0
        %2126 = vmatprep.subr.mxu0 0.0
        %2127 = vmatpush1.msra.mxu0 0.0
        %2128 = vmatprep.subr.mxu0 0.0
        %2129 = vmatpush1.msra.mxu0 0.0
        %2130 = vmatprep.subr.mxu0 0.0
        %2131 = vmatpush1.msra.mxu0 0.0
        %2132 = vmatprep.subr.mxu0 0.0
        %2133 = vmatpush1.msra.mxu0 0.0
        %2134 = vmatprep.subr.mxu0 0.0
        %2135 = vmatpush1.msra.mxu0 0.0
        %2136 = vmatprep.subr.mxu0 0.0
        %2137 = vmatpush1.msra.mxu0 0.0
        %2138 = vmatprep.subr.mxu0 0.0
        %2139 = vmatpush1.msra.mxu0 0.0
        %2140 = vmatprep.subr.mxu0 0.0
        %2141 = vmatpush1.msra.mxu0 0.0
        %2142 = vmatprep.subr.mxu0 0.0
        %2143 = vmatpush1.msra.mxu0 0.0
        %2144 = vmatprep.subr.mxu0 0.0
        %2145 = vmatpush1.msra.mxu0 0.0
        %2146 = vmatprep.subr.mxu0 0.0
        %2147 = vmatpush1.msra.mxu0 0.0
        %2148 = vmatprep.subr.mxu0 0.0
        %2149 = vmatpush1.msra.mxu0 0.0
        %2150 = vmatprep.subr.mxu0 0.0
        %2151 = vmatpush1.msra.mxu0 0.0
        %2152 = vmatprep.subr.mxu0 0.0
        %2153 = vmatpush1.msra.mxu0 0.0
        %2154 = vmatprep.subr.mxu0 0.0
        %2155 = vmatpush1.msra.mxu0 0.0
        %2156 = vmatprep.subr.mxu0 0.0
        %2157 = vmatpush1.msra.mxu0 0.0
        %2158 = vmatprep.subr.mxu0 0.0
        %2159 = vmatpush1.msra.mxu0 0.0
        %2160 = vmatprep.subr.mxu0 0.0
        %2161 = vmatpush1.msra.mxu0 0.0
        %2162 = vmatprep.subr.mxu0 0.0
        %2163 = vmatpush1.msra.mxu0 0.0
        %2164 = vmatprep.subr.mxu0 0.0
        %2165 = vmatpush1.msra.mxu0 0.0
        %2166 = vmatprep.subr.mxu0 0.0
        %2167 = vmatpush1.msra.mxu0 0.0
        %2168 = vmatprep.subr.mxu0 0.0
        %2169 = vmatpush1.msra.mxu0 0.0
        %2170 = vmatprep.subr.mxu0 0.0
        %2171 = vmatpush1.msra.mxu0 0.0
        %2172 = vmatprep.subr.mxu0 0.0
        %2173 = vmatpush1.msra.mxu0 0.0
        %2174 = vmatprep.subr.mxu0 0.0
        %2175 = vmatpush1.msra.mxu0 0.0
        %2176 = vmatprep.subr.mxu0 0.0
        %2177 = vmatpush1.msra.mxu0 0.0
        %2178 = vmatprep.subr.mxu0 0.0
        %2179 = vmatpush1.msra.mxu0 0.0
        %2180 = vmatprep.mubr.f32.mxu0 0.0
        %2181 = vmatmul.mubr.f32.gmra.mrb[0].mxu0 %v2114
        %v2182 = vpop.f32.mrb[0].mxu0
        %v2183 = vadd.f32 0.0, %v2182
        %v2184 = vpop.f32.mrb[0].mxu0
        %2185 = vdwg.mxu0
        %2187 = vrot.lane.b32.xlu0 %v2031, 8
        %v2188 = vpop.permute.xlu0 %2187
        %2191 = vrot.lane.b32.xlu0 %v2107, 16
        %v2192 = vpop.permute.xlu0 %2191
        %2195 = vrot.lane.b32.xlu0 %v2183, 24
        %v2196 = vpop.permute.xlu0 %2195
        %v2198 = vsel %vm443, %v1955, %v2188
        %v2199 = vsel %vm1107, %v2198, %v2192
        %v2200 = vsel %vm1109, %v2199, %v2196
        %2205 = vrot.lane.b32.xlu0 %v1436, 32
        %v2206 = vpop.permute.xlu0 %2205
        %2207 = vrot.lane.b32.xlu0 %v1437, 32
        %v2208 = vpop.permute.xlu0 %2207
        %2209 = vrot.lane.b32.xlu0 %v1438, 32
        %v2210 = vpop.permute.xlu0 %2209
        %2211 = vrot.lane.b32.xlu0 %v1439, 32
        %v2212 = vpop.permute.xlu0 %2211
        %2217 = vrot.lane.b32.xlu0 %v1452, 32
        %v2218 = vpop.permute.xlu0 %2217
        %v2221 = vsel %vm311, %v2200, 0
        %2223 = vmatprep.subr.mxu0 0.0
        %2224 = vmatpush1.msra.mxu0 %v2206
        %2225 = vmatprep.subr.mxu0 0.0
        %2226 = vmatpush1.msra.mxu0 %v2208
        %2227 = vmatprep.subr.mxu0 0.0
        %2228 = vmatpush1.msra.mxu0 %v2210
        %2229 = vmatprep.subr.mxu0 0.0
        %2230 = vmatpush1.msra.mxu0 %v2212
        %2231 = vmatprep.subr.mxu0 0.0
        %2232 = vmatpush1.msra.mxu0 0.0
        %2233 = vmatprep.subr.mxu0 0.0
        %2234 = vmatpush1.msra.mxu0 0.0
        %2235 = vmatprep.subr.mxu0 0.0
        %2236 = vmatpush1.msra.mxu0 0.0
        %2237 = vmatprep.subr.mxu0 0.0
        %2238 = vmatpush1.msra.mxu0 0.0
        %2239 = vmatprep.subr.mxu0 0.0
        %2240 = vmatpush1.msra.mxu0 0.0
        %2241 = vmatprep.subr.mxu0 0.0
        %2242 = vmatpush1.msra.mxu0 0.0
        %2243 = vmatprep.subr.mxu0 0.0
        %2244 = vmatpush1.msra.mxu0 0.0
        %2245 = vmatprep.subr.mxu0 0.0
        %2246 = vmatpush1.msra.mxu0 0.0
        %2247 = vmatprep.subr.mxu0 0.0
        %2248 = vmatpush1.msra.mxu0 0.0
        %2249 = vmatprep.subr.mxu0 0.0
        %2250 = vmatpush1.msra.mxu0 0.0
        %2251 = vmatprep.subr.mxu0 0.0
        %2252 = vmatpush1.msra.mxu0 0.0
        %2253 = vmatprep.subr.mxu0 0.0
        %2254 = vmatpush1.msra.mxu0 0.0
        %2255 = vmatprep.subr.mxu0 0.0
        %2256 = vmatpush1.msra.mxu0 0.0
        %2257 = vmatprep.subr.mxu0 0.0
        %2258 = vmatpush1.msra.mxu0 0.0
        %2259 = vmatprep.subr.mxu0 0.0
        %2260 = vmatpush1.msra.mxu0 0.0
        %2261 = vmatprep.subr.mxu0 0.0
        %2262 = vmatpush1.msra.mxu0 0.0
        %2263 = vmatprep.subr.mxu0 0.0
        %2264 = vmatpush1.msra.mxu0 0.0
        %2265 = vmatprep.subr.mxu0 0.0
        %2266 = vmatpush1.msra.mxu0 0.0
        %2267 = vmatprep.subr.mxu0 0.0
        %2268 = vmatpush1.msra.mxu0 0.0
        %2269 = vmatprep.subr.mxu0 0.0
        %2270 = vmatpush1.msra.mxu0 0.0
        %2271 = vmatprep.subr.mxu0 0.0
        %2272 = vmatpush1.msra.mxu0 0.0
        %2273 = vmatprep.subr.mxu0 0.0
        %2274 = vmatpush1.msra.mxu0 0.0
        %2275 = vmatprep.subr.mxu0 0.0
        %2276 = vmatpush1.msra.mxu0 0.0
        %2277 = vmatprep.subr.mxu0 0.0
        %2278 = vmatpush1.msra.mxu0 0.0
        %2279 = vmatprep.subr.mxu0 0.0
        %2280 = vmatpush1.msra.mxu0 0.0
        %2281 = vmatprep.subr.mxu0 0.0
        %2282 = vmatpush1.msra.mxu0 0.0
        %2283 = vmatprep.subr.mxu0 0.0
        %2284 = vmatpush1.msra.mxu0 0.0
        %2285 = vmatprep.subr.mxu0 0.0
        %2286 = vmatpush1.msra.mxu0 0.0
        %2287 = vmatprep.mubr.f32.mxu0 0.0
        %2288 = vmatmul.mubr.f32.gmra.mrb[0].mxu0 %v2221
        %v2289 = vpop.f32.mrb[0].mxu0
        %v2290 = vadd.f32 %v2218, %v2289
        %v2291 = vpop.f32.mrb[0].mxu0
        %2292 = vdwg.mxu0
        %v2293 = vadd.f32 %v2290, %v1434
        %v2294 = vsel %vm311, %v2293, 0.0
        %2295 = vadd.xlane.f32.xlu0 %v2294
        %v2296 = vpop.xlane.xlu0 %2295
        %v2297 = vmul.f32 %v2296, %v315
        %v2298 = vsub.f32 %v2293, %v2297
        %v2299 = vmul.f32 %v2298, %v2298
        %v2300 = vsel %vm311, %v2299, 0.0
        %2301 = vadd.xlane.f32.xlu0 %v2300
        %v2302 = vpop.xlane.xlu0 %2301
        %v2303 = vmul.f32 %v2302, %v315
        %v2304 = vadd.f32 %v2303, 1e-12
        %v2305 = vrsqrt.pop %v2304
        %v2306 = vmul.f32 %v2298, %v2305
        %v2308 = vlaneseq
        %v2309 = vshrl.u32 %v2308, 7
        %v2310 = vsub.s32 0, %v2309
        %v2311 = vrot.slane %v1446, %v2310
        %v2313 = vmul.f32 %v2306, %v2311
        %2314 = vrot.lane.b32.xlu0 %v2311, 96
        %v2315 = vpop.permute.xlu0 %2314
        %v2317 = vadd.f32 %v2313, %v2315
        %2318 = vrot.lane.b32.xlu0 %v2311, 64
        %v2319 = vpop.permute.xlu0 %2318
        %v2322 = vsel %vm311, %v2317, 0
        %2324 = vmatprep.subr.mxu0 0.0
        %2325 = vmatpush1.msra.mxu0 %v1440
        %2326 = vmatprep.subr.mxu0 0.0
        %2327 = vmatpush1.msra.mxu0 %v1441
        %2328 = vmatprep.subr.mxu0 0.0
        %2329 = vmatpush1.msra.mxu0 %v1442
        %2330 = vmatprep.subr.mxu0 0.0
        %2331 = vmatpush1.msra.mxu0 %v1443
        %2332 = vmatprep.subr.mxu0 0.0
        %2333 = vmatpush1.msra.mxu0 0.0
        %2334 = vmatprep.subr.mxu0 0.0
        %2335 = vmatpush1.msra.mxu0 0.0
        %2336 = vmatprep.subr.mxu0 0.0
        %2337 = vmatpush1.msra.mxu0 0.0
        %2338 = vmatprep.subr.mxu0 0.0
        %2339 = vmatpush1.msra.mxu0 0.0
        %2340 = vmatprep.subr.mxu0 0.0
        %2341 = vmatpush1.msra.mxu0 0.0
        %2342 = vmatprep.subr.mxu0 0.0
        %2343 = vmatpush1.msra.mxu0 0.0
        %2344 = vmatprep.subr.mxu0 0.0
        %2345 = vmatpush1.msra.mxu0 0.0
        %2346 = vmatprep.subr.mxu0 0.0
        %2347 = vmatpush1.msra.mxu0 0.0
        %2348 = vmatprep.subr.mxu0 0.0
        %2349 = vmatpush1.msra.mxu0 0.0
        %2350 = vmatprep.subr.mxu0 0.0
        %2351 = vmatpush1.msra.mxu0 0.0
        %2352 = vmatprep.subr.mxu0 0.0
        %2353 = vmatpush1.msra.mxu0 0.0
        %2354 = vmatprep.subr.mxu0 0.0
        %2355 = vmatpush1.msra.mxu0 0.0
        %2356 = vmatprep.subr.mxu0 0.0
        %2357 = vmatpush1.msra.mxu0 0.0
        %2358 = vmatprep.subr.mxu0 0.0
        %2359 = vmatpush1.msra.mxu0 0.0
        %2360 = vmatprep.subr.mxu0 0.0
        %2361 = vmatpush1.msra.mxu0 0.0
        %2362 = vmatprep.subr.mxu0 0.0
        %2363 = vmatpush1.msra.mxu0 0.0
        %2364 = vmatprep.subr.mxu0 0.0
        %2365 = vmatpush1.msra.mxu0 0.0
        %2366 = vmatprep.subr.mxu0 0.0
        %2367 = vmatpush1.msra.mxu0 0.0
        %2368 = vmatprep.subr.mxu0 0.0
        %2369 = vmatpush1.msra.mxu0 0.0
        %2370 = vmatprep.subr.mxu0 0.0
        %2371 = vmatpush1.msra.mxu0 0.0
        %2372 = vmatprep.subr.mxu0 0.0
        %2373 = vmatpush1.msra.mxu0 0.0
        %2374 = vmatprep.subr.mxu0 0.0
        %2375 = vmatpush1.msra.mxu0 0.0
        %2376 = vmatprep.subr.mxu0 0.0
        %2377 = vmatpush1.msra.mxu0 0.0
        %2378 = vmatprep.subr.mxu0 0.0
        %2379 = vmatpush1.msra.mxu0 0.0
        %2380 = vmatprep.subr.mxu0 0.0
        %2381 = vmatpush1.msra.mxu0 0.0
        %2382 = vmatprep.subr.mxu0 0.0
        %2383 = vmatpush1.msra.mxu0 0.0
        %2384 = vmatprep.subr.mxu0 0.0
        %2385 = vmatpush1.msra.mxu0 0.0
        %2386 = vmatprep.subr.mxu0 0.0
        %2387 = vmatpush1.msra.mxu0 0.0
        %2388 = vmatprep.mubr.f32.mxu0 0.0
        %2389 = vmatmul.mubr.f32.gmra.mrb[0].mxu0 %v2322
        %v2390 = vpop.f32.mrb[0].mxu0
        %v2391 = vadd.f32 %v2319, %v2390
        %v2392 = vpop.f32.mrb[0].mxu0
        %2393 = vdwg.mxu0
        %v2394 = vmul.f32 %v2391, 0.5
        %v2395 = vmul.f32 %v2391, 0.044715
        %v2396 = vmul.f32 %v2395, %v2391
        %v2397 = vmul.f32 %v2396, %v2391
        %v2398 = vadd.f32 %v2391, %v2397
        %v2399 = vmul.f32 %v2398, 0.7978846
        %v2400 = vtanh.pop %v2399
        %v2401 = vadd.f32 %v2400, 1.0
        %v2402 = vmul.f32 %v2394, %v2401
        %v2404 = vlaneseq
        %v2405 = vshrl.u32 %v2404, 7
        %v2406 = vsub.s32 0, %v2405
        %v2407 = vrot.slane %v1447, %v2406
        %2413 = vrot.lane.b32.xlu0 %v1440, 64
        %v2414 = vpop.permute.xlu0 %2413
        %2415 = vrot.lane.b32.xlu0 %v1441, 64
        %v2416 = vpop.permute.xlu0 %2415
        %2417 = vrot.lane.b32.xlu0 %v1442, 64
        %v2418 = vpop.permute.xlu0 %2417
        %2419 = vrot.lane.b32.xlu0 %v1443, 64
        %v2420 = vpop.permute.xlu0 %2419
        %v2422 = vsel %vm1331, %v2402, 0
        %v2424 = vsel %vm1331, %v2414, 0
        %v2426 = vsel %vm1331, %v2416, 0
        %v2428 = vsel %vm1331, %v2418, 0
        %v2430 = vsel %vm1331, %v2420, 0
        %2432 = vmatprep.subr.mxu0 0.0
        %2433 = vmatpush1.xpose.msra.mxu0 %v2424
        %2434 = vmatprep.subr.mxu0 0.0
        %2435 = vmatpush1.xpose.msra.mxu0 %v2426
        %2436 = vmatprep.subr.mxu0 0.0
        %2437 = vmatpush1.xpose.msra.mxu0 %v2428
        %2438 = vmatprep.subr.mxu0 0.0
        %2439 = vmatpush1.xpose.msra.mxu0 %v2430
        %2440 = vmatprep.subr.mxu0 0.0
        %2441 = vmatpush1.xpose.msra.mxu0 0.0
        %2442 = vmatprep.subr.mxu0 0.0
        %2443 = vmatpush1.xpose.msra.mxu0 0.0
        %2444 = vmatprep.subr.mxu0 0.0
        %2445 = vmatpush1.xpose.msra.mxu0 0.0
        %2446 = vmatprep.subr.mxu0 0.0
        %2447 = vmatpush1.xpose.msra.mxu0 0.0
        %2448 = vmatprep.subr.mxu0 0.0
        %2449 = vmatpush1.xpose.msra.mxu0 0.0
        %2450 = vmatprep.subr.mxu0 0.0
        %2451 = vmatpush1.xpose.msra.mxu0 0.0
        %2452 = vmatprep.subr.mxu0 0.0
        %2453 = vmatpush1.xpose.msra.mxu0 0.0
        %2454 = vmatprep.subr.mxu0 0.0
        %2455 = vmatpush1.xpose.msra.mxu0 0.0
        %2456 = vmatprep.subr.mxu0 0.0
        %2457 = vmatpush1.xpose.msra.mxu0 0.0
        %2458 = vmatprep.subr.mxu0 0.0
        %2459 = vmatpush1.xpose.msra.mxu0 0.0
        %2460 = vmatprep.subr.mxu0 0.0
        %2461 = vmatpush1.xpose.msra.mxu0 0.0
        %2462 = vmatprep.subr.mxu0 0.0
        %2463 = vmatpush1.xpose.msra.mxu0 0.0
        %2464 = vmatprep.subr.mxu0 0.0
        %2465 = vmatpush1.xpose.msra.mxu0 0.0
        %2466 = vmatprep.subr.mxu0 0.0
        %2467 = vmatpush1.xpose.msra.mxu0 0.0
        %2468 = vmatprep.subr.mxu0 0.0
        %2469 = vmatpush1.xpose.msra.mxu0 0.0
        %2470 = vmatprep.subr.mxu0 0.0
        %2471 = vmatpush1.xpose.msra.mxu0 0.0
        %2472 = vmatprep.subr.mxu0 0.0
        %2473 = vmatpush1.xpose.msra.mxu0 0.0
        %2474 = vmatprep.subr.mxu0 0.0
        %2475 = vmatpush1.xpose.msra.mxu0 0.0
        %2476 = vmatprep.subr.mxu0 0.0
        %2477 = vmatpush1.xpose.msra.mxu0 0.0
        %2478 = vmatprep.subr.mxu0 0.0
        %2479 = vmatpush1.xpose.msra.mxu0 0.0
        %2480 = vmatprep.subr.mxu0 0.0
        %2481 = vmatpush1.xpose.msra.mxu0 0.0
        %2482 = vmatprep.subr.mxu0 0.0
        %2483 = vmatpush1.xpose.msra.mxu0 0.0
        %2484 = vmatprep.subr.mxu0 0.0
        %2485 = vmatpush1.xpose.msra.mxu0 0.0
        %2486 = vmatprep.subr.mxu0 0.0
        %2487 = vmatpush1.xpose.msra.mxu0 0.0
        %2488 = vmatprep.subr.mxu0 0.0
        %2489 = vmatpush1.xpose.msra.mxu0 0.0
        %2490 = vmatprep.subr.mxu0 0.0
        %2491 = vmatpush1.xpose.msra.mxu0 0.0
        %2492 = vmatprep.subr.mxu0 0.0
        %2493 = vmatpush1.xpose.msra.mxu0 0.0
        %2494 = vmatprep.subr.mxu0 0.0
        %2495 = vmatpush1.xpose.msra.mxu0 0.0
        %2496 = vmatprep.mubr.f32.mxu0 0.0
        %2497 = vmatmul.mubr.f32.gmra.mrb[0].mxu0 %v2422
        %v2498 = vpop.f32.mrb[0].mxu0
        %v2499 = vadd.f32 %v2407, %v2498
        %v2500 = vpop.f32.mrb[0].mxu0
        %2501 = vdwg.mxu0
        %v2502 = vadd.f32 %v2499, %v2317
        %v2503 = vsel %vm311, %v2502, 0.0
        %2504 = vadd.xlane.f32.xlu0 %v2503
        %v2505 = vpop.xlane.xlu0 %2504
        %v2506 = vmul.f32 %v2505, %v315
        %v2507 = vsub.f32 %v2502, %v2506
        %v2508 = vmul.f32 %v2507, %v2507
        %v2509 = vsel %vm311, %v2508, 0.0
        %2510 = vadd.xlane.f32.xlu0 %v2509
        %v2511 = vpop.xlane.xlu0 %2510
        %v2512 = vmul.f32 %v2511, %v315
        %v2513 = vadd.f32 %v2512, 1e-12
        %v2514 = vrsqrt.pop %v2513
        %v2515 = vmul.f32 %v2507, %v2514
        %2516 = vrot.lane.b32.xlu0 %v2407, 96
        %v2517 = vpop.permute.xlu0 %2516
        %v2519 = vmul.f32 %v2515, %v2517
        %2520 = vrot.lane.b32.xlu0 %v2407, 64
        %v2521 = vpop.permute.xlu0 %2520
        %v2523 = vadd.f32 %v2519, %v2521
        %v2524 = vld [vmem:[#allocation7] sm:$0xff]
        %v2525 = vld [vmem:[#allocation7 + $0x10] sm:$0xff]
        %v2526 = vld [vmem:[#allocation7 + $0x20] sm:$0xff]
        %v2527 = vld [vmem:[#allocation7 + $0x30] sm:$0xff]
        %v2528 = vld [vmem:[#allocation7 + $0x8] sm:$0xff]
        %v2529 = vld [vmem:[#allocation7 + $0x18] sm:$0xff]
        %v2530 = vld [vmem:[#allocation7 + $0x28] sm:$0xff]
        %v2531 = vld [vmem:[#allocation7 + $0x38] sm:$0xff]
        %v2532 = vld [vmem:[%s5] sm:$0x1]
        %v2533 = vld [vmem:[%s5] sm:$0x3]
        %v2535 = vlaneseq
        %v2536 = vshrl.u32 %v2535, 7
        %v2537 = vsub.s32 0, %v2536
        %v2538 = vrot.slane %v2532, %v2537
        %2539 = vrot.lane.b32.xlu0 %v2538, 64
        %v2540 = vpop.permute.xlu0 %2539
        %v2543 = vsel %vm311, %v2523, 0
        %2545 = vmatprep.subr.mxu0 0.0
        %2546 = vmatpush1.msra.mxu0 %v2524
        %2547 = vmatprep.subr.mxu0 0.0
        %2548 = vmatpush1.msra.mxu0 %v2525
        %2549 = vmatprep.subr.mxu0 0.0
        %2550 = vmatpush1.msra.mxu0 %v2526
        %2551 = vmatprep.subr.mxu0 0.0
        %2552 = vmatpush1.msra.mxu0 %v2527
        %2553 = vmatprep.subr.mxu0 0.0
        %2554 = vmatpush1.msra.mxu0 0.0
        %2555 = vmatprep.subr.mxu0 0.0
        %2556 = vmatpush1.msra.mxu0 0.0
        %2557 = vmatprep.subr.mxu0 0.0
        %2558 = vmatpush1.msra.mxu0 0.0
        %2559 = vmatprep.subr.mxu0 0.0
        %2560 = vmatpush1.msra.mxu0 0.0
        %2561 = vmatprep.subr.mxu0 0.0
        %2562 = vmatpush1.msra.mxu0 0.0
        %2563 = vmatprep.subr.mxu0 0.0
        %2564 = vmatpush1.msra.mxu0 0.0
        %2565 = vmatprep.subr.mxu0 0.0
        %2566 = vmatpush1.msra.mxu0 0.0
        %2567 = vmatprep.subr.mxu0 0.0
        %2568 = vmatpush1.msra.mxu0 0.0
        %2569 = vmatprep.subr.mxu0 0.0
        %2570 = vmatpush1.msra.mxu0 0.0
        %2571 = vmatprep.subr.mxu0 0.0
        %2572 = vmatpush1.msra.mxu0 0.0
        %2573 = vmatprep.subr.mxu0 0.0
        %2574 = vmatpush1.msra.mxu0 0.0
        %2575 = vmatprep.subr.mxu0 0.0
        %2576 = vmatpush1.msra.mxu0 0.0
        %2577 = vmatprep.subr.mxu0 0.0
        %2578 = vmatpush1.msra.mxu0 0.0
        %2579 = vmatprep.subr.mxu0 0.0
        %2580 = vmatpush1.msra.mxu0 0.0
        %2581 = vmatprep.subr.mxu0 0.0
        %2582 = vmatpush1.msra.mxu0 0.0
        %2583 = vmatprep.subr.mxu0 0.0
        %2584 = vmatpush1.msra.mxu0 0.0
        %2585 = vmatprep.subr.mxu0 0.0
        %2586 = vmatpush1.msra.mxu0 0.0
        %2587 = vmatprep.subr.mxu0 0.0
        %2588 = vmatpush1.msra.mxu0 0.0
        %2589 = vmatprep.subr.mxu0 0.0
        %2590 = vmatpush1.msra.mxu0 0.0
        %2591 = vmatprep.subr.mxu0 0.0
        %2592 = vmatpush1.msra.mxu0 0.0
        %2593 = vmatprep.subr.mxu0 0.0
        %2594 = vmatpush1.msra.mxu0 0.0
        %2595 = vmatprep.subr.mxu0 0.0
        %2596 = vmatpush1.msra.mxu0 0.0
        %2597 = vmatprep.subr.mxu0 0.0
        %2598 = vmatpush1.msra.mxu0 0.0
        %2599 = vmatprep.subr.mxu0 0.0
        %2600 = vmatpush1.msra.mxu0 0.0
        %2601 = vmatprep.subr.mxu0 0.0
        %2602 = vmatpush1.msra.mxu0 0.0
        %2603 = vmatprep.subr.mxu0 0.0
        %2604 = vmatpush1.msra.mxu0 0.0
        %2605 = vmatprep.subr.mxu0 0.0
        %2606 = vmatpush1.msra.mxu0 0.0
        %2607 = vmatprep.subr.mxu0 0.0
        %2608 = vmatpush1.msra.mxu0 0.0
        %2609 = vmatprep.mubr.f32.mxu0 0.0
        %2610 = vmatmul.mubr.f32.gmra.mrb[0].mxu0 %v2543
        %v2611 = vpop.f32.mrb[0].mxu0
        %v2612 = vadd.f32 %v2540, %v2611
        %v2613 = vpop.f32.mrb[0].mxu0
        %2614 = vdwg.mxu0
        %v2615 = vtanh.pop %v2612
        %2624 = vrot.lane.b32.xlu0 %v2524, 96
        %v2625 = vpop.permute.xlu0 %2624
        %2626 = vrot.lane.b32.xlu0 %v2528, 96
        %v2627 = vpop.permute.xlu0 %2626
        %2628 = vrot.lane.b32.xlu0 %v2525, 96
        %v2629 = vpop.permute.xlu0 %2628
        %2630 = vrot.lane.b32.xlu0 %v2529, 96
        %v2631 = vpop.permute.xlu0 %2630
        %2632 = vrot.lane.b32.xlu0 %v2526, 96
        %v2633 = vpop.permute.xlu0 %2632
        %2634 = vrot.lane.b32.xlu0 %v2530, 96
        %v2635 = vpop.permute.xlu0 %2634
        %2636 = vrot.lane.b32.xlu0 %v2527, 96
        %v2637 = vpop.permute.xlu0 %2636
        %2638 = vrot.lane.b32.xlu0 %v2531, 96
        %v2639 = vpop.permute.xlu0 %2638
        %vm2640 = vcmask 785408
        %v2641 = vsel %vm2640, %v2625, %v2627
        %v2642 = vsel %vm2640, %v2629, %v2631
        %v2643 = vsel %vm2640, %v2633, %v2635
        %v2644 = vsel %vm2640, %v2637, %v2639
        %v2650 = vlaneseq
        %v2651 = vshrl.u32 %v2650, 7
        %v2652 = vsub.s32 0, %v2651
        %v2653 = vrot.slane %v2533, %v2652
        %v2654 = vlaneseq
        %v2655 = vshrl.u32 %v2654, 7
        %v2656 = vsub.s32 1, %v2655
        %v2657 = vrot.slane %v2533, %v2656
        %2658 = vrot.lane.b32.xlu0 %v2653, 32
        %v2659 = vpop.permute.xlu0 %2658
        %2660 = vrot.lane.b32.xlu0 %v2657, 32
        %v2661 = vpop.permute.xlu0 %2660
        %v2662 = vsel %vm311, %v2659, %v2661
        %v2665 = vsel %vm311, %v2615, 0
        %2667 = vmatprep.subr.mxu0 0.0
        %2668 = vmatpush1.msra.mxu0 %v2641
        %2669 = vmatprep.subr.mxu0 0.0
        %2670 = vmatpush1.msra.mxu0 %v2642
        %2671 = vmatprep.subr.mxu0 0.0
        %2672 = vmatpush1.msra.mxu0 %v2643
        %2673 = vmatprep.subr.mxu0 0.0
        %2674 = vmatpush1.msra.mxu0 %v2644
        %2675 = vmatprep.subr.mxu0 0.0
        %2676 = vmatpush1.msra.mxu0 0.0
        %2677 = vmatprep.subr.mxu0 0.0
        %2678 = vmatpush1.msra.mxu0 0.0
        %2679 = vmatprep.subr.mxu0 0.0
        %2680 = vmatpush1.msra.mxu0 0.0
        %2681 = vmatprep.subr.mxu0 0.0
        %2682 = vmatpush1.msra.mxu0 0.0
        %2683 = vmatprep.subr.mxu0 0.0
        %2684 = vmatpush1.msra.mxu0 0.0
        %2685 = vmatprep.subr.mxu0 0.0
        %2686 = vmatpush1.msra.mxu0 0.0
        %2687 = vmatprep.subr.mxu0 0.0
        %2688 = vmatpush1.msra.mxu0 0.0
        %2689 = vmatprep.subr.mxu0 0.0
        %2690 = vmatpush1.msra.mxu0 0.0
        %2691 = vmatprep.subr.mxu0 0.0
        %2692 = vmatpush1.msra.mxu0 0.0
        %2693 = vmatprep.subr.mxu0 0.0
        %2694 = vmatpush1.msra.mxu0 0.0
        %2695 = vmatprep.subr.mxu0 0.0
        %2696 = vmatpush1.msra.mxu0 0.0
        %2697 = vmatprep.subr.mxu0 0.0
        %2698 = vmatpush1.msra.mxu0 0.0
        %2699 = vmatprep.subr.mxu0 0.0
        %2700 = vmatpush1.msra.mxu0 0.0
        %2701 = vmatprep.subr.mxu0 0.0
        %2702 = vmatpush1.msra.mxu0 0.0
        %2703 = vmatprep.subr.mxu0 0.0
        %2704 = vmatpush1.msra.mxu0 0.0
        %2705 = vmatprep.subr.mxu0 0.0
        %2706 = vmatpush1.msra.mxu0 0.0
        %2707 = vmatprep.subr.mxu0 0.0
        %2708 = vmatpush1.msra.mxu0 0.0
        %2709 = vmatprep.subr.mxu0 0.0
        %2710 = vmatpush1.msra.mxu0 0.0
        %2711 = vmatprep.subr.mxu0 0.0
        %2712 = vmatpush1.msra.mxu0 0.0
        %2713 = vmatprep.subr.mxu0 0.0
        %2714 = vmatpush1.msra.mxu0 0.0
        %2715 = vmatprep.subr.mxu0 0.0
        %2716 = vmatpush1.msra.mxu0 0.0
        %2717 = vmatprep.subr.mxu0 0.0
        %2718 = vmatpush1.msra.mxu0 0.0
        %2719 = vmatprep.subr.mxu0 0.0
        %2720 = vmatpush1.msra.mxu0 0.0
        %2721 = vmatprep.subr.mxu0 0.0
        %2722 = vmatpush1.msra.mxu0 0.0
        %2723 = vmatprep.subr.mxu0 0.0
        %2724 = vmatpush1.msra.mxu0 0.0
        %2725 = vmatprep.subr.mxu0 0.0
        %2726 = vmatpush1.msra.mxu0 0.0
        %2727 = vmatprep.subr.mxu0 0.0
        %2728 = vmatpush1.msra.mxu0 0.0
        %2729 = vmatprep.subr.mxu0 0.0
        %2730 = vmatpush1.msra.mxu0 0.0
        %2731 = vmatprep.mubr.f32.mxu0 0.0
        %2732 = vmatmul.mubr.f32.gmra.mrb[0].mxu0 %v2665
        %v2733 = vpop.f32.mrb[0].mxu0
        %v2734 = vadd.f32 %v2662, %v2733
        %v2735 = vpop.f32.mrb[0].mxu0
        %2736 = vdwg.mxu0
        %2737 = vst [vmem:[%s305] sm:$0x1] %v2734
        %s2738 = sand.u32 %s168, 1
        %s2739 = scalar_lea.sflag [#allocation4], %s2738
        %s2740 = sand.u32 %s168, 1
        %s2741 = scalar_lea.vmem [#allocation8], %s2740
        // Predicated region
        $region57: #{tpu_custom_call.1} parent=43 // pred_check
          %p2742 = pneg %p178
        $region58: #{tpu_custom_call.1} parent=43 // pred_check_branch
          %2744 = sbr.rel (%p2742) target = $region60
        $region59: #{tpu_custom_call.1} parent=43 // pred_region
          %s2746 = ssub.s32 16, 16
          %2747 = vsyncadd %s2739, %s2746
          %s2748 = smul.addr %s24, 16
          %s2749 = scalar_lea.hbm %s6, %s2748
          %s2751 = sshll.u32 %s2741, 4
          %s2752 = int_to_ptr.vmem [resolvable:$true] %s2751
          %2754 = dma.vmem_to_hbm [thread:$0]  %s2752, 16, %s2749, %s2739
        $region60: #{tpu_custom_call.1} parent=43 // pred_fallthru
          _
      $region44: #{tpu_custom_call.1} parent=5 // pred_fallthru
        _
      %p2755 = scmp.le.s32.totalorder 2, %s19
      // Predicated region
      $region61: #{tpu_custom_call.1} parent=5 // pred_check
        %p2756 = pneg %p2755
      $region62: #{tpu_custom_call.1} parent=5 // pred_check_branch
        %2758 = sbr.rel (%p2756) target = $region64
      $region63: #{tpu_custom_call.1} parent=5 // pred_region
        %s2759 = ssub.s32 %s19, 2
        // Predicated region
        $region65: #{tpu_custom_call.1} parent=63 // pred_check
          %p2760 = pneg %p184
        $region66: #{tpu_custom_call.1} parent=63 // pred_check_branch
          %2762 = sbr.rel (%p2760) target = $region68
        $region67: #{tpu_custom_call.1} parent=63 // pred_region
          %s2763 = sand.u32 %s169, 1
          %s2764 = scalar_lea.sflag [#allocation4], %s2763
          %s2765 = sand.u32 %s169, 1
          %s2766 = scalar_lea.vmem [#allocation8], %s2765
          %2767 = dma.done %s2764, 16
        $region68: #{tpu_custom_call.1} parent=63 // pred_fallthru
          _
      $region64: #{tpu_custom_call.1} parent=5 // pred_fallthru
        _
    $region6: #{tpu_custom_call.1} parent=1 // loop_footer
      %s23 = sadd.s32 1, %s19
    $region7: #{tpu_custom_call.1} parent=1 // loop_footer_branch
      %18 = sbr.rel target = $region3
    $region8: #{tpu_custom_call.1} parent=1 // loop_exit
      _
    %2768 = vsyncpa [#allocation3], 1
    %s2769 = scalar_lea.sflag [#allocation3], 1
    %2770 = vsyncpa %s2769, 1
    %2771 = vsyncpa [#allocation6], 1
    %2772 = vsyncpa [#allocation4], 1
    %s2773 = scalar_lea.sflag [#allocation4], 1
    %2774 = vsyncpa %s2773, 1

</llo_original>
